<compile_context>
chip_gen: v7x
topology: tpu7x:2x2x1
jax: 0.10.0
libtpu: 0.0.40
codegen_flags: <defaults>
</compile_context>

<pallas_src>
import functools
import math

import jax
import jax.numpy as jnp
from jax.experimental import pallas as pl
from jax.experimental.pallas import tpu as pltpu

_LOG_EPS = math.log(1e-8)


# ----------------------------- fused forward kernel -------------------------

def _lightgcl_kernel(idx_ref, e0_ref, av_s_ref, av_h_ref, sshh_ref, umsvms_ref,
                     ps_ref, gb_ref,
                     pre_ref, loss_ref,
                     tab_s, tab_h, gbuf_s, gbuf_h, gbuf_p, gbuf_n,
                     *, n_s, n_h, dim, q, layer, temp, lambda_1, lambda_2,
                     batch):
    f32 = jnp.float32
    bf16 = jnp.bfloat16
    inv_temp = 1.0 / temp
    inv_batch = 1.0 / batch

    def mm(a, b):                       # a @ b        (bf16 MXU, f32 accumulate)
        return jnp.dot(a, b, preferred_element_type=f32)

    def mm_tb(a, b):                    # a @ b.T      (transpose inside the MXU)
        return jax.lax.dot_general(a.astype(bf16), b.astype(bf16),
                                   (((1,), (1,)), ((), ())),
                                   preferred_element_type=f32)

    # ---- loop-invariant, host-pre-stacked bf16 operands ----
    av_s = av_s_ref[...]          # [adj ; vt]                    (n_s+q, n_h)
    av_h = av_h_ref[...]          # [adj.T ; ut]                  (n_h+q, n_s)
    sshh = sshh_ref[...]          # blockdiag(ss, hh)             (n_s+n_h, n_s+n_h)
    umsvms = umsvms_ref[...]      # blockdiag(u_mul_s, v_mul_s)   (n_s+n_h, 2q)

    e0 = e0_ref[...]              # f32 slab [E_s_0; E_h_0; E_ss_0; E_hh_0]
    E_s = e0[0:n_s]
    E_h = e0[n_s:n_s + n_h]
    E_ss = e0[n_s + n_h:2 * n_s + n_h]
    E_hh = e0[2 * n_s + n_h:]

    sum_Es, sum_Eh, sum_Ess, sum_Ehh = E_s, E_h, E_ss, E_hh
    G_s, G_h = E_s, E_h

    # ---- graph / SVD propagation, 4 fused MXU pushes per layer (unrolled) ----
    # TODO(synk): sparse_dropout(adj, dropout) treated as identity (dropout=0).
    for _ in range(layer):
        r_s = mm(av_s, E_h.astype(bf16))      # rows [0:n_s]=Z_s, [n_s:]=vt@E_h
        r_h = mm(av_h, E_s.astype(bf16))      # rows [0:n_h]=Z_h, [n_h:]=ut@E_s
        z2 = mm(sshh, jnp.concatenate([E_ss, E_hh], axis=0).astype(bf16))
        Z_s, inner_vt = r_s[0:n_s], r_s[n_s:n_s + q]
        Z_h, inner_ut = r_h[0:n_h], r_h[n_h:n_h + q]
        Z_ss, Z_hh = z2[0:n_s], z2[n_s:]
        g_l = mm(umsvms,
                 jnp.concatenate([inner_vt, inner_ut], axis=0).astype(bf16))
        G_s = G_s + g_l[0:n_s]
        G_h = G_h + g_l[n_s:]
        sum_Es = sum_Es + Z_s
        sum_Eh = sum_Eh + Z_h
        sum_Ess = sum_Ess + Z_ss
        sum_Ehh = sum_Ehh + Z_hh
        E_s, E_h, E_ss, E_hh = Z_s, Z_h, Z_ss, Z_hh

    E_s, E_h, E_ss, E_hh = sum_Es, sum_Eh, sum_Ess, sum_Ehh

    # ---- prediction branch: matmul -> row-norm -> BN(batch stats) -> ReLU -> matmul
    ps = ps_ref[...]                                        # (bu, n_s) f32
    e_synd = mm(ps.astype(bf16), (E_s + E_ss).astype(bf16))
    presum = jnp.sum(ps, axis=1, keepdims=True)
    x = e_synd * pl.reciprocal(presum)
    mean = jnp.mean(x, axis=0, keepdims=True)
    var = jnp.mean(jnp.square(x - mean), axis=0, keepdims=True)
    # TODO(synk): BatchNorm running statistics are not updated.
    y = (x - mean) * jax.lax.rsqrt(var + 1e-5) * gb_ref[0:1, :] + gb_ref[1:2, :]
    y = jnp.maximum(y, 0.0)                                 # ReLU
    pre_ref[...] = mm_tb(y, E_h + E_hh)                     # (bu, n_h)

    # ---- gathers: SMEM-indexed dynamic-row loads from VMEM tables ----
    tab_s[...] = jnp.concatenate([G_s, E_s], axis=1)        # (n_s, 2*dim)
    tab_h[...] = jnp.concatenate([G_h, E_h], axis=1)        # (n_h, 2*dim)
    for i in range(batch):                                  # unrolled, batch=8
        gbuf_s[i:i + 1, :] = tab_s[pl.ds(idx_ref[0, i], 1), :]
        gbuf_h[i:i + 1, :] = tab_h[pl.ds(idx_ref[1, i], 1), :]
        gbuf_p[i:i + 1, :] = tab_h[pl.ds(idx_ref[2, i], 1), :]
        gbuf_n[i:i + 1, :] = tab_h[pl.ds(idx_ref[3, i], 1), :]

    gs = gbuf_s[...]
    Gs_b, Es_b = gs[:, 0:dim], gs[:, dim:]
    gh = gbuf_h[...]
    Gh_b, Eh_b = gh[:, 0:dim], gh[:, dim:]
    Eh_pos = gbuf_p[...][:, dim:]
    Eh_neg = gbuf_n[...][:, dim:]

    # ---- contrastive (cl) loss: log(sum(exp(s)) + 1e-8), stabilized LSE ----
    def lse_mean(rows, table):
        s = mm_tb(rows, table) * inv_temp                   # (batch, n)
        m = jnp.maximum(jnp.max(s, axis=1, keepdims=True), _LOG_EPS)
        z = jnp.sum(jnp.exp(s - m), axis=1, keepdims=True) + 1e-8 * jnp.exp(-m)
        return jnp.sum(m + jnp.log(z)) * inv_batch

    neg_score = lse_mean(Gs_b, E_s) + lse_mean(Gh_b, E_h)

    def clip_mean(a, b):
        d = jnp.sum(a * b, axis=1, keepdims=True) * inv_temp
        return jnp.sum(jnp.clip(d, -5.0, 5.0)) * inv_batch

    pos_score = clip_mean(Gs_b, Es_b) + clip_mean(Gh_b, Eh_b)
    loss_s = -pos_score + neg_score

    # ---- bpr loss: mean(softplus(-(pos - neg))), overflow-safe ----
    d = jnp.sum(Es_b * (Eh_pos - Eh_neg), axis=1, keepdims=True)
    loss_r = jnp.sum(jnp.maximum(-d, 0.0)
                     + jnp.log(1.0 + jnp.exp(-jnp.abs(d)))) * inv_batch

    # ---- L2 regularization over all parameters (E_*_0 + BN affine) ----
    loss_reg = lambda_2 * (jnp.sum(jnp.square(e0))
                           + jnp.sum(jnp.square(gb_ref[...])))

    loss_s_scaled = lambda_1 * loss_s
    loss = loss_r + loss_s_scaled + loss_reg

    # single sublane-aligned store; rows = [loss, loss_r, lambda_1*loss_s, 0...]
    rid = jax.lax.broadcasted_iota(jnp.int32, loss_ref.shape, 0)
    loss_ref[...] = (jnp.where(rid == 0, loss, 0.0)
                     + jnp.where(rid == 1, loss_r, 0.0)
                     + jnp.where(rid == 2, loss_s_scaled, 0.0))


# ------------------------------ LightGCL forward ----------------------------

def lightgcl_forward(params, mats, sids, hids, pos, neg, ps,
                     *, layer, temp, lambda_1, lambda_2):
    E_s_0, E_h_0, E_ss_0, E_hh_0, bn_gamma, bn_beta = params
    adj, ss_adj, hh_adj, u_mul_s, v_mul_s, ut, vt = mats

    n_s, dim = E_s_0.shape
    n_h = E_h_0.shape[0]
    q = ut.shape[0]
    batch_user = ps.shape[0]
    batch = sids.shape[0]

    f32, bf16, i32 = jnp.float32, jnp.bfloat16, jnp.int32

    def blockdiag(a, b):
        top = jnp.concatenate([a, jnp.zeros((a.shape[0], b.shape[1]), a.dtype)], 1)
        bot = jnp.concatenate([jnp.zeros((b.shape[0], a.shape[1]), b.dtype), b], 1)
        return jnp.concatenate([top, bot], axis=0)

    # Coalesced, loop-invariant input slabs (few large DMAs instead of 18 small).
    e_slab = jnp.concatenate([E_s_0, E_h_0, E_ss_0, E_hh_0], axis=0).astype(f32)
    av_s = jnp.concatenate([adj, vt], axis=0).astype(bf16)            # (n_s+q, n_h)
    av_h = jnp.concatenate([adj.T, ut], axis=0).astype(bf16)          # (n_h+q, n_s)
    sshh = blockdiag(ss_adj.astype(f32), hh_adj.astype(f32)).astype(bf16)
    umsvms = blockdiag(u_mul_s.astype(f32), v_mul_s.astype(f32)).astype(bf16)
    gb = jnp.stack([bn_gamma, bn_beta], axis=0).astype(f32)           # (2, dim)
    idx = jnp.stack([sids, hids, pos, neg], axis=0).astype(i32)       # (4, batch)

    vmem = pl.BlockSpec(memory_space=pltpu.MemorySpace.VMEM)
    smem = pl.BlockSpec(memory_space=pltpu.MemorySpace.SMEM)

    kernel = functools.partial(
        _lightgcl_kernel, n_s=n_s, n_h=n_h, dim=dim, q=q, layer=layer,
        temp=temp, lambda_1=lambda_1, lambda_2=lambda_2, batch=batch)

    pre, losses = pl.pallas_call(
        kernel,
        out_shape=(jax.ShapeDtypeStruct((batch_user, n_h), f32),
                   jax.ShapeDtypeStruct((8, dim), f32)),
        in_specs=[smem, vmem, vmem, vmem, vmem, vmem, vmem, vmem],
        out_specs=(vmem, vmem),
        scratch_shapes=[
            pltpu.VMEM((n_s, 2 * dim), f32),       # [G_s | E_s] table
            pltpu.VMEM((n_h, 2 * dim), f32),       # [G_h | E_h] table
            pltpu.VMEM((batch, 2 * dim), f32),     # gathered sids rows
            pltpu.VMEM((batch, 2 * dim), f32),     # gathered hids rows
            pltpu.VMEM((batch, 2 * dim), f32),     # gathered pos  rows
            pltpu.VMEM((batch, 2 * dim), f32),     # gathered neg  rows
        ],
    )(idx, e_slab, av_s, av_h, sshh, umsvms, ps.astype(f32), gb)

    loss = losses[0, 0]
    loss_r = losses[1, 0]
    loss_s_scaled = losses[2, 0]
    return loss, loss_r, loss_s_scaled, pre


# ------------------------------------ main ----------------------------------

if __name__ == "__main__":
    n_s, n_h, dim, q = 128, 128, 128, 32
    layer, temp, lambda_1, lambda_2 = 2, 0.2, 0.2, 1e-7
    batch_user, batch = 8, 8

    key = jax.random.PRNGKey(0)
    ks = jax.random.split(key, 16)

    def xavier_normal(k, shape):
        fan_out, fan_in = shape
        std = (2.0 / (fan_in + fan_out)) ** 0.5
        return std * jax.random.normal(k, shape, dtype=jnp.float32)

    # Parameters (deterministic synthetic init)
    E_s_0 = xavier_normal(ks[0], (n_s, dim))
    E_h_0 = xavier_normal(ks[1], (n_h, dim))
    E_ss_0 = xavier_normal(ks[2], (n_s, dim))
    E_hh_0 = xavier_normal(ks[3], (n_h, dim))
    bn_gamma = jnp.ones((dim,), jnp.float32)
    bn_beta = jnp.zeros((dim,), jnp.float32)
    params = (E_s_0, E_h_0, E_ss_0, E_hh_0, bn_gamma, bn_beta)

    # Normalized (dense) adjacency matrices
    def row_norm(k, shape):
        a = jax.random.uniform(k, shape, dtype=jnp.float32)
        return a / (jnp.sum(a, axis=1, keepdims=True) + 1e-6)

    adj_norm = row_norm(ks[4], (n_s, n_h))
    ss_adj_norm = row_norm(ks[5], (n_s, n_s))
    hh_adj_norm = row_norm(ks[6], (n_h, n_h))

    # SVD factors (scaled small to keep scores in a sane range)
    u_mul_s = 0.02 * jax.random.normal(ks[7], (n_s, q), dtype=jnp.float32)
    v_mul_s = 0.02 * jax.random.normal(ks[8], (n_h, q), dtype=jnp.float32)
    ut = 0.02 * jax.random.normal(ks[9], (q, n_s), dtype=jnp.float32)
    vt = 0.02 * jax.random.normal(ks[10], (q, n_h), dtype=jnp.float32)
    mats = (adj_norm, ss_adj_norm, hh_adj_norm, u_mul_s, v_mul_s, ut, vt)

    # Batch inputs
    sids = jax.random.randint(ks[11], (batch,), 0, n_s)
    hids = jax.random.randint(ks[12], (batch,), 0, n_h)
    pos = jax.random.randint(ks[13], (batch,), 0, n_h)
    neg = jax.random.randint(ks[14], (batch,), 0, n_h)
    ps = jax.random.uniform(ks[15], (batch_user, n_s), dtype=jnp.float32)

    fwd = jax.jit(functools.partial(
        lightgcl_forward, layer=layer, temp=temp,
        lambda_1=lambda_1, lambda_2=lambda_2))

    out = fwd(params, mats, sids, hids, pos, neg, ps)
    jax.block_until_ready(out)

    loss, loss_r, loss_s_scaled, pre = out
    assert pre.shape == (batch_user, n_h)
    assert bool(jnp.isfinite(loss)) and bool(jnp.isfinite(loss_r))
    assert bool(jnp.isfinite(loss_s_scaled))
    print("KERNEL_OK")
</pallas_src>

<mosaic_0001>
module attributes {stable_mosaic.version = 11 : i64} {
  func.func @_lightgcl_kernel(%arg0: memref<4x8xi32, #tpu.memory_space<smem>>, %arg1: memref<512x128xf32, #tpu.memory_space<vmem>>, %arg2: memref<160x128xbf16, #tpu.memory_space<vmem>>, %arg3: memref<160x128xbf16, #tpu.memory_space<vmem>>, %arg4: memref<256x256xbf16, #tpu.memory_space<vmem>>, %arg5: memref<256x64xbf16, #tpu.memory_space<vmem>>, %arg6: memref<8x128xf32, #tpu.memory_space<vmem>>, %arg7: memref<2x128xf32, #tpu.memory_space<vmem>>, %arg8: memref<8x128xf32, #tpu.memory_space<vmem>>, %arg9: memref<8x128xf32, #tpu.memory_space<vmem>>, %arg10: memref<128x256xf32, #tpu.memory_space<vmem>>, %arg11: memref<128x256xf32, #tpu.memory_space<vmem>>, %arg12: memref<8x256xf32, #tpu.memory_space<vmem>>, %arg13: memref<8x256xf32, #tpu.memory_space<vmem>>, %arg14: memref<8x256xf32, #tpu.memory_space<vmem>>, %arg15: memref<8x256xf32, #tpu.memory_space<vmem>>) attributes {dimension_semantics = [], scalar_prefetch = 0 : i64, scratch_operands = 6 : i64, tpu.core_type = #tpu.core_type<tc>} {
    %c0 = arith.constant 0 : index
    %c0_0 = arith.constant 0 : index
    %0 = vector.load %arg2[%c0, %c0_0] : memref<160x128xbf16, #tpu.memory_space<vmem>>, vector<160x128xbf16>
    %c0_1 = arith.constant 0 : index
    %c0_2 = arith.constant 0 : index
    %1 = vector.load %arg3[%c0_1, %c0_2] : memref<160x128xbf16, #tpu.memory_space<vmem>>, vector<160x128xbf16>
    %c0_3 = arith.constant 0 : index
    %c0_4 = arith.constant 0 : index
    %2 = vector.load %arg4[%c0_3, %c0_4] : memref<256x256xbf16, #tpu.memory_space<vmem>>, vector<256x256xbf16>
    %c0_5 = arith.constant 0 : index
    %c0_6 = arith.constant 0 : index
    %3 = vector.load %arg5[%c0_5, %c0_6] : memref<256x64xbf16, #tpu.memory_space<vmem>>, vector<256x64xbf16>
    %c0_7 = arith.constant 0 : index
    %c0_8 = arith.constant 0 : index
    %4 = vector.load %arg1[%c0_7, %c0_8] : memref<512x128xf32, #tpu.memory_space<vmem>>, vector<512x128xf32>
    %5 = vector.extract_strided_slice %4 {offsets = [0, 0], sizes = [128, 128], strides = [1, 1]} : vector<512x128xf32> to vector<128x128xf32>
    %6 = vector.extract_strided_slice %4 {offsets = [128, 0], sizes = [128, 128], strides = [1, 1]} : vector<512x128xf32> to vector<128x128xf32>
    %7 = vector.extract_strided_slice %4 {offsets = [256, 0], sizes = [128, 128], strides = [1, 1]} : vector<512x128xf32> to vector<128x128xf32>
    %8 = vector.extract_strided_slice %4 {offsets = [384, 0], sizes = [128, 128], strides = [1, 1]} : vector<512x128xf32> to vector<128x128xf32>
    %9 = arith.truncf %6 : vector<128x128xf32> to vector<128x128xbf16>
    %cst = arith.constant dense<0.000000e+00> : vector<160x128xf32>
    %10 = tpu.matmul %0, %9, %cst {dimension_numbers = #tpu.dot_dimension_numbers<[1], [0], [0], [1], [0, 0, 1, 1], [], []>} : vector<160x128xbf16>, vector<128x128xbf16>, vector<160x128xf32> -> vector<160x128xf32>
    %11 = arith.truncf %5 : vector<128x128xf32> to vector<128x128xbf16>
    %cst_9 = arith.constant dense<0.000000e+00> : vector<160x128xf32>
    %12 = tpu.matmul %1, %11, %cst_9 {dimension_numbers = #tpu.dot_dimension_numbers<[1], [0], [0], [1], [0, 0, 1, 1], [], []>} : vector<160x128xbf16>, vector<128x128xbf16>, vector<160x128xf32> -> vector<160x128xf32>
    %13 = tpu.concatenate %7, %8 in 0 : vector<128x128xf32>, vector<128x128xf32> -> vector<256x128xf32>
    %14 = arith.truncf %13 : vector<256x128xf32> to vector<256x128xbf16>
    %cst_10 = arith.constant dense<0.000000e+00> : vector<256x128xf32>
    %15 = tpu.matmul %2, %14, %cst_10 {dimension_numbers = #tpu.dot_dimension_numbers<[1], [0], [0], [1], [0, 0, 1, 1], [], []>} : vector<256x256xbf16>, vector<256x128xbf16>, vector<256x128xf32> -> vector<256x128xf32>
    %16 = vector.extract_strided_slice %10 {offsets = [0, 0], sizes = [128, 128], strides = [1, 1]} : vector<160x128xf32> to vector<128x128xf32>
    %17 = vector.extract_strided_slice %10 {offsets = [128, 0], sizes = [32, 128], strides = [1, 1]} : vector<160x128xf32> to vector<32x128xf32>
    %18 = vector.extract_strided_slice %12 {offsets = [0, 0], sizes = [128, 128], strides = [1, 1]} : vector<160x128xf32> to vector<128x128xf32>
    %19 = vector.extract_strided_slice %12 {offsets = [128, 0], sizes = [32, 128], strides = [1, 1]} : vector<160x128xf32> to vector<32x128xf32>
    %20 = vector.extract_strided_slice %15 {offsets = [0, 0], sizes = [128, 128], strides = [1, 1]} : vector<256x128xf32> to vector<128x128xf32>
    %21 = vector.extract_strided_slice %15 {offsets = [128, 0], sizes = [128, 128], strides = [1, 1]} : vector<256x128xf32> to vector<128x128xf32>
    %22 = tpu.concatenate %17, %19 in 0 : vector<32x128xf32>, vector<32x128xf32> -> vector<64x128xf32>
    %23 = arith.truncf %22 : vector<64x128xf32> to vector<64x128xbf16>
    %cst_11 = arith.constant dense<0.000000e+00> : vector<256x128xf32>
    %24 = tpu.matmul %3, %23, %cst_11 {dimension_numbers = #tpu.dot_dimension_numbers<[1], [0], [0], [1], [0, 0, 1, 1], [], []>} : vector<256x64xbf16>, vector<64x128xbf16>, vector<256x128xf32> -> vector<256x128xf32>
    %25 = vector.extract_strided_slice %24 {offsets = [0, 0], sizes = [128, 128], strides = [1, 1]} : vector<256x128xf32> to vector<128x128xf32>
    %26 = arith.addf %5, %25 : vector<128x128xf32>
    %27 = vector.extract_strided_slice %24 {offsets = [128, 0], sizes = [128, 128], strides = [1, 1]} : vector<256x128xf32> to vector<128x128xf32>
    %28 = arith.addf %6, %27 : vector<128x128xf32>
    %29 = arith.addf %5, %16 : vector<128x128xf32>
    %30 = arith.addf %6, %18 : vector<128x128xf32>
    %31 = arith.addf %7, %20 : vector<128x128xf32>
    %32 = arith.addf %8, %21 : vector<128x128xf32>
    %33 = arith.truncf %18 : vector<128x128xf32> to vector<128x128xbf16>
    %cst_12 = arith.constant dense<0.000000e+00> : vector<160x128xf32>
    %34 = tpu.matmul %0, %33, %cst_12 {dimension_numbers = #tpu.dot_dimension_numbers<[1], [0], [0], [1], [0, 0, 1, 1], [], []>} : vector<160x128xbf16>, vector<128x128xbf16>, vector<160x128xf32> -> vector<160x128xf32>
    %35 = arith.truncf %16 : vector<128x128xf32> to vector<128x128xbf16>
    %cst_13 = arith.constant dense<0.000000e+00> : vector<160x128xf32>
    %36 = tpu.matmul %1, %35, %cst_13 {dimension_numbers = #tpu.dot_dimension_numbers<[1], [0], [0], [1], [0, 0, 1, 1], [], []>} : vector<160x128xbf16>, vector<128x128xbf16>, vector<160x128xf32> -> vector<160x128xf32>
    %37 = tpu.concatenate %20, %21 in 0 : vector<128x128xf32>, vector<128x128xf32> -> vector<256x128xf32>
    %38 = arith.truncf %37 : vector<256x128xf32> to vector<256x128xbf16>
    %cst_14 = arith.constant dense<0.000000e+00> : vector<256x128xf32>
    %39 = tpu.matmul %2, %38, %cst_14 {dimension_numbers = #tpu.dot_dimension_numbers<[1], [0], [0], [1], [0, 0, 1, 1], [], []>} : vector<256x256xbf16>, vector<256x128xbf16>, vector<256x128xf32> -> vector<256x128xf32>
    %40 = vector.extract_strided_slice %34 {offsets = [0, 0], sizes = [128, 128], strides = [1, 1]} : vector<160x128xf32> to vector<128x128xf32>
    %41 = vector.extract_strided_slice %34 {offsets = [128, 0], sizes = [32, 128], strides = [1, 1]} : vector<160x128xf32> to vector<32x128xf32>
    %42 = vector.extract_strided_slice %36 {offsets = [0, 0], sizes = [128, 128], strides = [1, 1]} : vector<160x128xf32> to vector<128x128xf32>
    %43 = vector.extract_strided_slice %36 {offsets = [128, 0], sizes = [32, 128], strides = [1, 1]} : vector<160x128xf32> to vector<32x128xf32>
    %44 = vector.extract_strided_slice %39 {offsets = [0, 0], sizes = [128, 128], strides = [1, 1]} : vector<256x128xf32> to vector<128x128xf32>
    %45 = vector.extract_strided_slice %39 {offsets = [128, 0], sizes = [128, 128], strides = [1, 1]} : vector<256x128xf32> to vector<128x128xf32>
    %46 = tpu.concatenate %41, %43 in 0 : vector<32x128xf32>, vector<32x128xf32> -> vector<64x128xf32>
    %47 = arith.truncf %46 : vector<64x128xf32> to vector<64x128xbf16>
    %cst_15 = arith.constant dense<0.000000e+00> : vector<256x128xf32>
    %48 = tpu.matmul %3, %47, %cst_15 {dimension_numbers = #tpu.dot_dimension_numbers<[1], [0], [0], [1], [0, 0, 1, 1], [], []>} : vector<256x64xbf16>, vector<64x128xbf16>, vector<256x128xf32> -> vector<256x128xf32>
    %49 = vector.extract_strided_slice %48 {offsets = [0, 0], sizes = [128, 128], strides = [1, 1]} : vector<256x128xf32> to vector<128x128xf32>
    %50 = arith.addf %26, %49 : vector<128x128xf32>
    %51 = vector.extract_strided_slice %48 {offsets = [128, 0], sizes = [128, 128], strides = [1, 1]} : vector<256x128xf32> to vector<128x128xf32>
    %52 = arith.addf %28, %51 : vector<128x128xf32>
    %53 = arith.addf %29, %40 : vector<128x128xf32>
    %54 = arith.addf %30, %42 : vector<128x128xf32>
    %55 = arith.addf %31, %44 : vector<128x128xf32>
    %56 = arith.addf %32, %45 : vector<128x128xf32>
    %c0_16 = arith.constant 0 : index
    %c0_17 = arith.constant 0 : index
    %57 = vector.load %arg6[%c0_16, %c0_17] : memref<8x128xf32, #tpu.memory_space<vmem>>, vector<8x128xf32>
    %58 = arith.truncf %57 : vector<8x128xf32> to vector<8x128xbf16>
    %59 = arith.addf %53, %55 : vector<128x128xf32>
    %60 = arith.truncf %59 : vector<128x128xf32> to vector<128x128xbf16>
    %cst_18 = arith.constant dense<0.000000e+00> : vector<8x128xf32>
    %61 = tpu.matmul %58, %60, %cst_18 {dimension_numbers = #tpu.dot_dimension_numbers<[1], [0], [0], [1], [0, 0, 1, 1], [], []>} : vector<8x128xbf16>, vector<128x128xbf16>, vector<8x128xf32> -> vector<8x128xf32>
    %cst_19 = arith.constant dense<0.000000e+00> : vector<8xf32>
    %62 = vector.multi_reduction <add>, %57, %cst_19 [1] : vector<8x128xf32> to vector<8xf32>
    %63 = vector.shape_cast %62 : vector<8xf32> to vector<8x1xf32>
    %64 = tpu.reciprocal %63 : vector<8x1xf32> -> vector<8x1xf32>
    %65 = vector.broadcast %64 : vector<8x1xf32> to vector<8x128xf32>
    %66 = arith.mulf %61, %65 : vector<8x128xf32>
    %cst_20 = arith.constant dense<0.000000e+00> : vector<128xf32>
    %67 = vector.multi_reduction <add>, %66, %cst_20 [0] : vector<8x128xf32> to vector<128xf32>
    %68 = vector.shape_cast %67 : vector<128xf32> to vector<1x128xf32>
    %cst_21 = arith.constant 8.000000e+00 : f32
    %69 = vector.broadcast %cst_21 : f32 to vector<1x128xf32>
    %70 = arith.divf %68, %69 : vector<1x128xf32>
    %71 = vector.broadcast %70 : vector<1x128xf32> to vector<8x128xf32>
    %72 = arith.subf %66, %71 : vector<8x128xf32>
    %73 = arith.mulf %72, %72 : vector<8x128xf32>
    %cst_22 = arith.constant dense<0.000000e+00> : vector<128xf32>
    %74 = vector.multi_reduction <add>, %73, %cst_22 [0] : vector<8x128xf32> to vector<128xf32>
    %75 = vector.shape_cast %74 : vector<128xf32> to vector<1x128xf32>
    %cst_23 = arith.constant 8.000000e+00 : f32
    %76 = vector.broadcast %cst_23 : f32 to vector<1x128xf32>
    %77 = arith.divf %75, %76 : vector<1x128xf32>
    %78 = vector.broadcast %70 : vector<1x128xf32> to vector<8x128xf32>
    %79 = arith.subf %66, %78 : vector<8x128xf32>
    %cst_24 = arith.constant 9.99999974E-6 : f32
    %80 = vector.broadcast %cst_24 : f32 to vector<1x128xf32>
    %81 = arith.addf %77, %80 : vector<1x128xf32>
    %82 = math.rsqrt %81 : vector<1x128xf32>
    %83 = vector.broadcast %82 : vector<1x128xf32> to vector<8x128xf32>
    %84 = arith.mulf %79, %83 : vector<8x128xf32>
    %c0_25 = arith.constant 0 : index
    %c0_26 = arith.constant 0 : index
    %85 = vector.load %arg7[%c0_25, %c0_26] : memref<2x128xf32, #tpu.memory_space<vmem>>, vector<1x128xf32>
    %86 = vector.broadcast %85 : vector<1x128xf32> to vector<8x128xf32>
    %87 = arith.mulf %84, %86 : vector<8x128xf32>
    %c1 = arith.constant 1 : index
    %c0_27 = arith.constant 0 : index
    %88 = vector.load %arg7[%c1, %c0_27] : memref<2x128xf32, #tpu.memory_space<vmem>>, vector<1x128xf32>
    %89 = vector.broadcast %88 : vector<1x128xf32> to vector<8x128xf32>
    %90 = arith.addf %87, %89 : vector<8x128xf32>
    %cst_28 = arith.constant 0.000000e+00 : f32
    %91 = vector.broadcast %cst_28 : f32 to vector<8x128xf32>
    %92 = arith.maximumf %90, %91 : vector<8x128xf32>
    %93 = arith.addf %54, %56 : vector<128x128xf32>
    %94 = arith.truncf %92 : vector<8x128xf32> to vector<8x128xbf16>
    %95 = arith.truncf %93 : vector<128x128xf32> to vector<128x128xbf16>
    %cst_29 = arith.constant dense<0.000000e+00> : vector<8x128xf32>
    %96 = tpu.matmul %94, %95, %cst_29 {dimension_numbers = #tpu.dot_dimension_numbers<[1], [1], [0], [0], [0, 0, 1, 0], [], []>} : vector<8x128xbf16>, vector<128x128xbf16>, vector<8x128xf32> -> vector<8x128xf32>
    %c0_30 = arith.constant 0 : index
    %c0_31 = arith.constant 0 : index
    %97 = vector.load %arg8[%c0_30, %c0_31] : memref<8x128xf32, #tpu.memory_space<vmem>>, vector<8x128xf32>
    tpu.vector_store %arg8[%c0_30, %c0_31], %96 {strides = array<i32>} : memref<8x128xf32, #tpu.memory_space<vmem>>, vector<8x128xf32>,
    %98 = tpu.concatenate %50, %53 in 1 : vector<128x128xf32>, vector<128x128xf32> -> vector<128x256xf32>
    %c0_32 = arith.constant 0 : index
    %c0_33 = arith.constant 0 : index
    %99 = vector.load %arg10[%c0_32, %c0_33] : memref<128x256xf32, #tpu.memory_space<vmem>>, vector<128x256xf32>
    tpu.vector_store %arg10[%c0_32, %c0_33], %98 {strides = array<i32>} : memref<128x256xf32, #tpu.memory_space<vmem>>, vector<128x256xf32>,
    %100 = tpu.concatenate %52, %54 in 1 : vector<128x128xf32>, vector<128x128xf32> -> vector<128x256xf32>
    %c0_34 = arith.constant 0 : index
    %c0_35 = arith.constant 0 : index
    %101 = vector.load %arg11[%c0_34, %c0_35] : memref<128x256xf32, #tpu.memory_space<vmem>>, vector<128x256xf32>
    tpu.vector_store %arg11[%c0_34, %c0_35], %100 {strides = array<i32>} : memref<128x256xf32, #tpu.memory_space<vmem>>, vector<128x256xf32>,
    %c0_36 = arith.constant 0 : index
    %c0_37 = arith.constant 0 : index
    %102 = memref.load %arg0[%c0_36, %c0_37] : memref<4x8xi32, #tpu.memory_space<smem>>
    %103 = arith.index_cast %102 : i32 to index
    %c0_38 = arith.constant 0 : index
    %104 = vector.load %arg10[%103, %c0_38] : memref<128x256xf32, #tpu.memory_space<vmem>>, vector<1x256xf32>
    %c0_39 = arith.constant 0 : index
    %c0_40 = arith.constant 0 : index
    %105 = vector.load %arg12[%c0_39, %c0_40] : memref<8x256xf32, #tpu.memory_space<vmem>>, vector<1x256xf32>
    tpu.vector_store %arg12[%c0_39, %c0_40], %104 {strides = array<i32>} : memref<8x256xf32, #tpu.memory_space<vmem>>, vector<1x256xf32>,
    %c1_41 = arith.constant 1 : index
    %c0_42 = arith.constant 0 : index
    %106 = memref.load %arg0[%c1_41, %c0_42] : memref<4x8xi32, #tpu.memory_space<smem>>
    %107 = arith.index_cast %106 : i32 to index
    %c0_43 = arith.constant 0 : index
    %108 = vector.load %arg11[%107, %c0_43] : memref<128x256xf32, #tpu.memory_space<vmem>>, vector<1x256xf32>
    %c0_44 = arith.constant 0 : index
    %c0_45 = arith.constant 0 : index
    %109 = vector.load %arg13[%c0_44, %c0_45] : memref<8x256xf32, #tpu.memory_space<vmem>>, vector<1x256xf32>
    tpu.vector_store %arg13[%c0_44, %c0_45], %108 {strides = array<i32>} : memref<8x256xf32, #tpu.memory_space<vmem>>, vector<1x256xf32>,
    %c2 = arith.constant 2 : index
    %c0_46 = arith.constant 0 : index
    %110 = memref.load %arg0[%c2, %c0_46] : memref<4x8xi32, #tpu.memory_space<smem>>
    %111 = arith.index_cast %110 : i32 to index
    %c0_47 = arith.constant 0 : index
    %112 = vector.load %arg11[%111, %c0_47] : memref<128x256xf32, #tpu.memory_space<vmem>>, vector<1x256xf32>
    %c0_48 = arith.constant 0 : index
    %c0_49 = arith.constant 0 : index
    %113 = vector.load %arg14[%c0_48, %c0_49] : memref<8x256xf32, #tpu.memory_space<vmem>>, vector<1x256xf32>
    tpu.vector_store %arg14[%c0_48, %c0_49], %112 {strides = array<i32>} : memref<8x256xf32, #tpu.memory_space<vmem>>, vector<1x256xf32>,
    %c3 = arith.constant 3 : index
    %c0_50 = arith.constant 0 : index
    %114 = memref.load %arg0[%c3, %c0_50] : memref<4x8xi32, #tpu.memory_space<smem>>
    %115 = arith.index_cast %114 : i32 to index
    %c0_51 = arith.constant 0 : index
    %116 = vector.load %arg11[%115, %c0_51] : memref<128x256xf32, #tpu.memory_space<vmem>>, vector<1x256xf32>
    %c0_52 = arith.constant 0 : index
    %c0_53 = arith.constant 0 : index
    %117 = vector.load %arg15[%c0_52, %c0_53] : memref<8x256xf32, #tpu.memory_space<vmem>>, vector<1x256xf32>
    tpu.vector_store %arg15[%c0_52, %c0_53], %116 {strides = array<i32>} : memref<8x256xf32, #tpu.memory_space<vmem>>, vector<1x256xf32>,
    %c0_54 = arith.constant 0 : index
    %c1_55 = arith.constant 1 : index
    %118 = memref.load %arg0[%c0_54, %c1_55] : memref<4x8xi32, #tpu.memory_space<smem>>
    %119 = arith.index_cast %118 : i32 to index
    %c0_56 = arith.constant 0 : index
    %120 = vector.load %arg10[%119, %c0_56] : memref<128x256xf32, #tpu.memory_space<vmem>>, vector<1x256xf32>
    %c1_57 = arith.constant 1 : index
    %c0_58 = arith.constant 0 : index
    %121 = vector.load %arg12[%c1_57, %c0_58] : memref<8x256xf32, #tpu.memory_space<vmem>>, vector<1x256xf32>
    tpu.vector_store %arg12[%c1_57, %c0_58], %120 {strides = array<i32>} : memref<8x256xf32, #tpu.memory_space<vmem>>, vector<1x256xf32>,
    %c1_59 = arith.constant 1 : index
    %c1_60 = arith.constant 1 : index
    %122 = memref.load %arg0[%c1_59, %c1_60] : memref<4x8xi32, #tpu.memory_space<smem>>
    %123 = arith.index_cast %122 : i32 to index
    %c0_61 = arith.constant 0 : index
    %124 = vector.load %arg11[%123, %c0_61] : memref<128x256xf32, #tpu.memory_space<vmem>>, vector<1x256xf32>
    %c1_62 = arith.constant 1 : index
    %c0_63 = arith.constant 0 : index
    %125 = vector.load %arg13[%c1_62, %c0_63] : memref<8x256xf32, #tpu.memory_space<vmem>>, vector<1x256xf32>
    tpu.vector_store %arg13[%c1_62, %c0_63], %124 {strides = array<i32>} : memref<8x256xf32, #tpu.memory_space<vmem>>, vector<1x256xf32>,
    %c2_64 = arith.constant 2 : index
    %c1_65 = arith.constant 1 : index
    %126 = memref.load %arg0[%c2_64, %c1_65] : memref<4x8xi32, #tpu.memory_space<smem>>
    %127 = arith.index_cast %126 : i32 to index
    %c0_66 = arith.constant 0 : index
    %128 = vector.load %arg11[%127, %c0_66] : memref<128x256xf32, #tpu.memory_space<vmem>>, vector<1x256xf32>
    %c1_67 = arith.constant 1 : index
    %c0_68 = arith.constant 0 : index
    %129 = vector.load %arg14[%c1_67, %c0_68] : memref<8x256xf32, #tpu.memory_space<vmem>>, vector<1x256xf32>
    tpu.vector_store %arg14[%c1_67, %c0_68], %128 {strides = array<i32>} : memref<8x256xf32, #tpu.memory_space<vmem>>, vector<1x256xf32>,
    %c3_69 = arith.constant 3 : index
    %c1_70 = arith.constant 1 : index
    %130 = memref.load %arg0[%c3_69, %c1_70] : memref<4x8xi32, #tpu.memory_space<smem>>
    %131 = arith.index_cast %130 : i32 to index
    %c0_71 = arith.constant 0 : index
    %132 = vector.load %arg11[%131, %c0_71] : memref<128x256xf32, #tpu.memory_space<vmem>>, vector<1x256xf32>
    %c1_72 = arith.constant 1 : index
    %c0_73 = arith.constant 0 : index
    %133 = vector.load %arg15[%c1_72, %c0_73] : memref<8x256xf32, #tpu.memory_space<vmem>>, vector<1x256xf32>
    tpu.vector_store %arg15[%c1_72, %c0_73], %132 {strides = array<i32>} : memref<8x256xf32, #tpu.memory_space<vmem>>, vector<1x256xf32>,
    %c0_74 = arith.constant 0 : index
    %c2_75 = arith.constant 2 : index
    %134 = memref.load %arg0[%c0_74, %c2_75] : memref<4x8xi32, #tpu.memory_space<smem>>
    %135 = arith.index_cast %134 : i32 to index
    %c0_76 = arith.constant 0 : index
    %136 = vector.load %arg10[%135, %c0_76] : memref<128x256xf32, #tpu.memory_space<vmem>>, vector<1x256xf32>
    %c2_77 = arith.constant 2 : index
    %c0_78 = arith.constant 0 : index
    %137 = vector.load %arg12[%c2_77, %c0_78] : memref<8x256xf32, #tpu.memory_space<vmem>>, vector<1x256xf32>
    tpu.vector_store %arg12[%c2_77, %c0_78], %136 {strides = array<i32>} : memref<8x256xf32, #tpu.memory_space<vmem>>, vector<1x256xf32>,
    %c1_79 = arith.constant 1 : index
    %c2_80 = arith.constant 2 : index
    %138 = memref.load %arg0[%c1_79, %c2_80] : memref<4x8xi32, #tpu.memory_space<smem>>
    %139 = arith.index_cast %138 : i32 to index
    %c0_81 = arith.constant 0 : index
    %140 = vector.load %arg11[%139, %c0_81] : memref<128x256xf32, #tpu.memory_space<vmem>>, vector<1x256xf32>
    %c2_82 = arith.constant 2 : index
    %c0_83 = arith.constant 0 : index
    %141 = vector.load %arg13[%c2_82, %c0_83] : memref<8x256xf32, #tpu.memory_space<vmem>>, vector<1x256xf32>
    tpu.vector_store %arg13[%c2_82, %c0_83], %140 {strides = array<i32>} : memref<8x256xf32, #tpu.memory_space<vmem>>, vector<1x256xf32>,
    %c2_84 = arith.constant 2 : index
    %c2_85 = arith.constant 2 : index
    %142 = memref.load %arg0[%c2_84, %c2_85] : memref<4x8xi32, #tpu.memory_space<smem>>
    %143 = arith.index_cast %142 : i32 to index
    %c0_86 = arith.constant 0 : index
    %144 = vector.load %arg11[%143, %c0_86] : memref<128x256xf32, #tpu.memory_space<vmem>>, vector<1x256xf32>
    %c2_87 = arith.constant 2 : index
    %c0_88 = arith.constant 0 : index
    %145 = vector.load %arg14[%c2_87, %c0_88] : memref<8x256xf32, #tpu.memory_space<vmem>>, vector<1x256xf32>
    tpu.vector_store %arg14[%c2_87, %c0_88], %144 {strides = array<i32>} : memref<8x256xf32, #tpu.memory_space<vmem>>, vector<1x256xf32>,
    %c3_89 = arith.constant 3 : index
    %c2_90 = arith.constant 2 : index
    %146 = memref.load %arg0[%c3_89, %c2_90] : memref<4x8xi32, #tpu.memory_space<smem>>
    %147 = arith.index_cast %146 : i32 to index
    %c0_91 = arith.constant 0 : index
    %148 = vector.load %arg11[%147, %c0_91] : memref<128x256xf32, #tpu.memory_space<vmem>>, vector<1x256xf32>
    %c2_92 = arith.constant 2 : index
    %c0_93 = arith.constant 0 : index
    %149 = vector.load %arg15[%c2_92, %c0_93] : memref<8x256xf32, #tpu.memory_space<vmem>>, vector<1x256xf32>
    tpu.vector_store %arg15[%c2_92, %c0_93], %148 {strides = array<i32>} : memref<8x256xf32, #tpu.memory_space<vmem>>, vector<1x256xf32>,
    %c0_94 = arith.constant 0 : index
    %c3_95 = arith.constant 3 : index
    %150 = memref.load %arg0[%c0_94, %c3_95] : memref<4x8xi32, #tpu.memory_space<smem>>
    %151 = arith.index_cast %150 : i32 to index
    %c0_96 = arith.constant 0 : index
    %152 = vector.load %arg10[%151, %c0_96] : memref<128x256xf32, #tpu.memory_space<vmem>>, vector<1x256xf32>
    %c3_97 = arith.constant 3 : index
    %c0_98 = arith.constant 0 : index
    %153 = vector.load %arg12[%c3_97, %c0_98] : memref<8x256xf32, #tpu.memory_space<vmem>>, vector<1x256xf32>
    tpu.vector_store %arg12[%c3_97, %c0_98], %152 {strides = array<i32>} : memref<8x256xf32, #tpu.memory_space<vmem>>, vector<1x256xf32>,
    %c1_99 = arith.constant 1 : index
    %c3_100 = arith.constant 3 : index
    %154 = memref.load %arg0[%c1_99, %c3_100] : memref<4x8xi32, #tpu.memory_space<smem>>
    %155 = arith.index_cast %154 : i32 to index
    %c0_101 = arith.constant 0 : index
    %156 = vector.load %arg11[%155, %c0_101] : memref<128x256xf32, #tpu.memory_space<vmem>>, vector<1x256xf32>
    %c3_102 = arith.constant 3 : index
    %c0_103 = arith.constant 0 : index
    %157 = vector.load %arg13[%c3_102, %c0_103] : memref<8x256xf32, #tpu.memory_space<vmem>>, vector<1x256xf32>
    tpu.vector_store %arg13[%c3_102, %c0_103], %156 {strides = array<i32>} : memref<8x256xf32, #tpu.memory_space<vmem>>, vector<1x256xf32>,
    %c2_104 = arith.constant 2 : index
    %c3_105 = arith.constant 3 : index
    %158 = memref.load %arg0[%c2_104, %c3_105] : memref<4x8xi32, #tpu.memory_space<smem>>
    %159 = arith.index_cast %158 : i32 to index
    %c0_106 = arith.constant 0 : index
    %160 = vector.load %arg11[%159, %c0_106] : memref<128x256xf32, #tpu.memory_space<vmem>>, vector<1x256xf32>
    %c3_107 = arith.constant 3 : index
    %c0_108 = arith.constant 0 : index
    %161 = vector.load %arg14[%c3_107, %c0_108] : memref<8x256xf32, #tpu.memory_space<vmem>>, vector<1x256xf32>
    tpu.vector_store %arg14[%c3_107, %c0_108], %160 {strides = array<i32>} : memref<8x256xf32, #tpu.memory_space<vmem>>, vector<1x256xf32>,
    %c3_109 = arith.constant 3 : index
    %c3_110 = arith.constant 3 : index
    %162 = memref.load %arg0[%c3_109, %c3_110] : memref<4x8xi32, #tpu.memory_space<smem>>
    %163 = arith.index_cast %162 : i32 to index
    %c0_111 = arith.constant 0 : index
    %164 = vector.load %arg11[%163, %c0_111] : memref<128x256xf32, #tpu.memory_space<vmem>>, vector<1x256xf32>
    %c3_112 = arith.constant 3 : index
    %c0_113 = arith.constant 0 : index
    %165 = vector.load %arg15[%c3_112, %c0_113] : memref<8x256xf32, #tpu.memory_space<vmem>>, vector<1x256xf32>
    tpu.vector_store %arg15[%c3_112, %c0_113], %164 {strides = array<i32>} : memref<8x256xf32, #tpu.memory_space<vmem>>, vector<1x256xf32>,
    %c0_114 = arith.constant 0 : index
    %c4 = arith.constant 4 : index
    %166 = memref.load %arg0[%c0_114, %c4] : memref<4x8xi32, #tpu.memory_space<smem>>
    %167 = arith.index_cast %166 : i32 to index
    %c0_115 = arith.constant 0 : index
    %168 = vector.load %arg10[%167, %c0_115] : memref<128x256xf32, #tpu.memory_space<vmem>>, vector<1x256xf32>
    %c4_116 = arith.constant 4 : index
    %c0_117 = arith.constant 0 : index
    %169 = vector.load %arg12[%c4_116, %c0_117] : memref<8x256xf32, #tpu.memory_space<vmem>>, vector<1x256xf32>
    tpu.vector_store %arg12[%c4_116, %c0_117], %168 {strides = array<i32>} : memref<8x256xf32, #tpu.memory_space<vmem>>, vector<1x256xf32>,
    %c1_118 = arith.constant 1 : index
    %c4_119 = arith.constant 4 : index
    %170 = memref.load %arg0[%c1_118, %c4_119] : memref<4x8xi32, #tpu.memory_space<smem>>
    %171 = arith.index_cast %170 : i32 to index
    %c0_120 = arith.constant 0 : index
    %172 = vector.load %arg11[%171, %c0_120] : memref<128x256xf32, #tpu.memory_space<vmem>>, vector<1x256xf32>
    %c4_121 = arith.constant 4 : index
    %c0_122 = arith.constant 0 : index
    %173 = vector.load %arg13[%c4_121, %c0_122] : memref<8x256xf32, #tpu.memory_space<vmem>>, vector<1x256xf32>
    tpu.vector_store %arg13[%c4_121, %c0_122], %172 {strides = array<i32>} : memref<8x256xf32, #tpu.memory_space<vmem>>, vector<1x256xf32>,
    %c2_123 = arith.constant 2 : index
    %c4_124 = arith.constant 4 : index
    %174 = memref.load %arg0[%c2_123, %c4_124] : memref<4x8xi32, #tpu.memory_space<smem>>
    %175 = arith.index_cast %174 : i32 to index
    %c0_125 = arith.constant 0 : index
    %176 = vector.load %arg11[%175, %c0_125] : memref<128x256xf32, #tpu.memory_space<vmem>>, vector<1x256xf32>
    %c4_126 = arith.constant 4 : index
    %c0_127 = arith.constant 0 : index
    %177 = vector.load %arg14[%c4_126, %c0_127] : memref<8x256xf32, #tpu.memory_space<vmem>>, vector<1x256xf32>
    tpu.vector_store %arg14[%c4_126, %c0_127], %176 {strides = array<i32>} : memref<8x256xf32, #tpu.memory_space<vmem>>, vector<1x256xf32>,
    %c3_128 = arith.constant 3 : index
    %c4_129 = arith.constant 4 : index
    %178 = memref.load %arg0[%c3_128, %c4_129] : memref<4x8xi32, #tpu.memory_space<smem>>
    %179 = arith.index_cast %178 : i32 to index
    %c0_130 = arith.constant 0 : index
    %180 = vector.load %arg11[%179, %c0_130] : memref<128x256xf32, #tpu.memory_space<vmem>>, vector<1x256xf32>
    %c4_131 = arith.constant 4 : index
    %c0_132 = arith.constant 0 : index
    %181 = vector.load %arg15[%c4_131, %c0_132] : memref<8x256xf32, #tpu.memory_space<vmem>>, vector<1x256xf32>
    tpu.vector_store %arg15[%c4_131, %c0_132], %180 {strides = array<i32>} : memref<8x256xf32, #tpu.memory_space<vmem>>, vector<1x256xf32>,
    %c0_133 = arith.constant 0 : index
    %c5 = arith.constant 5 : index
    %182 = memref.load %arg0[%c0_133, %c5] : memref<4x8xi32, #tpu.memory_space<smem>>
    %183 = arith.index_cast %182 : i32 to index
    %c0_134 = arith.constant 0 : index
    %184 = vector.load %arg10[%183, %c0_134] : memref<128x256xf32, #tpu.memory_space<vmem>>, vector<1x256xf32>
    %c5_135 = arith.constant 5 : index
    %c0_136 = arith.constant 0 : index
    %185 = vector.load %arg12[%c5_135, %c0_136] : memref<8x256xf32, #tpu.memory_space<vmem>>, vector<1x256xf32>
    tpu.vector_store %arg12[%c5_135, %c0_136], %184 {strides = array<i32>} : memref<8x256xf32, #tpu.memory_space<vmem>>, vector<1x256xf32>,
    %c1_137 = arith.constant 1 : index
    %c5_138 = arith.constant 5 : index
    %186 = memref.load %arg0[%c1_137, %c5_138] : memref<4x8xi32, #tpu.memory_space<smem>>
    %187 = arith.index_cast %186 : i32 to index
    %c0_139 = arith.constant 0 : index
    %188 = vector.load %arg11[%187, %c0_139] : memref<128x256xf32, #tpu.memory_space<vmem>>, vector<1x256xf32>
    %c5_140 = arith.constant 5 : index
    %c0_141 = arith.constant 0 : index
    %189 = vector.load %arg13[%c5_140, %c0_141] : memref<8x256xf32, #tpu.memory_space<vmem>>, vector<1x256xf32>
    tpu.vector_store %arg13[%c5_140, %c0_141], %188 {strides = array<i32>} : memref<8x256xf32, #tpu.memory_space<vmem>>, vector<1x256xf32>,
    %c2_142 = arith.constant 2 : index
    %c5_143 = arith.constant 5 : index
    %190 = memref.load %arg0[%c2_142, %c5_143] : memref<4x8xi32, #tpu.memory_space<smem>>
    %191 = arith.index_cast %190 : i32 to index
    %c0_144 = arith.constant 0 : index
    %192 = vector.load %arg11[%191, %c0_144] : memref<128x256xf32, #tpu.memory_space<vmem>>, vector<1x256xf32>
    %c5_145 = arith.constant 5 : index
    %c0_146 = arith.constant 0 : index
    %193 = vector.load %arg14[%c5_145, %c0_146] : memref<8x256xf32, #tpu.memory_space<vmem>>, vector<1x256xf32>
    tpu.vector_store %arg14[%c5_145, %c0_146], %192 {strides = array<i32>} : memref<8x256xf32, #tpu.memory_space<vmem>>, vector<1x256xf32>,
    %c3_147 = arith.constant 3 : index
    %c5_148 = arith.constant 5 : index
    %194 = memref.load %arg0[%c3_147, %c5_148] : memref<4x8xi32, #tpu.memory_space<smem>>
    %195 = arith.index_cast %194 : i32 to index
    %c0_149 = arith.constant 0 : index
    %196 = vector.load %arg11[%195, %c0_149] : memref<128x256xf32, #tpu.memory_space<vmem>>, vector<1x256xf32>
    %c5_150 = arith.constant 5 : index
    %c0_151 = arith.constant 0 : index
    %197 = vector.load %arg15[%c5_150, %c0_151] : memref<8x256xf32, #tpu.memory_space<vmem>>, vector<1x256xf32>
    tpu.vector_store %arg15[%c5_150, %c0_151], %196 {strides = array<i32>} : memref<8x256xf32, #tpu.memory_space<vmem>>, vector<1x256xf32>,
    %c0_152 = arith.constant 0 : index
    %c6 = arith.constant 6 : index
    %198 = memref.load %arg0[%c0_152, %c6] : memref<4x8xi32, #tpu.memory_space<smem>>
    %199 = arith.index_cast %198 : i32 to index
    %c0_153 = arith.constant 0 : index
    %200 = vector.load %arg10[%199, %c0_153] : memref<128x256xf32, #tpu.memory_space<vmem>>, vector<1x256xf32>
    %c6_154 = arith.constant 6 : index
    %c0_155 = arith.constant 0 : index
    %201 = vector.load %arg12[%c6_154, %c0_155] : memref<8x256xf32, #tpu.memory_space<vmem>>, vector<1x256xf32>
    tpu.vector_store %arg12[%c6_154, %c0_155], %200 {strides = array<i32>} : memref<8x256xf32, #tpu.memory_space<vmem>>, vector<1x256xf32>,
    %c1_156 = arith.constant 1 : index
    %c6_157 = arith.constant 6 : index
    %202 = memref.load %arg0[%c1_156, %c6_157] : memref<4x8xi32, #tpu.memory_space<smem>>
    %203 = arith.index_cast %202 : i32 to index
    %c0_158 = arith.constant 0 : index
    %204 = vector.load %arg11[%203, %c0_158] : memref<128x256xf32, #tpu.memory_space<vmem>>, vector<1x256xf32>
    %c6_159 = arith.constant 6 : index
    %c0_160 = arith.constant 0 : index
    %205 = vector.load %arg13[%c6_159, %c0_160] : memref<8x256xf32, #tpu.memory_space<vmem>>, vector<1x256xf32>
    tpu.vector_store %arg13[%c6_159, %c0_160], %204 {strides = array<i32>} : memref<8x256xf32, #tpu.memory_space<vmem>>, vector<1x256xf32>,
    %c2_161 = arith.constant 2 : index
    %c6_162 = arith.constant 6 : index
    %206 = memref.load %arg0[%c2_161, %c6_162] : memref<4x8xi32, #tpu.memory_space<smem>>
    %207 = arith.index_cast %206 : i32 to index
    %c0_163 = arith.constant 0 : index
    %208 = vector.load %arg11[%207, %c0_163] : memref<128x256xf32, #tpu.memory_space<vmem>>, vector<1x256xf32>
    %c6_164 = arith.constant 6 : index
    %c0_165 = arith.constant 0 : index
    %209 = vector.load %arg14[%c6_164, %c0_165] : memref<8x256xf32, #tpu.memory_space<vmem>>, vector<1x256xf32>
    tpu.vector_store %arg14[%c6_164, %c0_165], %208 {strides = array<i32>} : memref<8x256xf32, #tpu.memory_space<vmem>>, vector<1x256xf32>,
    %c3_166 = arith.constant 3 : index
    %c6_167 = arith.constant 6 : index
    %210 = memref.load %arg0[%c3_166, %c6_167] : memref<4x8xi32, #tpu.memory_space<smem>>
    %211 = arith.index_cast %210 : i32 to index
    %c0_168 = arith.constant 0 : index
    %212 = vector.load %arg11[%211, %c0_168] : memref<128x256xf32, #tpu.memory_space<vmem>>, vector<1x256xf32>
    %c6_169 = arith.constant 6 : index
    %c0_170 = arith.constant 0 : index
    %213 = vector.load %arg15[%c6_169, %c0_170] : memref<8x256xf32, #tpu.memory_space<vmem>>, vector<1x256xf32>
    tpu.vector_store %arg15[%c6_169, %c0_170], %212 {strides = array<i32>} : memref<8x256xf32, #tpu.memory_space<vmem>>, vector<1x256xf32>,
    %c0_171 = arith.constant 0 : index
    %c7 = arith.constant 7 : index
    %214 = memref.load %arg0[%c0_171, %c7] : memref<4x8xi32, #tpu.memory_space<smem>>
    %215 = arith.index_cast %214 : i32 to index
    %c0_172 = arith.constant 0 : index
    %216 = vector.load %arg10[%215, %c0_172] : memref<128x256xf32, #tpu.memory_space<vmem>>, vector<1x256xf32>
    %c7_173 = arith.constant 7 : index
    %c0_174 = arith.constant 0 : index
    %217 = vector.load %arg12[%c7_173, %c0_174] : memref<8x256xf32, #tpu.memory_space<vmem>>, vector<1x256xf32>
    tpu.vector_store %arg12[%c7_173, %c0_174], %216 {strides = array<i32>} : memref<8x256xf32, #tpu.memory_space<vmem>>, vector<1x256xf32>,
    %c1_175 = arith.constant 1 : index
    %c7_176 = arith.constant 7 : index
    %218 = memref.load %arg0[%c1_175, %c7_176] : memref<4x8xi32, #tpu.memory_space<smem>>
    %219 = arith.index_cast %218 : i32 to index
    %c0_177 = arith.constant 0 : index
    %220 = vector.load %arg11[%219, %c0_177] : memref<128x256xf32, #tpu.memory_space<vmem>>, vector<1x256xf32>
    %c7_178 = arith.constant 7 : index
    %c0_179 = arith.constant 0 : index
    %221 = vector.load %arg13[%c7_178, %c0_179] : memref<8x256xf32, #tpu.memory_space<vmem>>, vector<1x256xf32>
    tpu.vector_store %arg13[%c7_178, %c0_179], %220 {strides = array<i32>} : memref<8x256xf32, #tpu.memory_space<vmem>>, vector<1x256xf32>,
    %c2_180 = arith.constant 2 : index
    %c7_181 = arith.constant 7 : index
    %222 = memref.load %arg0[%c2_180, %c7_181] : memref<4x8xi32, #tpu.memory_space<smem>>
    %223 = arith.index_cast %222 : i32 to index
    %c0_182 = arith.constant 0 : index
    %224 = vector.load %arg11[%223, %c0_182] : memref<128x256xf32, #tpu.memory_space<vmem>>, vector<1x256xf32>
    %c7_183 = arith.constant 7 : index
    %c0_184 = arith.constant 0 : index
    %225 = vector.load %arg14[%c7_183, %c0_184] : memref<8x256xf32, #tpu.memory_space<vmem>>, vector<1x256xf32>
    tpu.vector_store %arg14[%c7_183, %c0_184], %224 {strides = array<i32>} : memref<8x256xf32, #tpu.memory_space<vmem>>, vector<1x256xf32>,
    %c3_185 = arith.constant 3 : index
    %c7_186 = arith.constant 7 : index
    %226 = memref.load %arg0[%c3_185, %c7_186] : memref<4x8xi32, #tpu.memory_space<smem>>
    %227 = arith.index_cast %226 : i32 to index
    %c0_187 = arith.constant 0 : index
    %228 = vector.load %arg11[%227, %c0_187] : memref<128x256xf32, #tpu.memory_space<vmem>>, vector<1x256xf32>
    %c7_188 = arith.constant 7 : index
    %c0_189 = arith.constant 0 : index
    %229 = vector.load %arg15[%c7_188, %c0_189] : memref<8x256xf32, #tpu.memory_space<vmem>>, vector<1x256xf32>
    tpu.vector_store %arg15[%c7_188, %c0_189], %228 {strides = array<i32>} : memref<8x256xf32, #tpu.memory_space<vmem>>, vector<1x256xf32>,
    %c0_190 = arith.constant 0 : index
    %c0_191 = arith.constant 0 : index
    %230 = vector.load %arg12[%c0_190, %c0_191] : memref<8x256xf32, #tpu.memory_space<vmem>>, vector<8x256xf32>
    %231 = vector.extract_strided_slice %230 {offsets = [0, 0], sizes = [8, 128], strides = [1, 1]} : vector<8x256xf32> to vector<8x128xf32>
    %232 = vector.extract_strided_slice %230 {offsets = [0, 128], sizes = [8, 128], strides = [1, 1]} : vector<8x256xf32> to vector<8x128xf32>
    %c0_192 = arith.constant 0 : index
    %c0_193 = arith.constant 0 : index
    %233 = vector.load %arg13[%c0_192, %c0_193] : memref<8x256xf32, #tpu.memory_space<vmem>>, vector<8x256xf32>
    %234 = vector.extract_strided_slice %233 {offsets = [0, 0], sizes = [8, 128], strides = [1, 1]} : vector<8x256xf32> to vector<8x128xf32>
    %235 = vector.extract_strided_slice %233 {offsets = [0, 128], sizes = [8, 128], strides = [1, 1]} : vector<8x256xf32> to vector<8x128xf32>
    %c0_194 = arith.constant 0 : index
    %c0_195 = arith.constant 0 : index
    %236 = vector.load %arg14[%c0_194, %c0_195] : memref<8x256xf32, #tpu.memory_space<vmem>>, vector<8x256xf32>
    %237 = vector.extract_strided_slice %236 {offsets = [0, 128], sizes = [8, 128], strides = [1, 1]} : vector<8x256xf32> to vector<8x128xf32>
    %c0_196 = arith.constant 0 : index
    %c0_197 = arith.constant 0 : index
    %238 = vector.load %arg15[%c0_196, %c0_197] : memref<8x256xf32, #tpu.memory_space<vmem>>, vector<8x256xf32>
    %239 = vector.extract_strided_slice %238 {offsets = [0, 128], sizes = [8, 128], strides = [1, 1]} : vector<8x256xf32> to vector<8x128xf32>
    %240 = arith.truncf %231 : vector<8x128xf32> to vector<8x128xbf16>
    %241 = arith.truncf %53 : vector<128x128xf32> to vector<128x128xbf16>
    %cst_198 = arith.constant dense<0.000000e+00> : vector<8x128xf32>
    %242 = tpu.matmul %240, %241, %cst_198 {dimension_numbers = #tpu.dot_dimension_numbers<[1], [1], [0], [0], [0, 0, 1, 0], [], []>} : vector<8x128xbf16>, vector<128x128xbf16>, vector<8x128xf32> -> vector<8x128xf32>
    %cst_199 = arith.constant 5.000000e+00 : f32
    %243 = vector.broadcast %cst_199 : f32 to vector<8x128xf32>
    %244 = arith.mulf %242, %243 : vector<8x128xf32>
    %cst_200 = arith.constant dense<0xFF800000> : vector<8xf32>
    %245 = vector.multi_reduction <maximumf>, %244, %cst_200 [1] : vector<8x128xf32> to vector<8xf32>
    %246 = vector.shape_cast %245 : vector<8xf32> to vector<8x1xf32>
    %cst_201 = arith.constant -18.420681 : f32
    %247 = vector.broadcast %cst_201 : f32 to vector<8x1xf32>
    %248 = arith.maximumf %246, %247 : vector<8x1xf32>
    %249 = vector.broadcast %248 : vector<8x1xf32> to vector<8x128xf32>
    %250 = arith.subf %244, %249 : vector<8x128xf32>
    %251 = math.exp %250 : vector<8x128xf32>
    %cst_202 = arith.constant dense<0.000000e+00> : vector<8xf32>
    %252 = vector.multi_reduction <add>, %251, %cst_202 [1] : vector<8x128xf32> to vector<8xf32>
    %253 = vector.shape_cast %252 : vector<8xf32> to vector<8x1xf32>
    %cst_203 = arith.constant 0.000000e+00 : f32
    %254 = vector.broadcast %cst_203 : f32 to vector<8x1xf32>
    %255 = arith.subf %254, %248 : vector<8x1xf32>
    %256 = math.exp %255 : vector<8x1xf32>
    %cst_204 = arith.constant 9.99999993E-9 : f32
    %257 = vector.broadcast %cst_204 : f32 to vector<8x1xf32>
    %258 = arith.mulf %257, %256 : vector<8x1xf32>
    %259 = arith.addf %253, %258 : vector<8x1xf32>
    %260 = math.log %259 : vector<8x1xf32>
    %261 = arith.addf %248, %260 : vector<8x1xf32>
    %262 = vector.shape_cast %261 : vector<8x1xf32> to vector<1x8x1xf32>
    %cst_205 = arith.constant dense<0.000000e+00> : vector<1xf32>
    %263 = vector.multi_reduction <add>, %262, %cst_205 [1, 2] : vector<1x8x1xf32> to vector<1xf32>
    %264 = vector.shape_cast %263 : vector<1xf32> to vector<1x1x1xf32>
    %265 = vector.extract %264[0, 0, 0] : f32 from vector<1x1x1xf32>
    %cst_206 = arith.constant 1.250000e-01 : f32
    %266 = arith.mulf %265, %cst_206 : f32
    %267 = arith.truncf %234 : vector<8x128xf32> to vector<8x128xbf16>
    %268 = arith.truncf %54 : vector<128x128xf32> to vector<128x128xbf16>
    %cst_207 = arith.constant dense<0.000000e+00> : vector<8x128xf32>
    %269 = tpu.matmul %267, %268, %cst_207 {dimension_numbers = #tpu.dot_dimension_numbers<[1], [1], [0], [0], [0, 0, 1, 0], [], []>} : vector<8x128xbf16>, vector<128x128xbf16>, vector<8x128xf32> -> vector<8x128xf32>
    %cst_208 = arith.constant 5.000000e+00 : f32
    %270 = vector.broadcast %cst_208 : f32 to vector<8x128xf32>
    %271 = arith.mulf %269, %270 : vector<8x128xf32>
    %cst_209 = arith.constant dense<0xFF800000> : vector<8xf32>
    %272 = vector.multi_reduction <maximumf>, %271, %cst_209 [1] : vector<8x128xf32> to vector<8xf32>
    %273 = vector.shape_cast %272 : vector<8xf32> to vector<8x1xf32>
    %cst_210 = arith.constant -18.420681 : f32
    %274 = vector.broadcast %cst_210 : f32 to vector<8x1xf32>
    %275 = arith.maximumf %273, %274 : vector<8x1xf32>
    %276 = vector.broadcast %275 : vector<8x1xf32> to vector<8x128xf32>
    %277 = arith.subf %271, %276 : vector<8x128xf32>
    %278 = math.exp %277 : vector<8x128xf32>
    %cst_211 = arith.constant dense<0.000000e+00> : vector<8xf32>
    %279 = vector.multi_reduction <add>, %278, %cst_211 [1] : vector<8x128xf32> to vector<8xf32>
    %280 = vector.shape_cast %279 : vector<8xf32> to vector<8x1xf32>
    %cst_212 = arith.constant 0.000000e+00 : f32
    %281 = vector.broadcast %cst_212 : f32 to vector<8x1xf32>
    %282 = arith.subf %281, %275 : vector<8x1xf32>
    %283 = math.exp %282 : vector<8x1xf32>
    %cst_213 = arith.constant 9.99999993E-9 : f32
    %284 = vector.broadcast %cst_213 : f32 to vector<8x1xf32>
    %285 = arith.mulf %284, %283 : vector<8x1xf32>
    %286 = arith.addf %280, %285 : vector<8x1xf32>
    %287 = math.log %286 : vector<8x1xf32>
    %288 = arith.addf %275, %287 : vector<8x1xf32>
    %289 = vector.shape_cast %288 : vector<8x1xf32> to vector<1x8x1xf32>
    %cst_214 = arith.constant dense<0.000000e+00> : vector<1xf32>
    %290 = vector.multi_reduction <add>, %289, %cst_214 [1, 2] : vector<1x8x1xf32> to vector<1xf32>
    %291 = vector.shape_cast %290 : vector<1xf32> to vector<1x1x1xf32>
    %292 = vector.extract %291[0, 0, 0] : f32 from vector<1x1x1xf32>
    %cst_215 = arith.constant 1.250000e-01 : f32
    %293 = arith.mulf %292, %cst_215 : f32
    %294 = arith.addf %266, %293 : f32
    %295 = arith.mulf %231, %232 : vector<8x128xf32>
    %cst_216 = arith.constant dense<0.000000e+00> : vector<8xf32>
    %296 = vector.multi_reduction <add>, %295, %cst_216 [1] : vector<8x128xf32> to vector<8xf32>
    %297 = vector.shape_cast %296 : vector<8xf32> to vector<8x1xf32>
    %cst_217 = arith.constant 5.000000e+00 : f32
    %298 = vector.broadcast %cst_217 : f32 to vector<8x1xf32>
    %299 = arith.mulf %297, %298 : vector<8x1xf32>
    %cst_218 = arith.constant -5.000000e+00 : f32
    %cst_219 = arith.constant 5.000000e+00 : f32
    %300 = vector.broadcast %cst_218 : f32 to vector<8x1xf32>
    %301 = arith.maximumf %300, %299 : vector<8x1xf32>
    %302 = vector.broadcast %cst_219 : f32 to vector<8x1xf32>
    %303 = arith.minimumf %302, %301 : vector<8x1xf32>
    %304 = vector.shape_cast %303 : vector<8x1xf32> to vector<1x8x1xf32>
    %cst_220 = arith.constant dense<0.000000e+00> : vector<1xf32>
    %305 = vector.multi_reduction <add>, %304, %cst_220 [1, 2] : vector<1x8x1xf32> to vector<1xf32>
    %306 = vector.shape_cast %305 : vector<1xf32> to vector<1x1x1xf32>
    %307 = vector.extract %306[0, 0, 0] : f32 from vector<1x1x1xf32>
    %cst_221 = arith.constant 1.250000e-01 : f32
    %308 = arith.mulf %307, %cst_221 : f32
    %309 = arith.mulf %234, %235 : vector<8x128xf32>
    %cst_222 = arith.constant dense<0.000000e+00> : vector<8xf32>
    %310 = vector.multi_reduction <add>, %309, %cst_222 [1] : vector<8x128xf32> to vector<8xf32>
    %311 = vector.shape_cast %310 : vector<8xf32> to vector<8x1xf32>
    %cst_223 = arith.constant 5.000000e+00 : f32
    %312 = vector.broadcast %cst_223 : f32 to vector<8x1xf32>
    %313 = arith.mulf %311, %312 : vector<8x1xf32>
    %cst_224 = arith.constant -5.000000e+00 : f32
    %cst_225 = arith.constant 5.000000e+00 : f32
    %314 = vector.broadcast %cst_224 : f32 to vector<8x1xf32>
    %315 = arith.maximumf %314, %313 : vector<8x1xf32>
    %316 = vector.broadcast %cst_225 : f32 to vector<8x1xf32>
    %317 = arith.minimumf %316, %315 : vector<8x1xf32>
    %318 = vector.shape_cast %317 : vector<8x1xf32> to vector<1x8x1xf32>
    %cst_226 = arith.constant dense<0.000000e+00> : vector<1xf32>
    %319 = vector.multi_reduction <add>, %318, %cst_226 [1, 2] : vector<1x8x1xf32> to vector<1xf32>
    %320 = vector.shape_cast %319 : vector<1xf32> to vector<1x1x1xf32>
    %321 = vector.extract %320[0, 0, 0] : f32 from vector<1x1x1xf32>
    %cst_227 = arith.constant 1.250000e-01 : f32
    %322 = arith.mulf %321, %cst_227 : f32
    %323 = arith.addf %308, %322 : f32
    %cst_228 = arith.constant 0.000000e+00 : f32
    %324 = arith.subf %cst_228, %323 : f32
    %325 = arith.addf %324, %294 : f32
    %326 = arith.subf %237, %239 : vector<8x128xf32>
    %327 = arith.mulf %232, %326 : vector<8x128xf32>
    %cst_229 = arith.constant dense<0.000000e+00> : vector<8xf32>
    %328 = vector.multi_reduction <add>, %327, %cst_229 [1] : vector<8x128xf32> to vector<8xf32>
    %329 = vector.shape_cast %328 : vector<8xf32> to vector<8x1xf32>
    %cst_230 = arith.constant 0.000000e+00 : f32
    %330 = vector.broadcast %cst_230 : f32 to vector<8x1xf32>
    %331 = arith.subf %330, %329 : vector<8x1xf32>
    %cst_231 = arith.constant 0.000000e+00 : f32
    %332 = vector.broadcast %cst_231 : f32 to vector<8x1xf32>
    %333 = arith.maximumf %331, %332 : vector<8x1xf32>
    %334 = math.absf %329 : vector<8x1xf32>
    %cst_232 = arith.constant 0.000000e+00 : f32
    %335 = vector.broadcast %cst_232 : f32 to vector<8x1xf32>
    %336 = arith.subf %335, %334 : vector<8x1xf32>
    %337 = math.exp %336 : vector<8x1xf32>
    %cst_233 = arith.constant 1.000000e+00 : f32
    %338 = vector.broadcast %cst_233 : f32 to vector<8x1xf32>
    %339 = arith.addf %338, %337 : vector<8x1xf32>
    %340 = math.log %339 : vector<8x1xf32>
    %341 = arith.addf %333, %340 : vector<8x1xf32>
    %342 = vector.shape_cast %341 : vector<8x1xf32> to vector<1x8x1xf32>
    %cst_234 = arith.constant dense<0.000000e+00> : vector<1xf32>
    %343 = vector.multi_reduction <add>, %342, %cst_234 [1, 2] : vector<1x8x1xf32> to vector<1xf32>
    %344 = vector.shape_cast %343 : vector<1xf32> to vector<1x1x1xf32>
    %345 = vector.extract %344[0, 0, 0] : f32 from vector<1x1x1xf32>
    %cst_235 = arith.constant 1.250000e-01 : f32
    %346 = arith.mulf %345, %cst_235 : f32
    %347 = arith.mulf %4, %4 : vector<512x128xf32>
    %348 = vector.shape_cast %347 : vector<512x128xf32> to vector<1x512x128xf32>
    %cst_236 = arith.constant dense<0.000000e+00> : vector<1xf32>
    %349 = vector.multi_reduction <add>, %348, %cst_236 [1, 2] : vector<1x512x128xf32> to vector<1xf32>
    %350 = vector.shape_cast %349 : vector<1xf32> to vector<1x1x1xf32>
    %351 = vector.extract %350[0, 0, 0] : f32 from vector<1x1x1xf32>
    %c0_237 = arith.constant 0 : index
    %c0_238 = arith.constant 0 : index
    %352 = vector.load %arg7[%c0_237, %c0_238] : memref<2x128xf32, #tpu.memory_space<vmem>>, vector<2x128xf32>
    %353 = arith.mulf %352, %352 : vector<2x128xf32>
    %354 = vector.shape_cast %353 : vector<2x128xf32> to vector<1x2x128xf32>
    %cst_239 = arith.constant dense<0.000000e+00> : vector<1xf32>
    %355 = vector.multi_reduction <add>, %354, %cst_239 [1, 2] : vector<1x2x128xf32> to vector<1xf32>
    %356 = vector.shape_cast %355 : vector<1xf32> to vector<1x1x1xf32>
    %357 = vector.extract %356[0, 0, 0] : f32 from vector<1x1x1xf32>
    %358 = arith.addf %351, %357 : f32
    %cst_240 = arith.constant 1.000000e-07 : f32
    %359 = arith.mulf %cst_240, %358 : f32
    %cst_241 = arith.constant 2.000000e-01 : f32
    %360 = arith.mulf %cst_241, %325 : f32
    %361 = arith.addf %346, %360 : f32
    %362 = arith.addf %361, %359 : f32
    %363 = tpu.iota {dimensions = array<i32: 0>} : vector<8x128xi32>
    %c0_i32 = arith.constant 0 : i32
    %364 = vector.broadcast %c0_i32 : i32 to vector<8x128xi32>
    %365 = arith.cmpi eq, %363, %364 : vector<8x128xi32>
    %cst_242 = arith.constant 0.000000e+00 : f32
    %366 = vector.broadcast %362 : f32 to vector<8x128xf32>
    %367 = vector.broadcast %cst_242 : f32 to vector<8x128xf32>
    %368 = arith.select %365, %366, %367 : vector<8x128xi1>, vector<8x128xf32>
    %c1_i32 = arith.constant 1 : i32
    %369 = vector.broadcast %c1_i32 : i32 to vector<8x128xi32>
    %370 = arith.cmpi eq, %363, %369 : vector<8x128xi32>
    %cst_243 = arith.constant 0.000000e+00 : f32
    %371 = vector.broadcast %346 : f32 to vector<8x128xf32>
    %372 = vector.broadcast %cst_243 : f32 to vector<8x128xf32>
    %373 = arith.select %370, %371, %372 : vector<8x128xi1>, vector<8x128xf32>
    %374 = arith.addf %368, %373 : vector<8x128xf32>
    %c2_i32 = arith.constant 2 : i32
    %375 = vector.broadcast %c2_i32 : i32 to vector<8x128xi32>
    %376 = arith.cmpi eq, %363, %375 : vector<8x128xi32>
    %cst_244 = arith.constant 0.000000e+00 : f32
    %377 = vector.broadcast %360 : f32 to vector<8x128xf32>
    %378 = vector.broadcast %cst_244 : f32 to vector<8x128xf32>
    %379 = arith.select %376, %377, %378 : vector<8x128xi1>, vector<8x128xf32>
    %380 = arith.addf %374, %379 : vector<8x128xf32>
    %c0_245 = arith.constant 0 : index
    %c0_246 = arith.constant 0 : index
    %381 = vector.load %arg9[%c0_245, %c0_246] : memref<8x128xf32, #tpu.memory_space<vmem>>, vector<8x128xf32>
    tpu.vector_store %arg9[%c0_245, %c0_246], %380 {strides = array<i32>} : memref<8x128xf32, #tpu.memory_space<vmem>>, vector<8x128xf32>,
    return
  }
}

</mosaic_0001>

<llo_original>
// kernel: lightgcl_forward.1
$region0: #{lightgcl_forward.1}
  #allocation0 [shape = 'u32[]', space=smem, size = 0x4, offset = 0x4, fixed_abs, tag = 'smem constant byte address 0x4 - core index']
  #allocation1 [shape = 'u32[144,128]{1,0:T(1,128)}', space=vmem, size = 0x12000, scoped, tag = 'internal scratch']
  #allocation2 [shape = 'f32[128,256]{1,0:T(8,128)}', space=vmem, size = 0x20000, scoped, tag = 'scratch operand']
  #allocation3 [shape = 'f32[128,256]{1,0:T(8,128)}', space=vmem, size = 0x20000, scoped, tag = 'scratch operand']
  #allocation4 [shape = 'f32[8,256]{1,0:T(8,128)}', space=vmem, size = 0x2000, scoped, tag = 'scratch operand']
  #allocation5 [shape = 'f32[8,256]{1,0:T(8,128)}', space=vmem, size = 0x2000, scoped, tag = 'scratch operand']
  #allocation6 [shape = 'f32[8,256]{1,0:T(8,128)}', space=vmem, size = 0x2000, scoped, tag = 'scratch operand']
  #allocation7 [shape = 'f32[8,256]{1,0:T(8,128)}', space=vmem, size = 0x2000, scoped, tag = 'scratch operand']
  %s0 = inlined_call_operand.vmem [shape: s32[4,8], index: 0, kind: input, shape index: {}]
  %s1 = inlined_call_operand.vmem [shape: f32[512,128], index: 1, kind: input, shape index: {}]
  %s2 = inlined_call_operand.vmem [shape: bf16[160,128], index: 2, kind: input, shape index: {}]
  %s3 = inlined_call_operand.vmem [shape: bf16[160,128], index: 3, kind: input, shape index: {}]
  %s4 = inlined_call_operand.vmem [shape: bf16[256,256], index: 4, kind: input, shape index: {}]
  %s5 = inlined_call_operand.vmem [shape: bf16[256,64], index: 5, kind: input, shape index: {}]
  %s6 = inlined_call_operand.vmem [shape: f32[8,128], index: 6, kind: input, shape index: {}]
  %s7 = inlined_call_operand.vmem [shape: f32[2,128], index: 7, kind: input, shape index: {}]
  %s8 = inlined_call_operand.hbm [shape: f32[8,128], index: 8, kind: output, shape index: {0}]
  %s9 = inlined_call_operand.vmem [shape: f32[8,128], index: 9, kind: output, shape index: {1}]
  %10 = xla_tuple %s8, %s9
  %s11 = sld [smem:[#allocation0]]
  $region54: #{lightgcl_forward.1} parent=0
    _
  %s13 = ssub.s32 1, %s11
  %s14 = scalar_select 0, %s13, %s11
  $region1: #{lightgcl_forward.1} parent=0
    #allocation8 [shape = 'u8[2048]{0}', space=smem, size = 0x800, scoped, tag = 'input window, operand 0, single buffered']
    #allocation9 [shape = 's32[1]{0}', space=sflag, size = 0x4, scoped, tag = 'scoped memory for lightgcl_forward.1']
    #allocation10 [shape = 's32[1]{0}', space=sflag, size = 0x4, scoped, tag = 'scoped memory for lightgcl_forward.1']
    #allocation11 [shape = 'u8[4096]{0}', space=vmem, size = 0x1000, scoped, tag = 'output window, operand 0, single buffered']
    %15 = vsyncpa [#allocation10], 0
    %16 = vsyncpa [#allocation9], 0
    // Predicated region
    $region2: #{lightgcl_forward.1} parent=1 // pred_check
      _
    $region3: #{lightgcl_forward.1} parent=1 // pred_check_branch
      %18 = sbr.rel (0) target = $region5
    $region4: #{lightgcl_forward.1} parent=1 // pred_region
      %s20 = ssub.s32 64, 64
      %21 = vsyncadd [#allocation10], %s20
      %s23 = sshll.u32 %s0, 4
      %s24 = int_to_ptr.vmem [resolvable:$true] %s23
      %26 = dma.vmem_to_smem %s24, 64, [#allocation8], [#allocation10]
    $region5: #{lightgcl_forward.1} parent=1 // pred_fallthru
      _
    // Predicated region
    $region6: #{lightgcl_forward.1} parent=1 // pred_check
      _
    $region7: #{lightgcl_forward.1} parent=1 // pred_check_branch
      %28 = sbr.rel (0) target = $region9
    $region8: #{lightgcl_forward.1} parent=1 // pred_region
      _
    $region9: #{lightgcl_forward.1} parent=1 // pred_fallthru
      _
    // Predicated region
    $region10: #{lightgcl_forward.1} parent=1 // pred_check
      _
    $region11: #{lightgcl_forward.1} parent=1 // pred_check_branch
      %30 = sbr.rel (0) target = $region13
    $region12: #{lightgcl_forward.1} parent=1 // pred_region
      _
    $region13: #{lightgcl_forward.1} parent=1 // pred_fallthru
      _
    // Predicated region
    $region14: #{lightgcl_forward.1} parent=1 // pred_check
      _
    $region15: #{lightgcl_forward.1} parent=1 // pred_check_branch
      %32 = sbr.rel (0) target = $region17
    $region16: #{lightgcl_forward.1} parent=1 // pred_region
      _
    $region17: #{lightgcl_forward.1} parent=1 // pred_fallthru
      _
    // Predicated region
    $region18: #{lightgcl_forward.1} parent=1 // pred_check
      _
    $region19: #{lightgcl_forward.1} parent=1 // pred_check_branch
      %34 = sbr.rel (0) target = $region21
    $region20: #{lightgcl_forward.1} parent=1 // pred_region
      _
    $region21: #{lightgcl_forward.1} parent=1 // pred_fallthru
      _
    // Predicated region
    $region22: #{lightgcl_forward.1} parent=1 // pred_check
      _
    $region23: #{lightgcl_forward.1} parent=1 // pred_check_branch
      %36 = sbr.rel (0) target = $region25
    $region24: #{lightgcl_forward.1} parent=1 // pred_region
      _
    $region25: #{lightgcl_forward.1} parent=1 // pred_fallthru
      _
    // Predicated region
    $region26: #{lightgcl_forward.1} parent=1 // pred_check
      _
    $region27: #{lightgcl_forward.1} parent=1 // pred_check_branch
      %38 = sbr.rel (0) target = $region29
    $region28: #{lightgcl_forward.1} parent=1 // pred_region
      _
    $region29: #{lightgcl_forward.1} parent=1 // pred_fallthru
      _
    // Predicated region
    $region30: #{lightgcl_forward.1} parent=1 // pred_check
      _
    $region31: #{lightgcl_forward.1} parent=1 // pred_check_branch
      %40 = sbr.rel (0) target = $region33
    $region32: #{lightgcl_forward.1} parent=1 // pred_region
      _
    $region33: #{lightgcl_forward.1} parent=1 // pred_fallthru
      _
    // Predicated region
    $region34: #{lightgcl_forward.1} parent=1 // pred_check
      _
    $region35: #{lightgcl_forward.1} parent=1 // pred_check_branch
      %42 = sbr.rel (0) target = $region37
    $region36: #{lightgcl_forward.1} parent=1 // pred_region
      %43 = dma.done [#allocation10], 64
    $region37: #{lightgcl_forward.1} parent=1 // pred_fallthru
      _
    %44 = sfence
    %v46 = vld [vmem:[%s2] sm:$0xf]
    %v47 = vld [vmem:[%s2 + $0x4] sm:$0xf]
    %v48 = vld [vmem:[%s2 + $0x8] sm:$0xf]
    %v49 = vld [vmem:[%s2 + $0xc] sm:$0xf]
    %v50 = vld [vmem:[%s2 + $0x10] sm:$0xf]
    %v51 = vld [vmem:[%s2 + $0x14] sm:$0xf]
    %v52 = vld [vmem:[%s2 + $0x18] sm:$0xf]
    %v53 = vld [vmem:[%s2 + $0x1c] sm:$0xf]
    %v54 = vld [vmem:[%s2 + $0x20] sm:$0xf]
    %v55 = vld [vmem:[%s2 + $0x24] sm:$0xf]
    %v56 = vld [vmem:[%s2 + $0x28] sm:$0xf]
    %v57 = vld [vmem:[%s2 + $0x2c] sm:$0xf]
    %v58 = vld [vmem:[%s2 + $0x30] sm:$0xf]
    %v59 = vld [vmem:[%s2 + $0x34] sm:$0xf]
    %v60 = vld [vmem:[%s2 + $0x38] sm:$0xf]
    %v61 = vld [vmem:[%s2 + $0x3c] sm:$0xf]
    %v62 = vld [vmem:[%s2 + $0x40] sm:$0xf]
    %v63 = vld [vmem:[%s2 + $0x44] sm:$0xf]
    %v64 = vld [vmem:[%s2 + $0x48] sm:$0xf]
    %v65 = vld [vmem:[%s2 + $0x4c] sm:$0xf]
    %v66 = vld [vmem:[%s3] sm:$0xf]
    %v67 = vld [vmem:[%s3 + $0x4] sm:$0xf]
    %v68 = vld [vmem:[%s3 + $0x8] sm:$0xf]
    %v69 = vld [vmem:[%s3 + $0xc] sm:$0xf]
    %v70 = vld [vmem:[%s3 + $0x10] sm:$0xf]
    %v71 = vld [vmem:[%s3 + $0x14] sm:$0xf]
    %v72 = vld [vmem:[%s3 + $0x18] sm:$0xf]
    %v73 = vld [vmem:[%s3 + $0x1c] sm:$0xf]
    %v74 = vld [vmem:[%s3 + $0x20] sm:$0xf]
    %v75 = vld [vmem:[%s3 + $0x24] sm:$0xf]
    %v76 = vld [vmem:[%s3 + $0x28] sm:$0xf]
    %v77 = vld [vmem:[%s3 + $0x2c] sm:$0xf]
    %v78 = vld [vmem:[%s3 + $0x30] sm:$0xf]
    %v79 = vld [vmem:[%s3 + $0x34] sm:$0xf]
    %v80 = vld [vmem:[%s3 + $0x38] sm:$0xf]
    %v81 = vld [vmem:[%s3 + $0x3c] sm:$0xf]
    %v82 = vld [vmem:[%s3 + $0x40] sm:$0xf]
    %v83 = vld [vmem:[%s3 + $0x44] sm:$0xf]
    %v84 = vld [vmem:[%s3 + $0x48] sm:$0xf]
    %v85 = vld [vmem:[%s3 + $0x4c] sm:$0xf]
    %v86 = vld [vmem:[%s4] sm:$0xff]
    %v87 = vld [vmem:[%s4 + $0x8] sm:$0xff]
    %v88 = vld [vmem:[%s4 + $0x10] sm:$0xff]
    %v89 = vld [vmem:[%s4 + $0x18] sm:$0xff]
    %v90 = vld [vmem:[%s4 + $0x20] sm:$0xff]
    %v91 = vld [vmem:[%s4 + $0x28] sm:$0xff]
    %v92 = vld [vmem:[%s4 + $0x30] sm:$0xff]
    %v93 = vld [vmem:[%s4 + $0x38] sm:$0xff]
    %v94 = vld [vmem:[%s4 + $0x40] sm:$0xff]
    %v95 = vld [vmem:[%s4 + $0x48] sm:$0xff]
    %v96 = vld [vmem:[%s4 + $0x50] sm:$0xff]
    %v97 = vld [vmem:[%s4 + $0x58] sm:$0xff]
    %v98 = vld [vmem:[%s4 + $0x60] sm:$0xff]
    %v99 = vld [vmem:[%s4 + $0x68] sm:$0xff]
    %v100 = vld [vmem:[%s4 + $0x70] sm:$0xff]
    %v101 = vld [vmem:[%s4 + $0x78] sm:$0xff]
    %v102 = vld [vmem:[%s4 + $0x80] sm:$0xff]
    %v103 = vld [vmem:[%s4 + $0x88] sm:$0xff]
    %v104 = vld [vmem:[%s4 + $0x90] sm:$0xff]
    %v105 = vld [vmem:[%s4 + $0x98] sm:$0xff]
    %v106 = vld [vmem:[%s4 + $0xa0] sm:$0xff]
    %v107 = vld [vmem:[%s4 + $0xa8] sm:$0xff]
    %v108 = vld [vmem:[%s4 + $0xb0] sm:$0xff]
    %v109 = vld [vmem:[%s4 + $0xb8] sm:$0xff]
    %v110 = vld [vmem:[%s4 + $0xc0] sm:$0xff]
    %v111 = vld [vmem:[%s4 + $0xc8] sm:$0xff]
    %v112 = vld [vmem:[%s4 + $0xd0] sm:$0xff]
    %v113 = vld [vmem:[%s4 + $0xd8] sm:$0xff]
    %v114 = vld [vmem:[%s4 + $0xe0] sm:$0xff]
    %v115 = vld [vmem:[%s4 + $0xe8] sm:$0xff]
    %v116 = vld [vmem:[%s4 + $0xf0] sm:$0xff]
    %v117 = vld [vmem:[%s4 + $0xf8] sm:$0xff]
    %v118 = vld [vmem:[%s5] sm:$0xf]
    %v119 = vld [vmem:[%s5 + $0x4] sm:$0xf]
    %v120 = vld [vmem:[%s5 + $0x8] sm:$0xf]
    %v121 = vld [vmem:[%s5 + $0xc] sm:$0xf]
    %v122 = vld [vmem:[%s5 + $0x10] sm:$0xf]
    %v123 = vld [vmem:[%s5 + $0x14] sm:$0xf]
    %v124 = vld [vmem:[%s5 + $0x18] sm:$0xf]
    %v125 = vld [vmem:[%s5 + $0x1c] sm:$0xf]
    %v126 = vld [vmem:[%s5 + $0x20] sm:$0xf]
    %v127 = vld [vmem:[%s5 + $0x24] sm:$0xf]
    %v128 = vld [vmem:[%s5 + $0x28] sm:$0xf]
    %v129 = vld [vmem:[%s5 + $0x2c] sm:$0xf]
    %v130 = vld [vmem:[%s5 + $0x30] sm:$0xf]
    %v131 = vld [vmem:[%s5 + $0x34] sm:$0xf]
    %v132 = vld [vmem:[%s5 + $0x38] sm:$0xf]
    %v133 = vld [vmem:[%s5 + $0x3c] sm:$0xf]
    %v134 = vld [vmem:[%s5 + $0x40] sm:$0xf]
    %v135 = vld [vmem:[%s5 + $0x44] sm:$0xf]
    %v136 = vld [vmem:[%s5 + $0x48] sm:$0xf]
    %v137 = vld [vmem:[%s5 + $0x4c] sm:$0xf]
    %v138 = vld [vmem:[%s5 + $0x50] sm:$0xf]
    %v139 = vld [vmem:[%s5 + $0x54] sm:$0xf]
    %v140 = vld [vmem:[%s5 + $0x58] sm:$0xf]
    %v141 = vld [vmem:[%s5 + $0x5c] sm:$0xf]
    %v142 = vld [vmem:[%s5 + $0x60] sm:$0xf]
    %v143 = vld [vmem:[%s5 + $0x64] sm:$0xf]
    %v144 = vld [vmem:[%s5 + $0x68] sm:$0xf]
    %v145 = vld [vmem:[%s5 + $0x6c] sm:$0xf]
    %v146 = vld [vmem:[%s5 + $0x70] sm:$0xf]
    %v147 = vld [vmem:[%s5 + $0x74] sm:$0xf]
    %v148 = vld [vmem:[%s5 + $0x78] sm:$0xf]
    %v149 = vld [vmem:[%s5 + $0x7c] sm:$0xf]
    %v150 = vld [vmem:[%s1] sm:$0xff]
    %v151 = vld [vmem:[%s1 + $0x8] sm:$0xff]
    %v152 = vld [vmem:[%s1 + $0x10] sm:$0xff]
    %v153 = vld [vmem:[%s1 + $0x18] sm:$0xff]
    %v154 = vld [vmem:[%s1 + $0x20] sm:$0xff]
    %v155 = vld [vmem:[%s1 + $0x28] sm:$0xff]
    %v156 = vld [vmem:[%s1 + $0x30] sm:$0xff]
    %v157 = vld [vmem:[%s1 + $0x38] sm:$0xff]
    %v158 = vld [vmem:[%s1 + $0x40] sm:$0xff]
    %v159 = vld [vmem:[%s1 + $0x48] sm:$0xff]
    %v160 = vld [vmem:[%s1 + $0x50] sm:$0xff]
    %v161 = vld [vmem:[%s1 + $0x58] sm:$0xff]
    %v162 = vld [vmem:[%s1 + $0x60] sm:$0xff]
    %v163 = vld [vmem:[%s1 + $0x68] sm:$0xff]
    %v164 = vld [vmem:[%s1 + $0x70] sm:$0xff]
    %v165 = vld [vmem:[%s1 + $0x78] sm:$0xff]
    %v166 = vld [vmem:[%s1 + $0x80] sm:$0xff]
    %v167 = vld [vmem:[%s1 + $0x88] sm:$0xff]
    %v168 = vld [vmem:[%s1 + $0x90] sm:$0xff]
    %v169 = vld [vmem:[%s1 + $0x98] sm:$0xff]
    %v170 = vld [vmem:[%s1 + $0xa0] sm:$0xff]
    %v171 = vld [vmem:[%s1 + $0xa8] sm:$0xff]
    %v172 = vld [vmem:[%s1 + $0xb0] sm:$0xff]
    %v173 = vld [vmem:[%s1 + $0xb8] sm:$0xff]
    %v174 = vld [vmem:[%s1 + $0xc0] sm:$0xff]
    %v175 = vld [vmem:[%s1 + $0xc8] sm:$0xff]
    %v176 = vld [vmem:[%s1 + $0xd0] sm:$0xff]
    %v177 = vld [vmem:[%s1 + $0xd8] sm:$0xff]
    %v178 = vld [vmem:[%s1 + $0xe0] sm:$0xff]
    %v179 = vld [vmem:[%s1 + $0xe8] sm:$0xff]
    %v180 = vld [vmem:[%s1 + $0xf0] sm:$0xff]
    %v181 = vld [vmem:[%s1 + $0xf8] sm:$0xff]
    %v182 = vld [vmem:[%s1 + $0x100] sm:$0xff]
    %v183 = vld [vmem:[%s1 + $0x108] sm:$0xff]
    %v184 = vld [vmem:[%s1 + $0x110] sm:$0xff]
    %v185 = vld [vmem:[%s1 + $0x118] sm:$0xff]
    %v186 = vld [vmem:[%s1 + $0x120] sm:$0xff]
    %v187 = vld [vmem:[%s1 + $0x128] sm:$0xff]
    %v188 = vld [vmem:[%s1 + $0x130] sm:$0xff]
    %v189 = vld [vmem:[%s1 + $0x138] sm:$0xff]
    %v190 = vld [vmem:[%s1 + $0x140] sm:$0xff]
    %v191 = vld [vmem:[%s1 + $0x148] sm:$0xff]
    %v192 = vld [vmem:[%s1 + $0x150] sm:$0xff]
    %v193 = vld [vmem:[%s1 + $0x158] sm:$0xff]
    %v194 = vld [vmem:[%s1 + $0x160] sm:$0xff]
    %v195 = vld [vmem:[%s1 + $0x168] sm:$0xff]
    %v196 = vld [vmem:[%s1 + $0x170] sm:$0xff]
    %v197 = vld [vmem:[%s1 + $0x178] sm:$0xff]
    %v198 = vld [vmem:[%s1 + $0x180] sm:$0xff]
    %v199 = vld [vmem:[%s1 + $0x188] sm:$0xff]
    %v200 = vld [vmem:[%s1 + $0x190] sm:$0xff]
    %v201 = vld [vmem:[%s1 + $0x198] sm:$0xff]
    %v202 = vld [vmem:[%s1 + $0x1a0] sm:$0xff]
    %v203 = vld [vmem:[%s1 + $0x1a8] sm:$0xff]
    %v204 = vld [vmem:[%s1 + $0x1b0] sm:$0xff]
    %v205 = vld [vmem:[%s1 + $0x1b8] sm:$0xff]
    %v206 = vld [vmem:[%s1 + $0x1c0] sm:$0xff]
    %v207 = vld [vmem:[%s1 + $0x1c8] sm:$0xff]
    %v208 = vld [vmem:[%s1 + $0x1d0] sm:$0xff]
    %v209 = vld [vmem:[%s1 + $0x1d8] sm:$0xff]
    %v210 = vld [vmem:[%s1 + $0x1e0] sm:$0xff]
    %v211 = vld [vmem:[%s1 + $0x1e8] sm:$0xff]
    %v212 = vld [vmem:[%s1 + $0x1f0] sm:$0xff]
    %v213 = vld [vmem:[%s1 + $0x1f8] sm:$0xff]
    %v214 = vpack.c.bf16 %v167, %v166
    %v215 = vpack.c.bf16 %v169, %v168
    %v216 = vpack.c.bf16 %v171, %v170
    %v217 = vpack.c.bf16 %v173, %v172
    %v218 = vpack.c.bf16 %v175, %v174
    %v219 = vpack.c.bf16 %v177, %v176
    %v220 = vpack.c.bf16 %v179, %v178
    %v221 = vpack.c.bf16 %v181, %v180
    %v242 = vunpack.c.l.b16 %v46
    %v243 = vunpack.c.l.b16 %v47
    %v244 = vunpack.c.l.b16 %v48
    %v245 = vunpack.c.l.b16 %v49
    %v246 = vunpack.c.l.b16 %v50
    %v247 = vunpack.c.l.b16 %v51
    %v248 = vunpack.c.l.b16 %v52
    %v249 = vunpack.c.l.b16 %v53
    %v250 = vunpack.c.l.b16 %v54
    %v251 = vunpack.c.l.b16 %v55
    %v252 = vunpack.c.l.b16 %v56
    %v253 = vunpack.c.l.b16 %v57
    %v254 = vunpack.c.l.b16 %v58
    %v255 = vunpack.c.l.b16 %v59
    %v256 = vunpack.c.l.b16 %v60
    %v257 = vunpack.c.l.b16 %v61
    %v258 = vunpack.c.l.b16 %v62
    %v259 = vunpack.c.l.b16 %v63
    %v260 = vunpack.c.l.b16 %v64
    %v261 = vunpack.c.l.b16 %v65
    %v262 = vpack.c.b16 %v243, %v242
    %v263 = vpack.c.b16 %v245, %v244
    %v264 = vpack.c.b16 %v247, %v246
    %v265 = vpack.c.b16 %v249, %v248
    %v266 = vpack.c.b16 %v251, %v250
    %v267 = vpack.c.b16 %v253, %v252
    %v268 = vpack.c.b16 %v255, %v254
    %v269 = vpack.c.b16 %v257, %v256
    %v270 = vpack.c.b16 %v259, %v258
    %v271 = vpack.c.b16 %v261, %v260
    %282 = vmatprep.subr.bf16.mxu0 0
    %283 = vmatpush1.bf16.msra.mxu0 %v214
    %284 = vmatprep.subr.bf16.mxu0 0
    %285 = vmatpush1.bf16.msra.mxu0 %v215
    %286 = vmatprep.subr.bf16.mxu0 0
    %287 = vmatpush1.bf16.msra.mxu0 %v216
    %288 = vmatprep.subr.bf16.mxu0 0
    %289 = vmatpush1.bf16.msra.mxu0 %v217
    %290 = vmatprep.subr.bf16.mxu0 0
    %291 = vmatpush1.bf16.msra.mxu0 %v218
    %292 = vmatprep.subr.bf16.mxu0 0
    %293 = vmatpush1.bf16.msra.mxu0 %v219
    %294 = vmatprep.subr.bf16.mxu0 0
    %295 = vmatpush1.bf16.msra.mxu0 %v220
    %296 = vmatprep.subr.bf16.mxu0 0
    %297 = vmatpush1.bf16.msra.mxu0 %v221
    %298 = vmatprep.subr.bf16.mxu0 0
    %299 = vmatpush1.bf16.msra.mxu0 0
    %300 = vmatprep.subr.bf16.mxu0 0
    %301 = vmatpush1.bf16.msra.mxu0 0
    %302 = vmatprep.subr.bf16.mxu0 0
    %303 = vmatpush1.bf16.msra.mxu0 0
    %304 = vmatprep.subr.bf16.mxu0 0
    %305 = vmatpush1.bf16.msra.mxu0 0
    %306 = vmatprep.subr.bf16.mxu0 0
    %307 = vmatpush1.bf16.msra.mxu0 0
    %308 = vmatprep.subr.bf16.mxu0 0
    %309 = vmatpush1.bf16.msra.mxu0 0
    %310 = vmatprep.subr.bf16.mxu0 0
    %311 = vmatpush1.bf16.msra.mxu0 0
    %312 = vmatprep.subr.bf16.mxu0 0
    %313 = vmatpush1.bf16.msra.mxu0 0
    %314 = vmatprep.mubr.bf16.mxu0 0
    %315 = vmatmul.mubr.bf16.gmra.mrb[0].mxu0 %v262
    %v316 = vpop.f32.mrb[0].mxu0
    %v317 = vadd.f32 0.0, %v316
    %v318 = vpop.f32.mrb[0].mxu0
    %v319 = vpop.f32.mrb[0].mxu0
    %v320 = vadd.f32 0.0, %v319
    %v321 = vpop.f32.mrb[0].mxu0
    %322 = vmatprep.mubr.bf16.mxu0 0
    %323 = vmatmul.mubr.bf16.gmra.mrb[0].mxu0 %v263
    %v324 = vpop.f32.mrb[0].mxu0
    %v325 = vadd.f32 0.0, %v324
    %v326 = vpop.f32.mrb[0].mxu0
    %v327 = vpop.f32.mrb[0].mxu0
    %v328 = vadd.f32 0.0, %v327
    %v329 = vpop.f32.mrb[0].mxu0
    %330 = vmatprep.mubr.bf16.mxu0 0
    %331 = vmatmul.mubr.bf16.gmra.mrb[0].mxu0 %v264
    %v332 = vpop.f32.mrb[0].mxu0
    %v333 = vadd.f32 0.0, %v332
    %v334 = vpop.f32.mrb[0].mxu0
    %v335 = vpop.f32.mrb[0].mxu0
    %v336 = vadd.f32 0.0, %v335
    %v337 = vpop.f32.mrb[0].mxu0
    %338 = vmatprep.mubr.bf16.mxu0 0
    %339 = vmatmul.mubr.bf16.gmra.mrb[0].mxu0 %v265
    %v340 = vpop.f32.mrb[0].mxu0
    %v341 = vadd.f32 0.0, %v340
    %v342 = vpop.f32.mrb[0].mxu0
    %v343 = vpop.f32.mrb[0].mxu0
    %v344 = vadd.f32 0.0, %v343
    %v345 = vpop.f32.mrb[0].mxu0
    %346 = vmatprep.mubr.bf16.mxu0 0
    %347 = vmatmul.mubr.bf16.gmra.mrb[0].mxu0 %v266
    %v348 = vpop.f32.mrb[0].mxu0
    %v349 = vadd.f32 0.0, %v348
    %v350 = vpop.f32.mrb[0].mxu0
    %v351 = vpop.f32.mrb[0].mxu0
    %v352 = vadd.f32 0.0, %v351
    %v353 = vpop.f32.mrb[0].mxu0
    %354 = vmatprep.mubr.bf16.mxu0 0
    %355 = vmatmul.mubr.bf16.gmra.mrb[0].mxu0 %v267
    %v356 = vpop.f32.mrb[0].mxu0
    %v357 = vadd.f32 0.0, %v356
    %v358 = vpop.f32.mrb[0].mxu0
    %v359 = vpop.f32.mrb[0].mxu0
    %v360 = vadd.f32 0.0, %v359
    %v361 = vpop.f32.mrb[0].mxu0
    %362 = vmatprep.mubr.bf16.mxu0 0
    %363 = vmatmul.mubr.bf16.gmra.mrb[0].mxu0 %v268
    %v364 = vpop.f32.mrb[0].mxu0
    %v365 = vadd.f32 0.0, %v364
    %v366 = vpop.f32.mrb[0].mxu0
    %v367 = vpop.f32.mrb[0].mxu0
    %v368 = vadd.f32 0.0, %v367
    %v369 = vpop.f32.mrb[0].mxu0
    %370 = vmatprep.mubr.bf16.mxu0 0
    %371 = vmatmul.mubr.bf16.gmra.mrb[0].mxu0 %v269
    %v372 = vpop.f32.mrb[0].mxu0
    %v373 = vadd.f32 0.0, %v372
    %v374 = vpop.f32.mrb[0].mxu0
    %v375 = vpop.f32.mrb[0].mxu0
    %v376 = vadd.f32 0.0, %v375
    %v377 = vpop.f32.mrb[0].mxu0
    %378 = vmatprep.mubr.bf16.mxu0 0
    %379 = vmatmul.mubr.bf16.gmra.mrb[0].mxu0 %v270
    %v380 = vpop.f32.mrb[0].mxu0
    %v381 = vadd.f32 0.0, %v380
    %v382 = vpop.f32.mrb[0].mxu0
    %v383 = vpop.f32.mrb[0].mxu0
    %v384 = vadd.f32 0.0, %v383
    %v385 = vpop.f32.mrb[0].mxu0
    %386 = vmatprep.mubr.bf16.mxu0 0
    %387 = vmatmul.mubr.bf16.gmra.mrb[0].mxu0 %v271
    %v388 = vpop.f32.mrb[0].mxu0
    %v389 = vadd.f32 0.0, %v388
    %v390 = vpop.f32.mrb[0].mxu0
    %v391 = vpop.f32.mrb[0].mxu0
    %v392 = vadd.f32 0.0, %v391
    %v393 = vpop.f32.mrb[0].mxu0
    %394 = vdwg.mxu0
    %v395 = vpack.c.bf16 %v151, %v150
    %v396 = vpack.c.bf16 %v153, %v152
    %v397 = vpack.c.bf16 %v155, %v154
    %v398 = vpack.c.bf16 %v157, %v156
    %v399 = vpack.c.bf16 %v159, %v158
    %v400 = vpack.c.bf16 %v161, %v160
    %v401 = vpack.c.bf16 %v163, %v162
    %v402 = vpack.c.bf16 %v165, %v164
    %v423 = vunpack.c.l.b16 %v66
    %v424 = vunpack.c.l.b16 %v67
    %v425 = vunpack.c.l.b16 %v68
    %v426 = vunpack.c.l.b16 %v69
    %v427 = vunpack.c.l.b16 %v70
    %v428 = vunpack.c.l.b16 %v71
    %v429 = vunpack.c.l.b16 %v72
    %v430 = vunpack.c.l.b16 %v73
    %v431 = vunpack.c.l.b16 %v74
    %v432 = vunpack.c.l.b16 %v75
    %v433 = vunpack.c.l.b16 %v76
    %v434 = vunpack.c.l.b16 %v77
    %v435 = vunpack.c.l.b16 %v78
    %v436 = vunpack.c.l.b16 %v79
    %v437 = vunpack.c.l.b16 %v80
    %v438 = vunpack.c.l.b16 %v81
    %v439 = vunpack.c.l.b16 %v82
    %v440 = vunpack.c.l.b16 %v83
    %v441 = vunpack.c.l.b16 %v84
    %v442 = vunpack.c.l.b16 %v85
    %v443 = vpack.c.b16 %v424, %v423
    %v444 = vpack.c.b16 %v426, %v425
    %v445 = vpack.c.b16 %v428, %v427
    %v446 = vpack.c.b16 %v430, %v429
    %v447 = vpack.c.b16 %v432, %v431
    %v448 = vpack.c.b16 %v434, %v433
    %v449 = vpack.c.b16 %v436, %v435
    %v450 = vpack.c.b16 %v438, %v437
    %v451 = vpack.c.b16 %v440, %v439
    %v452 = vpack.c.b16 %v442, %v441
    %463 = vmatprep.subr.bf16.mxu0 0
    %464 = vmatpush1.bf16.msra.mxu0 %v395
    %465 = vmatprep.subr.bf16.mxu0 0
    %466 = vmatpush1.bf16.msra.mxu0 %v396
    %467 = vmatprep.subr.bf16.mxu0 0
    %468 = vmatpush1.bf16.msra.mxu0 %v397
    %469 = vmatprep.subr.bf16.mxu0 0
    %470 = vmatpush1.bf16.msra.mxu0 %v398
    %471 = vmatprep.subr.bf16.mxu0 0
    %472 = vmatpush1.bf16.msra.mxu0 %v399
    %473 = vmatprep.subr.bf16.mxu0 0
    %474 = vmatpush1.bf16.msra.mxu0 %v400
    %475 = vmatprep.subr.bf16.mxu0 0
    %476 = vmatpush1.bf16.msra.mxu0 %v401
    %477 = vmatprep.subr.bf16.mxu0 0
    %478 = vmatpush1.bf16.msra.mxu0 %v402
    %479 = vmatprep.subr.bf16.mxu0 0
    %480 = vmatpush1.bf16.msra.mxu0 0
    %481 = vmatprep.subr.bf16.mxu0 0
    %482 = vmatpush1.bf16.msra.mxu0 0
    %483 = vmatprep.subr.bf16.mxu0 0
    %484 = vmatpush1.bf16.msra.mxu0 0
    %485 = vmatprep.subr.bf16.mxu0 0
    %486 = vmatpush1.bf16.msra.mxu0 0
    %487 = vmatprep.subr.bf16.mxu0 0
    %488 = vmatpush1.bf16.msra.mxu0 0
    %489 = vmatprep.subr.bf16.mxu0 0
    %490 = vmatpush1.bf16.msra.mxu0 0
    %491 = vmatprep.subr.bf16.mxu0 0
    %492 = vmatpush1.bf16.msra.mxu0 0
    %493 = vmatprep.subr.bf16.mxu0 0
    %494 = vmatpush1.bf16.msra.mxu0 0
    %495 = vmatprep.mubr.bf16.mxu0 0
    %496 = vmatmul.mubr.bf16.gmra.mrb[0].mxu0 %v443
    %v497 = vpop.f32.mrb[0].mxu0
    %v498 = vadd.f32 0.0, %v497
    %v499 = vpop.f32.mrb[0].mxu0
    %v500 = vpop.f32.mrb[0].mxu0
    %v501 = vadd.f32 0.0, %v500
    %v502 = vpop.f32.mrb[0].mxu0
    %503 = vmatprep.mubr.bf16.mxu0 0
    %504 = vmatmul.mubr.bf16.gmra.mrb[0].mxu0 %v444
    %v505 = vpop.f32.mrb[0].mxu0
    %v506 = vadd.f32 0.0, %v505
    %v507 = vpop.f32.mrb[0].mxu0
    %v508 = vpop.f32.mrb[0].mxu0
    %v509 = vadd.f32 0.0, %v508
    %v510 = vpop.f32.mrb[0].mxu0
    %511 = vmatprep.mubr.bf16.mxu0 0
    %512 = vmatmul.mubr.bf16.gmra.mrb[0].mxu0 %v445
    %v513 = vpop.f32.mrb[0].mxu0
    %v514 = vadd.f32 0.0, %v513
    %v515 = vpop.f32.mrb[0].mxu0
    %v516 = vpop.f32.mrb[0].mxu0
    %v517 = vadd.f32 0.0, %v516
    %v518 = vpop.f32.mrb[0].mxu0
    %519 = vmatprep.mubr.bf16.mxu0 0
    %520 = vmatmul.mubr.bf16.gmra.mrb[0].mxu0 %v446
    %v521 = vpop.f32.mrb[0].mxu0
    %v522 = vadd.f32 0.0, %v521
    %v523 = vpop.f32.mrb[0].mxu0
    %v524 = vpop.f32.mrb[0].mxu0
    %v525 = vadd.f32 0.0, %v524
    %v526 = vpop.f32.mrb[0].mxu0
    %527 = vmatprep.mubr.bf16.mxu0 0
    %528 = vmatmul.mubr.bf16.gmra.mrb[0].mxu0 %v447
    %v529 = vpop.f32.mrb[0].mxu0
    %v530 = vadd.f32 0.0, %v529
    %v531 = vpop.f32.mrb[0].mxu0
    %v532 = vpop.f32.mrb[0].mxu0
    %v533 = vadd.f32 0.0, %v532
    %v534 = vpop.f32.mrb[0].mxu0
    %535 = vmatprep.mubr.bf16.mxu0 0
    %536 = vmatmul.mubr.bf16.gmra.mrb[0].mxu0 %v448
    %v537 = vpop.f32.mrb[0].mxu0
    %v538 = vadd.f32 0.0, %v537
    %v539 = vpop.f32.mrb[0].mxu0
    %v540 = vpop.f32.mrb[0].mxu0
    %v541 = vadd.f32 0.0, %v540
    %v542 = vpop.f32.mrb[0].mxu0
    %543 = vmatprep.mubr.bf16.mxu0 0
    %544 = vmatmul.mubr.bf16.gmra.mrb[0].mxu0 %v449
    %v545 = vpop.f32.mrb[0].mxu0
    %v546 = vadd.f32 0.0, %v545
    %v547 = vpop.f32.mrb[0].mxu0
    %v548 = vpop.f32.mrb[0].mxu0
    %v549 = vadd.f32 0.0, %v548
    %v550 = vpop.f32.mrb[0].mxu0
    %551 = vmatprep.mubr.bf16.mxu0 0
    %552 = vmatmul.mubr.bf16.gmra.mrb[0].mxu0 %v450
    %v553 = vpop.f32.mrb[0].mxu0
    %v554 = vadd.f32 0.0, %v553
    %v555 = vpop.f32.mrb[0].mxu0
    %v556 = vpop.f32.mrb[0].mxu0
    %v557 = vadd.f32 0.0, %v556
    %v558 = vpop.f32.mrb[0].mxu0
    %559 = vmatprep.mubr.bf16.mxu0 0
    %560 = vmatmul.mubr.bf16.gmra.mrb[0].mxu0 %v451
    %v561 = vpop.f32.mrb[0].mxu0
    %v562 = vadd.f32 0.0, %v561
    %v563 = vpop.f32.mrb[0].mxu0
    %v564 = vpop.f32.mrb[0].mxu0
    %v565 = vadd.f32 0.0, %v564
    %v566 = vpop.f32.mrb[0].mxu0
    %567 = vmatprep.mubr.bf16.mxu0 0
    %568 = vmatmul.mubr.bf16.gmra.mrb[0].mxu0 %v452
    %v569 = vpop.f32.mrb[0].mxu0
    %v570 = vadd.f32 0.0, %v569
    %v571 = vpop.f32.mrb[0].mxu0
    %v572 = vpop.f32.mrb[0].mxu0
    %v573 = vadd.f32 0.0, %v572
    %v574 = vpop.f32.mrb[0].mxu0
    %575 = vdwg.mxu0
    %v576 = vpack.c.bf16 %v183, %v182
    %v577 = vpack.c.bf16 %v185, %v184
    %v578 = vpack.c.bf16 %v187, %v186
    %v579 = vpack.c.bf16 %v189, %v188
    %v580 = vpack.c.bf16 %v191, %v190
    %v581 = vpack.c.bf16 %v193, %v192
    %v582 = vpack.c.bf16 %v195, %v194
    %v583 = vpack.c.bf16 %v197, %v196
    %v584 = vpack.c.bf16 %v199, %v198
    %v585 = vpack.c.bf16 %v201, %v200
    %v586 = vpack.c.bf16 %v203, %v202
    %v587 = vpack.c.bf16 %v205, %v204
    %v588 = vpack.c.bf16 %v207, %v206
    %v589 = vpack.c.bf16 %v209, %v208
    %v590 = vpack.c.bf16 %v211, %v210
    %v591 = vpack.c.bf16 %v213, %v212
    %v624 = vunpack.c.l.b16 %v86
    %v625 = vunpack.c.h.b16 %v86
    %v626 = vunpack.c.l.b16 %v87
    %v627 = vunpack.c.h.b16 %v87
    %v628 = vunpack.c.l.b16 %v88
    %v629 = vunpack.c.h.b16 %v88
    %v630 = vunpack.c.l.b16 %v89
    %v631 = vunpack.c.h.b16 %v89
    %v632 = vunpack.c.l.b16 %v90
    %v633 = vunpack.c.h.b16 %v90
    %v634 = vunpack.c.l.b16 %v91
    %v635 = vunpack.c.h.b16 %v91
    %v636 = vunpack.c.l.b16 %v92
    %v637 = vunpack.c.h.b16 %v92
    %v638 = vunpack.c.l.b16 %v93
    %v639 = vunpack.c.h.b16 %v93
    %v640 = vunpack.c.l.b16 %v94
    %v641 = vunpack.c.h.b16 %v94
    %v642 = vunpack.c.l.b16 %v95
    %v643 = vunpack.c.h.b16 %v95
    %v644 = vunpack.c.l.b16 %v96
    %v645 = vunpack.c.h.b16 %v96
    %v646 = vunpack.c.l.b16 %v97
    %v647 = vunpack.c.h.b16 %v97
    %v648 = vunpack.c.l.b16 %v98
    %v649 = vunpack.c.h.b16 %v98
    %v650 = vunpack.c.l.b16 %v99
    %v651 = vunpack.c.h.b16 %v99
    %v652 = vunpack.c.l.b16 %v100
    %v653 = vunpack.c.h.b16 %v100
    %v654 = vunpack.c.l.b16 %v101
    %v655 = vunpack.c.h.b16 %v101
    %v656 = vunpack.c.l.b16 %v102
    %v657 = vunpack.c.h.b16 %v102
    %v658 = vunpack.c.l.b16 %v103
    %v659 = vunpack.c.h.b16 %v103
    %v660 = vunpack.c.l.b16 %v104
    %v661 = vunpack.c.h.b16 %v104
    %v662 = vunpack.c.l.b16 %v105
    %v663 = vunpack.c.h.b16 %v105
    %v664 = vunpack.c.l.b16 %v106
    %v665 = vunpack.c.h.b16 %v106
    %v666 = vunpack.c.l.b16 %v107
    %v667 = vunpack.c.h.b16 %v107
    %v668 = vunpack.c.l.b16 %v108
    %v669 = vunpack.c.h.b16 %v108
    %v670 = vunpack.c.l.b16 %v109
    %v671 = vunpack.c.h.b16 %v109
    %v672 = vunpack.c.l.b16 %v110
    %v673 = vunpack.c.h.b16 %v110
    %v674 = vunpack.c.l.b16 %v111
    %v675 = vunpack.c.h.b16 %v111
    %v676 = vunpack.c.l.b16 %v112
    %v677 = vunpack.c.h.b16 %v112
    %v678 = vunpack.c.l.b16 %v113
    %v679 = vunpack.c.h.b16 %v113
    %v680 = vunpack.c.l.b16 %v114
    %v681 = vunpack.c.h.b16 %v114
    %v682 = vunpack.c.l.b16 %v115
    %v683 = vunpack.c.h.b16 %v115
    %v684 = vunpack.c.l.b16 %v116
    %v685 = vunpack.c.h.b16 %v116
    %v686 = vunpack.c.l.b16 %v117
    %v687 = vunpack.c.h.b16 %v117
    %v688 = vpack.c.b16 %v626, %v624
    %v689 = vpack.c.b16 %v627, %v625
    %v690 = vpack.c.b16 %v630, %v628
    %v691 = vpack.c.b16 %v631, %v629
    %v692 = vpack.c.b16 %v634, %v632
    %v693 = vpack.c.b16 %v635, %v633
    %v694 = vpack.c.b16 %v638, %v636
    %v695 = vpack.c.b16 %v639, %v637
    %v696 = vpack.c.b16 %v642, %v640
    %v697 = vpack.c.b16 %v643, %v641
    %v698 = vpack.c.b16 %v646, %v644
    %v699 = vpack.c.b16 %v647, %v645
    %v700 = vpack.c.b16 %v650, %v648
    %v701 = vpack.c.b16 %v651, %v649
    %v702 = vpack.c.b16 %v654, %v652
    %v703 = vpack.c.b16 %v655, %v653
    %v704 = vpack.c.b16 %v658, %v656
    %v705 = vpack.c.b16 %v659, %v657
    %v706 = vpack.c.b16 %v662, %v660
    %v707 = vpack.c.b16 %v663, %v661
    %v708 = vpack.c.b16 %v666, %v664
    %v709 = vpack.c.b16 %v667, %v665
    %v710 = vpack.c.b16 %v670, %v668
    %v711 = vpack.c.b16 %v671, %v669
    %v712 = vpack.c.b16 %v674, %v672
    %v713 = vpack.c.b16 %v675, %v673
    %v714 = vpack.c.b16 %v678, %v676
    %v715 = vpack.c.b16 %v679, %v677
    %v716 = vpack.c.b16 %v682, %v680
    %v717 = vpack.c.b16 %v683, %v681
    %v718 = vpack.c.b16 %v686, %v684
    %v719 = vpack.c.b16 %v687, %v685
    %752 = vmatprep.subr.bf16.mxu0 0
    %753 = vmatpush1.bf16.msra.mxu0 %v576
    %754 = vmatprep.subr.bf16.mxu0 0
    %755 = vmatpush1.bf16.msra.mxu0 %v577
    %756 = vmatprep.subr.bf16.mxu0 0
    %757 = vmatpush1.bf16.msra.mxu0 %v578
    %758 = vmatprep.subr.bf16.mxu0 0
    %759 = vmatpush1.bf16.msra.mxu0 %v579
    %760 = vmatprep.subr.bf16.mxu0 0
    %761 = vmatpush1.bf16.msra.mxu0 %v580
    %762 = vmatprep.subr.bf16.mxu0 0
    %763 = vmatpush1.bf16.msra.mxu0 %v581
    %764 = vmatprep.subr.bf16.mxu0 0
    %765 = vmatpush1.bf16.msra.mxu0 %v582
    %766 = vmatprep.subr.bf16.mxu0 0
    %767 = vmatpush1.bf16.msra.mxu0 %v583
    %768 = vmatprep.subr.bf16.mxu0 0
    %769 = vmatpush1.bf16.msra.mxu0 %v584
    %770 = vmatprep.subr.bf16.mxu0 0
    %771 = vmatpush1.bf16.msra.mxu0 %v585
    %772 = vmatprep.subr.bf16.mxu0 0
    %773 = vmatpush1.bf16.msra.mxu0 %v586
    %774 = vmatprep.subr.bf16.mxu0 0
    %775 = vmatpush1.bf16.msra.mxu0 %v587
    %776 = vmatprep.subr.bf16.mxu0 0
    %777 = vmatpush1.bf16.msra.mxu0 %v588
    %778 = vmatprep.subr.bf16.mxu0 0
    %779 = vmatpush1.bf16.msra.mxu0 %v589
    %780 = vmatprep.subr.bf16.mxu0 0
    %781 = vmatpush1.bf16.msra.mxu0 %v590
    %782 = vmatprep.subr.bf16.mxu0 0
    %783 = vmatpush1.bf16.msra.mxu0 %v591
    %784 = vmatprep.mubr.bf16.mxu0 %v689
    %785 = vmatmul.mubr.bf16.gmra.mrb[0].mxu0 %v688
    %v786 = vpop.f32.mrb[0].mxu0
    %v787 = vadd.f32 0.0, %v786
    %v788 = vpop.f32.mrb[0].mxu0
    %v789 = vpop.f32.mrb[0].mxu0
    %v790 = vadd.f32 0.0, %v789
    %v791 = vpop.f32.mrb[0].mxu0
    %792 = vmatprep.mubr.bf16.mxu0 %v691
    %793 = vmatmul.mubr.bf16.gmra.mrb[0].mxu0 %v690
    %v794 = vpop.f32.mrb[0].mxu0
    %v795 = vadd.f32 0.0, %v794
    %v796 = vpop.f32.mrb[0].mxu0
    %v797 = vpop.f32.mrb[0].mxu0
    %v798 = vadd.f32 0.0, %v797
    %v799 = vpop.f32.mrb[0].mxu0
    %800 = vmatprep.mubr.bf16.mxu0 %v693
    %801 = vmatmul.mubr.bf16.gmra.mrb[0].mxu0 %v692
    %v802 = vpop.f32.mrb[0].mxu0
    %v803 = vadd.f32 0.0, %v802
    %v804 = vpop.f32.mrb[0].mxu0
    %v805 = vpop.f32.mrb[0].mxu0
    %v806 = vadd.f32 0.0, %v805
    %v807 = vpop.f32.mrb[0].mxu0
    %808 = vmatprep.mubr.bf16.mxu0 %v695
    %809 = vmatmul.mubr.bf16.gmra.mrb[0].mxu0 %v694
    %v810 = vpop.f32.mrb[0].mxu0
    %v811 = vadd.f32 0.0, %v810
    %v812 = vpop.f32.mrb[0].mxu0
    %v813 = vpop.f32.mrb[0].mxu0
    %v814 = vadd.f32 0.0, %v813
    %v815 = vpop.f32.mrb[0].mxu0
    %816 = vmatprep.mubr.bf16.mxu0 %v697
    %817 = vmatmul.mubr.bf16.gmra.mrb[0].mxu0 %v696
    %v818 = vpop.f32.mrb[0].mxu0
    %v819 = vadd.f32 0.0, %v818
    %v820 = vpop.f32.mrb[0].mxu0
    %v821 = vpop.f32.mrb[0].mxu0
    %v822 = vadd.f32 0.0, %v821
    %v823 = vpop.f32.mrb[0].mxu0
    %824 = vmatprep.mubr.bf16.mxu0 %v699
    %825 = vmatmul.mubr.bf16.gmra.mrb[0].mxu0 %v698
    %v826 = vpop.f32.mrb[0].mxu0
    %v827 = vadd.f32 0.0, %v826
    %v828 = vpop.f32.mrb[0].mxu0
    %v829 = vpop.f32.mrb[0].mxu0
    %v830 = vadd.f32 0.0, %v829
    %v831 = vpop.f32.mrb[0].mxu0
    %832 = vmatprep.mubr.bf16.mxu0 %v701
    %833 = vmatmul.mubr.bf16.gmra.mrb[0].mxu0 %v700
    %v834 = vpop.f32.mrb[0].mxu0
    %v835 = vadd.f32 0.0, %v834
    %v836 = vpop.f32.mrb[0].mxu0
    %v837 = vpop.f32.mrb[0].mxu0
    %v838 = vadd.f32 0.0, %v837
    %v839 = vpop.f32.mrb[0].mxu0
    %840 = vmatprep.mubr.bf16.mxu0 %v703
    %841 = vmatmul.mubr.bf16.gmra.mrb[0].mxu0 %v702
    %v842 = vpop.f32.mrb[0].mxu0
    %v843 = vadd.f32 0.0, %v842
    %v844 = vpop.f32.mrb[0].mxu0
    %v845 = vpop.f32.mrb[0].mxu0
    %v846 = vadd.f32 0.0, %v845
    %v847 = vpop.f32.mrb[0].mxu0
    %848 = vmatprep.mubr.bf16.mxu0 %v705
    %849 = vmatmul.mubr.bf16.gmra.mrb[0].mxu0 %v704
    %v850 = vpop.f32.mrb[0].mxu0
    %v851 = vadd.f32 0.0, %v850
    %v852 = vpop.f32.mrb[0].mxu0
    %v853 = vpop.f32.mrb[0].mxu0
    %v854 = vadd.f32 0.0, %v853
    %v855 = vpop.f32.mrb[0].mxu0
    %856 = vmatprep.mubr.bf16.mxu0 %v707
    %857 = vmatmul.mubr.bf16.gmra.mrb[0].mxu0 %v706
    %v858 = vpop.f32.mrb[0].mxu0
    %v859 = vadd.f32 0.0, %v858
    %v860 = vpop.f32.mrb[0].mxu0
    %v861 = vpop.f32.mrb[0].mxu0
    %v862 = vadd.f32 0.0, %v861
    %v863 = vpop.f32.mrb[0].mxu0
    %864 = vmatprep.mubr.bf16.mxu0 %v709
    %865 = vmatmul.mubr.bf16.gmra.mrb[0].mxu0 %v708
    %v866 = vpop.f32.mrb[0].mxu0
    %v867 = vadd.f32 0.0, %v866
    %v868 = vpop.f32.mrb[0].mxu0
    %v869 = vpop.f32.mrb[0].mxu0
    %v870 = vadd.f32 0.0, %v869
    %v871 = vpop.f32.mrb[0].mxu0
    %872 = vmatprep.mubr.bf16.mxu0 %v711
    %873 = vmatmul.mubr.bf16.gmra.mrb[0].mxu0 %v710
    %v874 = vpop.f32.mrb[0].mxu0
    %v875 = vadd.f32 0.0, %v874
    %v876 = vpop.f32.mrb[0].mxu0
    %v877 = vpop.f32.mrb[0].mxu0
    %v878 = vadd.f32 0.0, %v877
    %v879 = vpop.f32.mrb[0].mxu0
    %880 = vmatprep.mubr.bf16.mxu0 %v713
    %881 = vmatmul.mubr.bf16.gmra.mrb[0].mxu0 %v712
    %v882 = vpop.f32.mrb[0].mxu0
    %v883 = vadd.f32 0.0, %v882
    %v884 = vpop.f32.mrb[0].mxu0
    %v885 = vpop.f32.mrb[0].mxu0
    %v886 = vadd.f32 0.0, %v885
    %v887 = vpop.f32.mrb[0].mxu0
    %888 = vmatprep.mubr.bf16.mxu0 %v715
    %889 = vmatmul.mubr.bf16.gmra.mrb[0].mxu0 %v714
    %v890 = vpop.f32.mrb[0].mxu0
    %v891 = vadd.f32 0.0, %v890
    %v892 = vpop.f32.mrb[0].mxu0
    %v893 = vpop.f32.mrb[0].mxu0
    %v894 = vadd.f32 0.0, %v893
    %v895 = vpop.f32.mrb[0].mxu0
    %896 = vmatprep.mubr.bf16.mxu0 %v717
    %897 = vmatmul.mubr.bf16.gmra.mrb[0].mxu0 %v716
    %v898 = vpop.f32.mrb[0].mxu0
    %v899 = vadd.f32 0.0, %v898
    %v900 = vpop.f32.mrb[0].mxu0
    %v901 = vpop.f32.mrb[0].mxu0
    %v902 = vadd.f32 0.0, %v901
    %v903 = vpop.f32.mrb[0].mxu0
    %904 = vmatprep.mubr.bf16.mxu0 %v719
    %905 = vmatmul.mubr.bf16.gmra.mrb[0].mxu0 %v718
    %v906 = vpop.f32.mrb[0].mxu0
    %v907 = vadd.f32 0.0, %v906
    %v908 = vpop.f32.mrb[0].mxu0
    %v909 = vpop.f32.mrb[0].mxu0
    %v910 = vadd.f32 0.0, %v909
    %v911 = vpop.f32.mrb[0].mxu0
    %912 = vdwg.mxu0
    %v913 = vpack.c.bf16 %v384, %v381
    %v914 = vpack.c.bf16 %v392, %v389
    %v915 = vpack.c.bf16 %v565, %v562
    %v916 = vpack.c.bf16 %v573, %v570
    %v949 = vunpack.c.l.b16 %v118
    %v950 = vunpack.c.l.b16 %v119
    %v951 = vunpack.c.l.b16 %v120
    %v952 = vunpack.c.l.b16 %v121
    %v953 = vunpack.c.l.b16 %v122
    %v954 = vunpack.c.l.b16 %v123
    %v955 = vunpack.c.l.b16 %v124
    %v956 = vunpack.c.l.b16 %v125
    %v957 = vunpack.c.l.b16 %v126
    %v958 = vunpack.c.l.b16 %v127
    %v959 = vunpack.c.l.b16 %v128
    %v960 = vunpack.c.l.b16 %v129
    %v961 = vunpack.c.l.b16 %v130
    %v962 = vunpack.c.l.b16 %v131
    %v963 = vunpack.c.l.b16 %v132
    %v964 = vunpack.c.l.b16 %v133
    %v965 = vunpack.c.l.b16 %v134
    %v966 = vunpack.c.l.b16 %v135
    %v967 = vunpack.c.l.b16 %v136
    %v968 = vunpack.c.l.b16 %v137
    %v969 = vunpack.c.l.b16 %v138
    %v970 = vunpack.c.l.b16 %v139
    %v971 = vunpack.c.l.b16 %v140
    %v972 = vunpack.c.l.b16 %v141
    %v973 = vunpack.c.l.b16 %v142
    %v974 = vunpack.c.l.b16 %v143
    %v975 = vunpack.c.l.b16 %v144
    %v976 = vunpack.c.l.b16 %v145
    %v977 = vunpack.c.l.b16 %v146
    %v978 = vunpack.c.l.b16 %v147
    %v979 = vunpack.c.l.b16 %v148
    %v980 = vunpack.c.l.b16 %v149
    %v981 = vpack.c.b16 %v950, %v949
    %v982 = vpack.c.b16 %v952, %v951
    %v983 = vpack.c.b16 %v954, %v953
    %v984 = vpack.c.b16 %v956, %v955
    %v985 = vpack.c.b16 %v958, %v957
    %v986 = vpack.c.b16 %v960, %v959
    %v987 = vpack.c.b16 %v962, %v961
    %v988 = vpack.c.b16 %v964, %v963
    %v989 = vpack.c.b16 %v966, %v965
    %v990 = vpack.c.b16 %v968, %v967
    %v991 = vpack.c.b16 %v970, %v969
    %v992 = vpack.c.b16 %v972, %v971
    %v993 = vpack.c.b16 %v974, %v973
    %v994 = vpack.c.b16 %v976, %v975
    %v995 = vpack.c.b16 %v978, %v977
    %v996 = vpack.c.b16 %v980, %v979
    %vm997 = vcmask 523264
    %v999 = vsel %vm997, %v981, 0
    %v1002 = vsel %vm997, %v982, 0
    %v1005 = vsel %vm997, %v983, 0
    %v1008 = vsel %vm997, %v984, 0
    %v1011 = vsel %vm997, %v985, 0
    %v1014 = vsel %vm997, %v986, 0
    %v1017 = vsel %vm997, %v987, 0
    %v1020 = vsel %vm997, %v988, 0
    %v1023 = vsel %vm997, %v989, 0
    %v1026 = vsel %vm997, %v990, 0
    %v1029 = vsel %vm997, %v991, 0
    %v1032 = vsel %vm997, %v992, 0
    %v1035 = vsel %vm997, %v993, 0
    %v1038 = vsel %vm997, %v994, 0
    %v1041 = vsel %vm997, %v995, 0
    %v1044 = vsel %vm997, %v996, 0
    %1046 = vmatprep.subr.bf16.mxu0 0
    %1047 = vmatpush1.bf16.msra.mxu0 %v913
    %1048 = vmatprep.subr.bf16.mxu0 0
    %1049 = vmatpush1.bf16.msra.mxu0 %v914
    %1050 = vmatprep.subr.bf16.mxu0 0
    %1051 = vmatpush1.bf16.msra.mxu0 %v915
    %1052 = vmatprep.subr.bf16.mxu0 0
    %1053 = vmatpush1.bf16.msra.mxu0 %v916
    %1054 = vmatprep.subr.bf16.mxu0 0
    %1055 = vmatpush1.bf16.msra.mxu0 0
    %1056 = vmatprep.subr.bf16.mxu0 0
    %1057 = vmatpush1.bf16.msra.mxu0 0
    %1058 = vmatprep.subr.bf16.mxu0 0
    %1059 = vmatpush1.bf16.msra.mxu0 0
    %1060 = vmatprep.subr.bf16.mxu0 0
    %1061 = vmatpush1.bf16.msra.mxu0 0
    %1062 = vmatprep.subr.bf16.mxu0 0
    %1063 = vmatpush1.bf16.msra.mxu0 0
    %1064 = vmatprep.subr.bf16.mxu0 0
    %1065 = vmatpush1.bf16.msra.mxu0 0
    %1066 = vmatprep.subr.bf16.mxu0 0
    %1067 = vmatpush1.bf16.msra.mxu0 0
    %1068 = vmatprep.subr.bf16.mxu0 0
    %1069 = vmatpush1.bf16.msra.mxu0 0
    %1070 = vmatprep.subr.bf16.mxu0 0
    %1071 = vmatpush1.bf16.msra.mxu0 0
    %1072 = vmatprep.subr.bf16.mxu0 0
    %1073 = vmatpush1.bf16.msra.mxu0 0
    %1074 = vmatprep.subr.bf16.mxu0 0
    %1075 = vmatpush1.bf16.msra.mxu0 0
    %1076 = vmatprep.subr.bf16.mxu0 0
    %1077 = vmatpush1.bf16.msra.mxu0 0
    %1078 = vmatprep.mubr.bf16.mxu0 0
    %1079 = vmatmul.mubr.bf16.gmra.mrb[0].mxu0 %v999
    %v1080 = vpop.f32.mrb[0].mxu0
    %v1081 = vadd.f32 0.0, %v1080
    %v1082 = vpop.f32.mrb[0].mxu0
    %v1083 = vpop.f32.mrb[0].mxu0
    %v1084 = vadd.f32 0.0, %v1083
    %v1085 = vpop.f32.mrb[0].mxu0
    %1086 = vmatprep.mubr.bf16.mxu0 0
    %1087 = vmatmul.mubr.bf16.gmra.mrb[0].mxu0 %v1002
    %v1088 = vpop.f32.mrb[0].mxu0
    %v1089 = vadd.f32 0.0, %v1088
    %v1090 = vpop.f32.mrb[0].mxu0
    %v1091 = vpop.f32.mrb[0].mxu0
    %v1092 = vadd.f32 0.0, %v1091
    %v1093 = vpop.f32.mrb[0].mxu0
    %1094 = vmatprep.mubr.bf16.mxu0 0
    %1095 = vmatmul.mubr.bf16.gmra.mrb[0].mxu0 %v1005
    %v1096 = vpop.f32.mrb[0].mxu0
    %v1097 = vadd.f32 0.0, %v1096
    %v1098 = vpop.f32.mrb[0].mxu0
    %v1099 = vpop.f32.mrb[0].mxu0
    %v1100 = vadd.f32 0.0, %v1099
    %v1101 = vpop.f32.mrb[0].mxu0
    %1102 = vmatprep.mubr.bf16.mxu0 0
    %1103 = vmatmul.mubr.bf16.gmra.mrb[0].mxu0 %v1008
    %v1104 = vpop.f32.mrb[0].mxu0
    %v1105 = vadd.f32 0.0, %v1104
    %v1106 = vpop.f32.mrb[0].mxu0
    %v1107 = vpop.f32.mrb[0].mxu0
    %v1108 = vadd.f32 0.0, %v1107
    %v1109 = vpop.f32.mrb[0].mxu0
    %1110 = vmatprep.mubr.bf16.mxu0 0
    %1111 = vmatmul.mubr.bf16.gmra.mrb[0].mxu0 %v1011
    %v1112 = vpop.f32.mrb[0].mxu0
    %v1113 = vadd.f32 0.0, %v1112
    %v1114 = vpop.f32.mrb[0].mxu0
    %v1115 = vpop.f32.mrb[0].mxu0
    %v1116 = vadd.f32 0.0, %v1115
    %v1117 = vpop.f32.mrb[0].mxu0
    %1118 = vmatprep.mubr.bf16.mxu0 0
    %1119 = vmatmul.mubr.bf16.gmra.mrb[0].mxu0 %v1014
    %v1120 = vpop.f32.mrb[0].mxu0
    %v1121 = vadd.f32 0.0, %v1120
    %v1122 = vpop.f32.mrb[0].mxu0
    %v1123 = vpop.f32.mrb[0].mxu0
    %v1124 = vadd.f32 0.0, %v1123
    %v1125 = vpop.f32.mrb[0].mxu0
    %1126 = vmatprep.mubr.bf16.mxu0 0
    %1127 = vmatmul.mubr.bf16.gmra.mrb[0].mxu0 %v1017
    %v1128 = vpop.f32.mrb[0].mxu0
    %v1129 = vadd.f32 0.0, %v1128
    %v1130 = vpop.f32.mrb[0].mxu0
    %v1131 = vpop.f32.mrb[0].mxu0
    %v1132 = vadd.f32 0.0, %v1131
    %v1133 = vpop.f32.mrb[0].mxu0
    %1134 = vmatprep.mubr.bf16.mxu0 0
    %1135 = vmatmul.mubr.bf16.gmra.mrb[0].mxu0 %v1020
    %v1136 = vpop.f32.mrb[0].mxu0
    %v1137 = vadd.f32 0.0, %v1136
    %v1138 = vpop.f32.mrb[0].mxu0
    %v1139 = vpop.f32.mrb[0].mxu0
    %v1140 = vadd.f32 0.0, %v1139
    %v1141 = vpop.f32.mrb[0].mxu0
    %1142 = vmatprep.mubr.bf16.mxu0 0
    %1143 = vmatmul.mubr.bf16.gmra.mrb[0].mxu0 %v1023
    %v1144 = vpop.f32.mrb[0].mxu0
    %v1145 = vadd.f32 0.0, %v1144
    %v1146 = vpop.f32.mrb[0].mxu0
    %v1147 = vpop.f32.mrb[0].mxu0
    %v1148 = vadd.f32 0.0, %v1147
    %v1149 = vpop.f32.mrb[0].mxu0
    %1150 = vmatprep.mubr.bf16.mxu0 0
    %1151 = vmatmul.mubr.bf16.gmra.mrb[0].mxu0 %v1026
    %v1152 = vpop.f32.mrb[0].mxu0
    %v1153 = vadd.f32 0.0, %v1152
    %v1154 = vpop.f32.mrb[0].mxu0
    %v1155 = vpop.f32.mrb[0].mxu0
    %v1156 = vadd.f32 0.0, %v1155
    %v1157 = vpop.f32.mrb[0].mxu0
    %1158 = vmatprep.mubr.bf16.mxu0 0
    %1159 = vmatmul.mubr.bf16.gmra.mrb[0].mxu0 %v1029
    %v1160 = vpop.f32.mrb[0].mxu0
    %v1161 = vadd.f32 0.0, %v1160
    %v1162 = vpop.f32.mrb[0].mxu0
    %v1163 = vpop.f32.mrb[0].mxu0
    %v1164 = vadd.f32 0.0, %v1163
    %v1165 = vpop.f32.mrb[0].mxu0
    %1166 = vmatprep.mubr.bf16.mxu0 0
    %1167 = vmatmul.mubr.bf16.gmra.mrb[0].mxu0 %v1032
    %v1168 = vpop.f32.mrb[0].mxu0
    %v1169 = vadd.f32 0.0, %v1168
    %v1170 = vpop.f32.mrb[0].mxu0
    %v1171 = vpop.f32.mrb[0].mxu0
    %v1172 = vadd.f32 0.0, %v1171
    %v1173 = vpop.f32.mrb[0].mxu0
    %1174 = vmatprep.mubr.bf16.mxu0 0
    %1175 = vmatmul.mubr.bf16.gmra.mrb[0].mxu0 %v1035
    %v1176 = vpop.f32.mrb[0].mxu0
    %v1177 = vadd.f32 0.0, %v1176
    %v1178 = vpop.f32.mrb[0].mxu0
    %v1179 = vpop.f32.mrb[0].mxu0
    %v1180 = vadd.f32 0.0, %v1179
    %v1181 = vpop.f32.mrb[0].mxu0
    %1182 = vmatprep.mubr.bf16.mxu0 0
    %1183 = vmatmul.mubr.bf16.gmra.mrb[0].mxu0 %v1038
    %v1184 = vpop.f32.mrb[0].mxu0
    %v1185 = vadd.f32 0.0, %v1184
    %v1186 = vpop.f32.mrb[0].mxu0
    %v1187 = vpop.f32.mrb[0].mxu0
    %v1188 = vadd.f32 0.0, %v1187
    %v1189 = vpop.f32.mrb[0].mxu0
    %1190 = vmatprep.mubr.bf16.mxu0 0
    %1191 = vmatmul.mubr.bf16.gmra.mrb[0].mxu0 %v1041
    %v1192 = vpop.f32.mrb[0].mxu0
    %v1193 = vadd.f32 0.0, %v1192
    %v1194 = vpop.f32.mrb[0].mxu0
    %v1195 = vpop.f32.mrb[0].mxu0
    %v1196 = vadd.f32 0.0, %v1195
    %v1197 = vpop.f32.mrb[0].mxu0
    %1198 = vmatprep.mubr.bf16.mxu0 0
    %1199 = vmatmul.mubr.bf16.gmra.mrb[0].mxu0 %v1044
    %v1200 = vpop.f32.mrb[0].mxu0
    %v1201 = vadd.f32 0.0, %v1200
    %v1202 = vpop.f32.mrb[0].mxu0
    %v1203 = vpop.f32.mrb[0].mxu0
    %v1204 = vadd.f32 0.0, %v1203
    %v1205 = vpop.f32.mrb[0].mxu0
    %1206 = vdwg.mxu0
    %v1207 = vadd.f32 %v150, %v1081
    %v1208 = vadd.f32 %v151, %v1084
    %v1209 = vadd.f32 %v152, %v1089
    %v1210 = vadd.f32 %v153, %v1092
    %v1211 = vadd.f32 %v154, %v1097
    %v1212 = vadd.f32 %v155, %v1100
    %v1213 = vadd.f32 %v156, %v1105
    %v1214 = vadd.f32 %v157, %v1108
    %v1215 = vadd.f32 %v158, %v1113
    %v1216 = vadd.f32 %v159, %v1116
    %v1217 = vadd.f32 %v160, %v1121
    %v1218 = vadd.f32 %v161, %v1124
    %v1219 = vadd.f32 %v162, %v1129
    %v1220 = vadd.f32 %v163, %v1132
    %v1221 = vadd.f32 %v164, %v1137
    %v1222 = vadd.f32 %v165, %v1140
    %v1223 = vadd.f32 %v166, %v1145
    %v1224 = vadd.f32 %v167, %v1148
    %v1225 = vadd.f32 %v168, %v1153
    %v1226 = vadd.f32 %v169, %v1156
    %v1227 = vadd.f32 %v170, %v1161
    %v1228 = vadd.f32 %v171, %v1164
    %v1229 = vadd.f32 %v172, %v1169
    %v1230 = vadd.f32 %v173, %v1172
    %v1231 = vadd.f32 %v174, %v1177
    %v1232 = vadd.f32 %v175, %v1180
    %v1233 = vadd.f32 %v176, %v1185
    %v1234 = vadd.f32 %v177, %v1188
    %v1235 = vadd.f32 %v178, %v1193
    %v1236 = vadd.f32 %v179, %v1196
    %v1237 = vadd.f32 %v180, %v1201
    %v1238 = vadd.f32 %v181, %v1204
    %v1239 = vadd.f32 %v150, %v317
    %v1240 = vadd.f32 %v151, %v320
    %v1241 = vadd.f32 %v152, %v325
    %v1242 = vadd.f32 %v153, %v328
    %v1243 = vadd.f32 %v154, %v333
    %v1244 = vadd.f32 %v155, %v336
    %v1245 = vadd.f32 %v156, %v341
    %v1246 = vadd.f32 %v157, %v344
    %v1247 = vadd.f32 %v158, %v349
    %v1248 = vadd.f32 %v159, %v352
    %v1249 = vadd.f32 %v160, %v357
    %v1250 = vadd.f32 %v161, %v360
    %v1251 = vadd.f32 %v162, %v365
    %v1252 = vadd.f32 %v163, %v368
    %v1253 = vadd.f32 %v164, %v373
    %v1254 = vadd.f32 %v165, %v376
    %v1255 = vadd.f32 %v166, %v498
    %v1256 = vadd.f32 %v167, %v501
    %v1257 = vadd.f32 %v168, %v506
    %v1258 = vadd.f32 %v169, %v509
    %v1259 = vadd.f32 %v170, %v514
    %v1260 = vadd.f32 %v171, %v517
    %v1261 = vadd.f32 %v172, %v522
    %v1262 = vadd.f32 %v173, %v525
    %v1263 = vadd.f32 %v174, %v530
    %v1264 = vadd.f32 %v175, %v533
    %v1265 = vadd.f32 %v176, %v538
    %v1266 = vadd.f32 %v177, %v541
    %v1267 = vadd.f32 %v178, %v546
    %v1268 = vadd.f32 %v179, %v549
    %v1269 = vadd.f32 %v180, %v554
    %v1270 = vadd.f32 %v181, %v557
    %v1271 = vadd.f32 %v182, %v787
    %v1272 = vadd.f32 %v183, %v790
    %v1273 = vadd.f32 %v184, %v795
    %v1274 = vadd.f32 %v185, %v798
    %v1275 = vadd.f32 %v186, %v803
    %v1276 = vadd.f32 %v187, %v806
    %v1277 = vadd.f32 %v188, %v811
    %v1278 = vadd.f32 %v189, %v814
    %v1279 = vadd.f32 %v190, %v819
    %v1280 = vadd.f32 %v191, %v822
    %v1281 = vadd.f32 %v192, %v827
    %v1282 = vadd.f32 %v193, %v830
    %v1283 = vadd.f32 %v194, %v835
    %v1284 = vadd.f32 %v195, %v838
    %v1285 = vadd.f32 %v196, %v843
    %v1286 = vadd.f32 %v197, %v846
    %v1287 = vadd.f32 %v198, %v851
    %v1288 = vadd.f32 %v199, %v854
    %v1289 = vadd.f32 %v200, %v859
    %v1290 = vadd.f32 %v201, %v862
    %v1291 = vadd.f32 %v202, %v867
    %v1292 = vadd.f32 %v203, %v870
    %v1293 = vadd.f32 %v204, %v875
    %v1294 = vadd.f32 %v205, %v878
    %v1295 = vadd.f32 %v206, %v883
    %v1296 = vadd.f32 %v207, %v886
    %v1297 = vadd.f32 %v208, %v891
    %v1298 = vadd.f32 %v209, %v894
    %v1299 = vadd.f32 %v210, %v899
    %v1300 = vadd.f32 %v211, %v902
    %v1301 = vadd.f32 %v212, %v907
    %v1302 = vadd.f32 %v213, %v910
    %v1303 = vpack.c.bf16 %v501, %v498
    %v1304 = vpack.c.bf16 %v509, %v506
    %v1305 = vpack.c.bf16 %v517, %v514
    %v1306 = vpack.c.bf16 %v525, %v522
    %v1307 = vpack.c.bf16 %v533, %v530
    %v1308 = vpack.c.bf16 %v541, %v538
    %v1309 = vpack.c.bf16 %v549, %v546
    %v1310 = vpack.c.bf16 %v557, %v554
    %1311 = vmatprep.subr.bf16.mxu0 0
    %1312 = vmatpush1.bf16.msra.mxu0 %v1303
    %1313 = vmatprep.subr.bf16.mxu0 0
    %1314 = vmatpush1.bf16.msra.mxu0 %v1304
    %1315 = vmatprep.subr.bf16.mxu0 0
    %1316 = vmatpush1.bf16.msra.mxu0 %v1305
    %1317 = vmatprep.subr.bf16.mxu0 0
    %1318 = vmatpush1.bf16.msra.mxu0 %v1306
    %1319 = vmatprep.subr.bf16.mxu0 0
    %1320 = vmatpush1.bf16.msra.mxu0 %v1307
    %1321 = vmatprep.subr.bf16.mxu0 0
    %1322 = vmatpush1.bf16.msra.mxu0 %v1308
    %1323 = vmatprep.subr.bf16.mxu0 0
    %1324 = vmatpush1.bf16.msra.mxu0 %v1309
    %1325 = vmatprep.subr.bf16.mxu0 0
    %1326 = vmatpush1.bf16.msra.mxu0 %v1310
    %1327 = vmatprep.subr.bf16.mxu0 0
    %1328 = vmatpush1.bf16.msra.mxu0 0
    %1329 = vmatprep.subr.bf16.mxu0 0
    %1330 = vmatpush1.bf16.msra.mxu0 0
    %1331 = vmatprep.subr.bf16.mxu0 0
    %1332 = vmatpush1.bf16.msra.mxu0 0
    %1333 = vmatprep.subr.bf16.mxu0 0
    %1334 = vmatpush1.bf16.msra.mxu0 0
    %1335 = vmatprep.subr.bf16.mxu0 0
    %1336 = vmatpush1.bf16.msra.mxu0 0
    %1337 = vmatprep.subr.bf16.mxu0 0
    %1338 = vmatpush1.bf16.msra.mxu0 0
    %1339 = vmatprep.subr.bf16.mxu0 0
    %1340 = vmatpush1.bf16.msra.mxu0 0
    %1341 = vmatprep.subr.bf16.mxu0 0
    %1342 = vmatpush1.bf16.msra.mxu0 0
    %1343 = vmatprep.mubr.bf16.mxu0 0
    %1344 = vmatmul.mubr.bf16.gmra.mrb[0].mxu0 %v262
    %v1345 = vpop.f32.mrb[0].mxu0
    %v1346 = vadd.f32 0.0, %v1345
    %v1347 = vpop.f32.mrb[0].mxu0
    %v1348 = vpop.f32.mrb[0].mxu0
    %v1349 = vadd.f32 0.0, %v1348
    %v1350 = vpop.f32.mrb[0].mxu0
    %1351 = vmatprep.mubr.bf16.mxu0 0
    %1352 = vmatmul.mubr.bf16.gmra.mrb[0].mxu0 %v263
    %v1353 = vpop.f32.mrb[0].mxu0
    %v1354 = vadd.f32 0.0, %v1353
    %v1355 = vpop.f32.mrb[0].mxu0
    %v1356 = vpop.f32.mrb[0].mxu0
    %v1357 = vadd.f32 0.0, %v1356
    %v1358 = vpop.f32.mrb[0].mxu0
    %1359 = vmatprep.mubr.bf16.mxu0 0
    %1360 = vmatmul.mubr.bf16.gmra.mrb[0].mxu0 %v264
    %v1361 = vpop.f32.mrb[0].mxu0
    %v1362 = vadd.f32 0.0, %v1361
    %v1363 = vpop.f32.mrb[0].mxu0
    %v1364 = vpop.f32.mrb[0].mxu0
    %v1365 = vadd.f32 0.0, %v1364
    %v1366 = vpop.f32.mrb[0].mxu0
    %1367 = vmatprep.mubr.bf16.mxu0 0
    %1368 = vmatmul.mubr.bf16.gmra.mrb[0].mxu0 %v265
    %v1369 = vpop.f32.mrb[0].mxu0
    %v1370 = vadd.f32 0.0, %v1369
    %v1371 = vpop.f32.mrb[0].mxu0
    %v1372 = vpop.f32.mrb[0].mxu0
    %v1373 = vadd.f32 0.0, %v1372
    %v1374 = vpop.f32.mrb[0].mxu0
    %1375 = vmatprep.mubr.bf16.mxu0 0
    %1376 = vmatmul.mubr.bf16.gmra.mrb[0].mxu0 %v266
    %v1377 = vpop.f32.mrb[0].mxu0
    %v1378 = vadd.f32 0.0, %v1377
    %v1379 = vpop.f32.mrb[0].mxu0
    %v1380 = vpop.f32.mrb[0].mxu0
    %v1381 = vadd.f32 0.0, %v1380
    %v1382 = vpop.f32.mrb[0].mxu0
    %1383 = vmatprep.mubr.bf16.mxu0 0
    %1384 = vmatmul.mubr.bf16.gmra.mrb[0].mxu0 %v267
    %v1385 = vpop.f32.mrb[0].mxu0
    %v1386 = vadd.f32 0.0, %v1385
    %v1387 = vpop.f32.mrb[0].mxu0
    %v1388 = vpop.f32.mrb[0].mxu0
    %v1389 = vadd.f32 0.0, %v1388
    %v1390 = vpop.f32.mrb[0].mxu0
    %1391 = vmatprep.mubr.bf16.mxu0 0
    %1392 = vmatmul.mubr.bf16.gmra.mrb[0].mxu0 %v268
    %v1393 = vpop.f32.mrb[0].mxu0
    %v1394 = vadd.f32 0.0, %v1393
    %v1395 = vpop.f32.mrb[0].mxu0
    %v1396 = vpop.f32.mrb[0].mxu0
    %v1397 = vadd.f32 0.0, %v1396
    %v1398 = vpop.f32.mrb[0].mxu0
    %1399 = vmatprep.mubr.bf16.mxu0 0
    %1400 = vmatmul.mubr.bf16.gmra.mrb[0].mxu0 %v269
    %v1401 = vpop.f32.mrb[0].mxu0
    %v1402 = vadd.f32 0.0, %v1401
    %v1403 = vpop.f32.mrb[0].mxu0
    %v1404 = vpop.f32.mrb[0].mxu0
    %v1405 = vadd.f32 0.0, %v1404
    %v1406 = vpop.f32.mrb[0].mxu0
    %1407 = vmatprep.mubr.bf16.mxu0 0
    %1408 = vmatmul.mubr.bf16.gmra.mrb[0].mxu0 %v270
    %v1409 = vpop.f32.mrb[0].mxu0
    %v1410 = vadd.f32 0.0, %v1409
    %v1411 = vpop.f32.mrb[0].mxu0
    %v1412 = vpop.f32.mrb[0].mxu0
    %v1413 = vadd.f32 0.0, %v1412
    %v1414 = vpop.f32.mrb[0].mxu0
    %1415 = vmatprep.mubr.bf16.mxu0 0
    %1416 = vmatmul.mubr.bf16.gmra.mrb[0].mxu0 %v271
    %v1417 = vpop.f32.mrb[0].mxu0
    %v1418 = vadd.f32 0.0, %v1417
    %v1419 = vpop.f32.mrb[0].mxu0
    %v1420 = vpop.f32.mrb[0].mxu0
    %v1421 = vadd.f32 0.0, %v1420
    %v1422 = vpop.f32.mrb[0].mxu0
    %1423 = vdwg.mxu0
    %v1424 = vpack.c.bf16 %v320, %v317
    %v1425 = vpack.c.bf16 %v328, %v325
    %v1426 = vpack.c.bf16 %v336, %v333
    %v1427 = vpack.c.bf16 %v344, %v341
    %v1428 = vpack.c.bf16 %v352, %v349
    %v1429 = vpack.c.bf16 %v360, %v357
    %v1430 = vpack.c.bf16 %v368, %v365
    %v1431 = vpack.c.bf16 %v376, %v373
    %1432 = vmatprep.subr.bf16.mxu0 0
    %1433 = vmatpush1.bf16.msra.mxu0 %v1424
    %1434 = vmatprep.subr.bf16.mxu0 0
    %1435 = vmatpush1.bf16.msra.mxu0 %v1425
    %1436 = vmatprep.subr.bf16.mxu0 0
    %1437 = vmatpush1.bf16.msra.mxu0 %v1426
    %1438 = vmatprep.subr.bf16.mxu0 0
    %1439 = vmatpush1.bf16.msra.mxu0 %v1427
    %1440 = vmatprep.subr.bf16.mxu0 0
    %1441 = vmatpush1.bf16.msra.mxu0 %v1428
    %1442 = vmatprep.subr.bf16.mxu0 0
    %1443 = vmatpush1.bf16.msra.mxu0 %v1429
    %1444 = vmatprep.subr.bf16.mxu0 0
    %1445 = vmatpush1.bf16.msra.mxu0 %v1430
    %1446 = vmatprep.subr.bf16.mxu0 0
    %1447 = vmatpush1.bf16.msra.mxu0 %v1431
    %1448 = vmatprep.subr.bf16.mxu0 0
    %1449 = vmatpush1.bf16.msra.mxu0 0
    %1450 = vmatprep.subr.bf16.mxu0 0
    %1451 = vmatpush1.bf16.msra.mxu0 0
    %1452 = vmatprep.subr.bf16.mxu0 0
    %1453 = vmatpush1.bf16.msra.mxu0 0
    %1454 = vmatprep.subr.bf16.mxu0 0
    %1455 = vmatpush1.bf16.msra.mxu0 0
    %1456 = vmatprep.subr.bf16.mxu0 0
    %1457 = vmatpush1.bf16.msra.mxu0 0
    %1458 = vmatprep.subr.bf16.mxu0 0
    %1459 = vmatpush1.bf16.msra.mxu0 0
    %1460 = vmatprep.subr.bf16.mxu0 0
    %1461 = vmatpush1.bf16.msra.mxu0 0
    %1462 = vmatprep.subr.bf16.mxu0 0
    %1463 = vmatpush1.bf16.msra.mxu0 0
    %1464 = vmatprep.mubr.bf16.mxu0 0
    %1465 = vmatmul.mubr.bf16.gmra.mrb[0].mxu0 %v443
    %v1466 = vpop.f32.mrb[0].mxu0
    %v1467 = vadd.f32 0.0, %v1466
    %v1468 = vpop.f32.mrb[0].mxu0
    %v1469 = vpop.f32.mrb[0].mxu0
    %v1470 = vadd.f32 0.0, %v1469
    %v1471 = vpop.f32.mrb[0].mxu0
    %1472 = vmatprep.mubr.bf16.mxu0 0
    %1473 = vmatmul.mubr.bf16.gmra.mrb[0].mxu0 %v444
    %v1474 = vpop.f32.mrb[0].mxu0
    %v1475 = vadd.f32 0.0, %v1474
    %v1476 = vpop.f32.mrb[0].mxu0
    %v1477 = vpop.f32.mrb[0].mxu0
    %v1478 = vadd.f32 0.0, %v1477
    %v1479 = vpop.f32.mrb[0].mxu0
    %1480 = vmatprep.mubr.bf16.mxu0 0
    %1481 = vmatmul.mubr.bf16.gmra.mrb[0].mxu0 %v445
    %v1482 = vpop.f32.mrb[0].mxu0
    %v1483 = vadd.f32 0.0, %v1482
    %v1484 = vpop.f32.mrb[0].mxu0
    %v1485 = vpop.f32.mrb[0].mxu0
    %v1486 = vadd.f32 0.0, %v1485
    %v1487 = vpop.f32.mrb[0].mxu0
    %1488 = vmatprep.mubr.bf16.mxu0 0
    %1489 = vmatmul.mubr.bf16.gmra.mrb[0].mxu0 %v446
    %v1490 = vpop.f32.mrb[0].mxu0
    %v1491 = vadd.f32 0.0, %v1490
    %v1492 = vpop.f32.mrb[0].mxu0
    %v1493 = vpop.f32.mrb[0].mxu0
    %v1494 = vadd.f32 0.0, %v1493
    %v1495 = vpop.f32.mrb[0].mxu0
    %1496 = vmatprep.mubr.bf16.mxu0 0
    %1497 = vmatmul.mubr.bf16.gmra.mrb[0].mxu0 %v447
    %v1498 = vpop.f32.mrb[0].mxu0
    %v1499 = vadd.f32 0.0, %v1498
    %v1500 = vpop.f32.mrb[0].mxu0
    %v1501 = vpop.f32.mrb[0].mxu0
    %v1502 = vadd.f32 0.0, %v1501
    %v1503 = vpop.f32.mrb[0].mxu0
    %1504 = vmatprep.mubr.bf16.mxu0 0
    %1505 = vmatmul.mubr.bf16.gmra.mrb[0].mxu0 %v448
    %v1506 = vpop.f32.mrb[0].mxu0
    %v1507 = vadd.f32 0.0, %v1506
    %v1508 = vpop.f32.mrb[0].mxu0
    %v1509 = vpop.f32.mrb[0].mxu0
    %v1510 = vadd.f32 0.0, %v1509
    %v1511 = vpop.f32.mrb[0].mxu0
    %1512 = vmatprep.mubr.bf16.mxu0 0
    %1513 = vmatmul.mubr.bf16.gmra.mrb[0].mxu0 %v449
    %v1514 = vpop.f32.mrb[0].mxu0
    %v1515 = vadd.f32 0.0, %v1514
    %v1516 = vpop.f32.mrb[0].mxu0
    %v1517 = vpop.f32.mrb[0].mxu0
    %v1518 = vadd.f32 0.0, %v1517
    %v1519 = vpop.f32.mrb[0].mxu0
    %1520 = vmatprep.mubr.bf16.mxu0 0
    %1521 = vmatmul.mubr.bf16.gmra.mrb[0].mxu0 %v450
    %v1522 = vpop.f32.mrb[0].mxu0
    %v1523 = vadd.f32 0.0, %v1522
    %v1524 = vpop.f32.mrb[0].mxu0
    %v1525 = vpop.f32.mrb[0].mxu0
    %v1526 = vadd.f32 0.0, %v1525
    %v1527 = vpop.f32.mrb[0].mxu0
    %1528 = vmatprep.mubr.bf16.mxu0 0
    %1529 = vmatmul.mubr.bf16.gmra.mrb[0].mxu0 %v451
    %v1530 = vpop.f32.mrb[0].mxu0
    %v1531 = vadd.f32 0.0, %v1530
    %v1532 = vpop.f32.mrb[0].mxu0
    %v1533 = vpop.f32.mrb[0].mxu0
    %v1534 = vadd.f32 0.0, %v1533
    %v1535 = vpop.f32.mrb[0].mxu0
    %1536 = vmatprep.mubr.bf16.mxu0 0
    %1537 = vmatmul.mubr.bf16.gmra.mrb[0].mxu0 %v452
    %v1538 = vpop.f32.mrb[0].mxu0
    %v1539 = vadd.f32 0.0, %v1538
    %v1540 = vpop.f32.mrb[0].mxu0
    %v1541 = vpop.f32.mrb[0].mxu0
    %v1542 = vadd.f32 0.0, %v1541
    %v1543 = vpop.f32.mrb[0].mxu0
    %1544 = vdwg.mxu0
    %v1545 = vpack.c.bf16 %v790, %v787
    %v1546 = vpack.c.bf16 %v798, %v795
    %v1547 = vpack.c.bf16 %v806, %v803
    %v1548 = vpack.c.bf16 %v814, %v811
    %v1549 = vpack.c.bf16 %v822, %v819
    %v1550 = vpack.c.bf16 %v830, %v827
    %v1551 = vpack.c.bf16 %v838, %v835
    %v1552 = vpack.c.bf16 %v846, %v843
    %v1553 = vpack.c.bf16 %v854, %v851
    %v1554 = vpack.c.bf16 %v862, %v859
    %v1555 = vpack.c.bf16 %v870, %v867
    %v1556 = vpack.c.bf16 %v878, %v875
    %v1557 = vpack.c.bf16 %v886, %v883
    %v1558 = vpack.c.bf16 %v894, %v891
    %v1559 = vpack.c.bf16 %v902, %v899
    %v1560 = vpack.c.bf16 %v910, %v907
    %1561 = vmatprep.subr.bf16.mxu0 0
    %1562 = vmatpush1.bf16.msra.mxu0 %v1545
    %1563 = vmatprep.subr.bf16.mxu0 0
    %1564 = vmatpush1.bf16.msra.mxu0 %v1546
    %1565 = vmatprep.subr.bf16.mxu0 0
    %1566 = vmatpush1.bf16.msra.mxu0 %v1547
    %1567 = vmatprep.subr.bf16.mxu0 0
    %1568 = vmatpush1.bf16.msra.mxu0 %v1548
    %1569 = vmatprep.subr.bf16.mxu0 0
    %1570 = vmatpush1.bf16.msra.mxu0 %v1549
    %1571 = vmatprep.subr.bf16.mxu0 0
    %1572 = vmatpush1.bf16.msra.mxu0 %v1550
    %1573 = vmatprep.subr.bf16.mxu0 0
    %1574 = vmatpush1.bf16.msra.mxu0 %v1551
    %1575 = vmatprep.subr.bf16.mxu0 0
    %1576 = vmatpush1.bf16.msra.mxu0 %v1552
    %1577 = vmatprep.subr.bf16.mxu0 0
    %1578 = vmatpush1.bf16.msra.mxu0 %v1553
    %1579 = vmatprep.subr.bf16.mxu0 0
    %1580 = vmatpush1.bf16.msra.mxu0 %v1554
    %1581 = vmatprep.subr.bf16.mxu0 0
    %1582 = vmatpush1.bf16.msra.mxu0 %v1555
    %1583 = vmatprep.subr.bf16.mxu0 0
    %1584 = vmatpush1.bf16.msra.mxu0 %v1556
    %1585 = vmatprep.subr.bf16.mxu0 0
    %1586 = vmatpush1.bf16.msra.mxu0 %v1557
    %1587 = vmatprep.subr.bf16.mxu0 0
    %1588 = vmatpush1.bf16.msra.mxu0 %v1558
    %1589 = vmatprep.subr.bf16.mxu0 0
    %1590 = vmatpush1.bf16.msra.mxu0 %v1559
    %1591 = vmatprep.subr.bf16.mxu0 0
    %1592 = vmatpush1.bf16.msra.mxu0 %v1560
    %1593 = vmatprep.mubr.bf16.mxu0 %v689
    %1594 = vmatmul.mubr.bf16.gmra.mrb[0].mxu0 %v688
    %v1595 = vpop.f32.mrb[0].mxu0
    %v1596 = vadd.f32 0.0, %v1595
    %v1597 = vpop.f32.mrb[0].mxu0
    %v1598 = vpop.f32.mrb[0].mxu0
    %v1599 = vadd.f32 0.0, %v1598
    %v1600 = vpop.f32.mrb[0].mxu0
    %1601 = vmatprep.mubr.bf16.mxu0 %v691
    %1602 = vmatmul.mubr.bf16.gmra.mrb[0].mxu0 %v690
    %v1603 = vpop.f32.mrb[0].mxu0
    %v1604 = vadd.f32 0.0, %v1603
    %v1605 = vpop.f32.mrb[0].mxu0
    %v1606 = vpop.f32.mrb[0].mxu0
    %v1607 = vadd.f32 0.0, %v1606
    %v1608 = vpop.f32.mrb[0].mxu0
    %1609 = vmatprep.mubr.bf16.mxu0 %v693
    %1610 = vmatmul.mubr.bf16.gmra.mrb[0].mxu0 %v692
    %v1611 = vpop.f32.mrb[0].mxu0
    %v1612 = vadd.f32 0.0, %v1611
    %v1613 = vpop.f32.mrb[0].mxu0
    %v1614 = vpop.f32.mrb[0].mxu0
    %v1615 = vadd.f32 0.0, %v1614
    %v1616 = vpop.f32.mrb[0].mxu0
    %1617 = vmatprep.mubr.bf16.mxu0 %v695
    %1618 = vmatmul.mubr.bf16.gmra.mrb[0].mxu0 %v694
    %v1619 = vpop.f32.mrb[0].mxu0
    %v1620 = vadd.f32 0.0, %v1619
    %v1621 = vpop.f32.mrb[0].mxu0
    %v1622 = vpop.f32.mrb[0].mxu0
    %v1623 = vadd.f32 0.0, %v1622
    %v1624 = vpop.f32.mrb[0].mxu0
    %1625 = vmatprep.mubr.bf16.mxu0 %v697
    %1626 = vmatmul.mubr.bf16.gmra.mrb[0].mxu0 %v696
    %v1627 = vpop.f32.mrb[0].mxu0
    %v1628 = vadd.f32 0.0, %v1627
    %v1629 = vpop.f32.mrb[0].mxu0
    %v1630 = vpop.f32.mrb[0].mxu0
    %v1631 = vadd.f32 0.0, %v1630
    %v1632 = vpop.f32.mrb[0].mxu0
    %1633 = vmatprep.mubr.bf16.mxu0 %v699
    %1634 = vmatmul.mubr.bf16.gmra.mrb[0].mxu0 %v698
    %v1635 = vpop.f32.mrb[0].mxu0
    %v1636 = vadd.f32 0.0, %v1635
    %v1637 = vpop.f32.mrb[0].mxu0
    %v1638 = vpop.f32.mrb[0].mxu0
    %v1639 = vadd.f32 0.0, %v1638
    %v1640 = vpop.f32.mrb[0].mxu0
    %1641 = vmatprep.mubr.bf16.mxu0 %v701
    %1642 = vmatmul.mubr.bf16.gmra.mrb[0].mxu0 %v700
    %v1643 = vpop.f32.mrb[0].mxu0
    %v1644 = vadd.f32 0.0, %v1643
    %v1645 = vpop.f32.mrb[0].mxu0
    %v1646 = vpop.f32.mrb[0].mxu0
    %v1647 = vadd.f32 0.0, %v1646
    %v1648 = vpop.f32.mrb[0].mxu0
    %1649 = vmatprep.mubr.bf16.mxu0 %v703
    %1650 = vmatmul.mubr.bf16.gmra.mrb[0].mxu0 %v702
    %v1651 = vpop.f32.mrb[0].mxu0
    %v1652 = vadd.f32 0.0, %v1651
    %v1653 = vpop.f32.mrb[0].mxu0
    %v1654 = vpop.f32.mrb[0].mxu0
    %v1655 = vadd.f32 0.0, %v1654
    %v1656 = vpop.f32.mrb[0].mxu0
    %1657 = vmatprep.mubr.bf16.mxu0 %v705
    %1658 = vmatmul.mubr.bf16.gmra.mrb[0].mxu0 %v704
    %v1659 = vpop.f32.mrb[0].mxu0
    %v1660 = vadd.f32 0.0, %v1659
    %v1661 = vpop.f32.mrb[0].mxu0
    %v1662 = vpop.f32.mrb[0].mxu0
    %v1663 = vadd.f32 0.0, %v1662
    %v1664 = vpop.f32.mrb[0].mxu0
    %1665 = vmatprep.mubr.bf16.mxu0 %v707
    %1666 = vmatmul.mubr.bf16.gmra.mrb[0].mxu0 %v706
    %v1667 = vpop.f32.mrb[0].mxu0
    %v1668 = vadd.f32 0.0, %v1667
    %v1669 = vpop.f32.mrb[0].mxu0
    %v1670 = vpop.f32.mrb[0].mxu0
    %v1671 = vadd.f32 0.0, %v1670
    %v1672 = vpop.f32.mrb[0].mxu0
    %1673 = vmatprep.mubr.bf16.mxu0 %v709
    %1674 = vmatmul.mubr.bf16.gmra.mrb[0].mxu0 %v708
    %v1675 = vpop.f32.mrb[0].mxu0
    %v1676 = vadd.f32 0.0, %v1675
    %v1677 = vpop.f32.mrb[0].mxu0
    %v1678 = vpop.f32.mrb[0].mxu0
    %v1679 = vadd.f32 0.0, %v1678
    %v1680 = vpop.f32.mrb[0].mxu0
    %1681 = vmatprep.mubr.bf16.mxu0 %v711
    %1682 = vmatmul.mubr.bf16.gmra.mrb[0].mxu0 %v710
    %v1683 = vpop.f32.mrb[0].mxu0
    %v1684 = vadd.f32 0.0, %v1683
    %v1685 = vpop.f32.mrb[0].mxu0
    %v1686 = vpop.f32.mrb[0].mxu0
    %v1687 = vadd.f32 0.0, %v1686
    %v1688 = vpop.f32.mrb[0].mxu0
    %1689 = vmatprep.mubr.bf16.mxu0 %v713
    %1690 = vmatmul.mubr.bf16.gmra.mrb[0].mxu0 %v712
    %v1691 = vpop.f32.mrb[0].mxu0
    %v1692 = vadd.f32 0.0, %v1691
    %v1693 = vpop.f32.mrb[0].mxu0
    %v1694 = vpop.f32.mrb[0].mxu0
    %v1695 = vadd.f32 0.0, %v1694
    %v1696 = vpop.f32.mrb[0].mxu0
    %1697 = vmatprep.mubr.bf16.mxu0 %v715
    %1698 = vmatmul.mubr.bf16.gmra.mrb[0].mxu0 %v714
    %v1699 = vpop.f32.mrb[0].mxu0
    %v1700 = vadd.f32 0.0, %v1699
    %v1701 = vpop.f32.mrb[0].mxu0
    %v1702 = vpop.f32.mrb[0].mxu0
    %v1703 = vadd.f32 0.0, %v1702
    %v1704 = vpop.f32.mrb[0].mxu0
    %1705 = vmatprep.mubr.bf16.mxu0 %v717
    %1706 = vmatmul.mubr.bf16.gmra.mrb[0].mxu0 %v716
    %v1707 = vpop.f32.mrb[0].mxu0
    %v1708 = vadd.f32 0.0, %v1707
    %v1709 = vpop.f32.mrb[0].mxu0
    %v1710 = vpop.f32.mrb[0].mxu0
    %v1711 = vadd.f32 0.0, %v1710
    %v1712 = vpop.f32.mrb[0].mxu0
    %1713 = vmatprep.mubr.bf16.mxu0 %v719
    %1714 = vmatmul.mubr.bf16.gmra.mrb[0].mxu0 %v718
    %v1715 = vpop.f32.mrb[0].mxu0
    %v1716 = vadd.f32 0.0, %v1715
    %v1717 = vpop.f32.mrb[0].mxu0
    %v1718 = vpop.f32.mrb[0].mxu0
    %v1719 = vadd.f32 0.0, %v1718
    %v1720 = vpop.f32.mrb[0].mxu0
    %1721 = vdwg.mxu0
    %v1722 = vpack.c.bf16 %v1413, %v1410
    %v1723 = vpack.c.bf16 %v1421, %v1418
    %v1724 = vpack.c.bf16 %v1534, %v1531
    %v1725 = vpack.c.bf16 %v1542, %v1539
    %1726 = vmatprep.subr.bf16.mxu0 0
    %1727 = vmatpush1.bf16.msra.mxu0 %v1722
    %1728 = vmatprep.subr.bf16.mxu0 0
    %1729 = vmatpush1.bf16.msra.mxu0 %v1723
    %1730 = vmatprep.subr.bf16.mxu0 0
    %1731 = vmatpush1.bf16.msra.mxu0 %v1724
    %1732 = vmatprep.subr.bf16.mxu0 0
    %1733 = vmatpush1.bf16.msra.mxu0 %v1725
    %1734 = vmatprep.subr.bf16.mxu0 0
    %1735 = vmatpush1.bf16.msra.mxu0 0
    %1736 = vmatprep.subr.bf16.mxu0 0
    %1737 = vmatpush1.bf16.msra.mxu0 0
    %1738 = vmatprep.subr.bf16.mxu0 0
    %1739 = vmatpush1.bf16.msra.mxu0 0
    %1740 = vmatprep.subr.bf16.mxu0 0
    %1741 = vmatpush1.bf16.msra.mxu0 0
    %1742 = vmatprep.subr.bf16.mxu0 0
    %1743 = vmatpush1.bf16.msra.mxu0 0
    %1744 = vmatprep.subr.bf16.mxu0 0
    %1745 = vmatpush1.bf16.msra.mxu0 0
    %1746 = vmatprep.subr.bf16.mxu0 0
    %1747 = vmatpush1.bf16.msra.mxu0 0
    %1748 = vmatprep.subr.bf16.mxu0 0
    %1749 = vmatpush1.bf16.msra.mxu0 0
    %1750 = vmatprep.subr.bf16.mxu0 0
    %1751 = vmatpush1.bf16.msra.mxu0 0
    %1752 = vmatprep.subr.bf16.mxu0 0
    %1753 = vmatpush1.bf16.msra.mxu0 0
    %1754 = vmatprep.subr.bf16.mxu0 0
    %1755 = vmatpush1.bf16.msra.mxu0 0
    %1756 = vmatprep.subr.bf16.mxu0 0
    %1757 = vmatpush1.bf16.msra.mxu0 0
    %1758 = vmatprep.mubr.bf16.mxu0 0
    %1759 = vmatmul.mubr.bf16.gmra.mrb[0].mxu0 %v999
    %v1760 = vpop.f32.mrb[0].mxu0
    %v1761 = vadd.f32 0.0, %v1760
    %v1762 = vpop.f32.mrb[0].mxu0
    %v1763 = vpop.f32.mrb[0].mxu0
    %v1764 = vadd.f32 0.0, %v1763
    %v1765 = vpop.f32.mrb[0].mxu0
    %1766 = vmatprep.mubr.bf16.mxu0 0
    %1767 = vmatmul.mubr.bf16.gmra.mrb[0].mxu0 %v1002
    %v1768 = vpop.f32.mrb[0].mxu0
    %v1769 = vadd.f32 0.0, %v1768
    %v1770 = vpop.f32.mrb[0].mxu0
    %v1771 = vpop.f32.mrb[0].mxu0
    %v1772 = vadd.f32 0.0, %v1771
    %v1773 = vpop.f32.mrb[0].mxu0
    %1774 = vmatprep.mubr.bf16.mxu0 0
    %1775 = vmatmul.mubr.bf16.gmra.mrb[0].mxu0 %v1005
    %v1776 = vpop.f32.mrb[0].mxu0
    %v1777 = vadd.f32 0.0, %v1776
    %v1778 = vpop.f32.mrb[0].mxu0
    %v1779 = vpop.f32.mrb[0].mxu0
    %v1780 = vadd.f32 0.0, %v1779
    %v1781 = vpop.f32.mrb[0].mxu0
    %1782 = vmatprep.mubr.bf16.mxu0 0
    %1783 = vmatmul.mubr.bf16.gmra.mrb[0].mxu0 %v1008
    %v1784 = vpop.f32.mrb[0].mxu0
    %v1785 = vadd.f32 0.0, %v1784
    %v1786 = vpop.f32.mrb[0].mxu0
    %v1787 = vpop.f32.mrb[0].mxu0
    %v1788 = vadd.f32 0.0, %v1787
    %v1789 = vpop.f32.mrb[0].mxu0
    %1790 = vmatprep.mubr.bf16.mxu0 0
    %1791 = vmatmul.mubr.bf16.gmra.mrb[0].mxu0 %v1011
    %v1792 = vpop.f32.mrb[0].mxu0
    %v1793 = vadd.f32 0.0, %v1792
    %v1794 = vpop.f32.mrb[0].mxu0
    %v1795 = vpop.f32.mrb[0].mxu0
    %v1796 = vadd.f32 0.0, %v1795
    %v1797 = vpop.f32.mrb[0].mxu0
    %1798 = vmatprep.mubr.bf16.mxu0 0
    %1799 = vmatmul.mubr.bf16.gmra.mrb[0].mxu0 %v1014
    %v1800 = vpop.f32.mrb[0].mxu0
    %v1801 = vadd.f32 0.0, %v1800
    %v1802 = vpop.f32.mrb[0].mxu0
    %v1803 = vpop.f32.mrb[0].mxu0
    %v1804 = vadd.f32 0.0, %v1803
    %v1805 = vpop.f32.mrb[0].mxu0
    %1806 = vmatprep.mubr.bf16.mxu0 0
    %1807 = vmatmul.mubr.bf16.gmra.mrb[0].mxu0 %v1017
    %v1808 = vpop.f32.mrb[0].mxu0
    %v1809 = vadd.f32 0.0, %v1808
    %v1810 = vpop.f32.mrb[0].mxu0
    %v1811 = vpop.f32.mrb[0].mxu0
    %v1812 = vadd.f32 0.0, %v1811
    %v1813 = vpop.f32.mrb[0].mxu0
    %1814 = vmatprep.mubr.bf16.mxu0 0
    %1815 = vmatmul.mubr.bf16.gmra.mrb[0].mxu0 %v1020
    %v1816 = vpop.f32.mrb[0].mxu0
    %v1817 = vadd.f32 0.0, %v1816
    %v1818 = vpop.f32.mrb[0].mxu0
    %v1819 = vpop.f32.mrb[0].mxu0
    %v1820 = vadd.f32 0.0, %v1819
    %v1821 = vpop.f32.mrb[0].mxu0
    %1822 = vmatprep.mubr.bf16.mxu0 0
    %1823 = vmatmul.mubr.bf16.gmra.mrb[0].mxu0 %v1023
    %v1824 = vpop.f32.mrb[0].mxu0
    %v1825 = vadd.f32 0.0, %v1824
    %v1826 = vpop.f32.mrb[0].mxu0
    %v1827 = vpop.f32.mrb[0].mxu0
    %v1828 = vadd.f32 0.0, %v1827
    %v1829 = vpop.f32.mrb[0].mxu0
    %1830 = vmatprep.mubr.bf16.mxu0 0
    %1831 = vmatmul.mubr.bf16.gmra.mrb[0].mxu0 %v1026
    %v1832 = vpop.f32.mrb[0].mxu0
    %v1833 = vadd.f32 0.0, %v1832
    %v1834 = vpop.f32.mrb[0].mxu0
    %v1835 = vpop.f32.mrb[0].mxu0
    %v1836 = vadd.f32 0.0, %v1835
    %v1837 = vpop.f32.mrb[0].mxu0
    %1838 = vmatprep.mubr.bf16.mxu0 0
    %1839 = vmatmul.mubr.bf16.gmra.mrb[0].mxu0 %v1029
    %v1840 = vpop.f32.mrb[0].mxu0
    %v1841 = vadd.f32 0.0, %v1840
    %v1842 = vpop.f32.mrb[0].mxu0
    %v1843 = vpop.f32.mrb[0].mxu0
    %v1844 = vadd.f32 0.0, %v1843
    %v1845 = vpop.f32.mrb[0].mxu0
    %1846 = vmatprep.mubr.bf16.mxu0 0
    %1847 = vmatmul.mubr.bf16.gmra.mrb[0].mxu0 %v1032
    %v1848 = vpop.f32.mrb[0].mxu0
    %v1849 = vadd.f32 0.0, %v1848
    %v1850 = vpop.f32.mrb[0].mxu0
    %v1851 = vpop.f32.mrb[0].mxu0
    %v1852 = vadd.f32 0.0, %v1851
    %v1853 = vpop.f32.mrb[0].mxu0
    %1854 = vmatprep.mubr.bf16.mxu0 0
    %1855 = vmatmul.mubr.bf16.gmra.mrb[0].mxu0 %v1035
    %v1856 = vpop.f32.mrb[0].mxu0
    %v1857 = vadd.f32 0.0, %v1856
    %v1858 = vpop.f32.mrb[0].mxu0
    %v1859 = vpop.f32.mrb[0].mxu0
    %v1860 = vadd.f32 0.0, %v1859
    %v1861 = vpop.f32.mrb[0].mxu0
    %1862 = vmatprep.mubr.bf16.mxu0 0
    %1863 = vmatmul.mubr.bf16.gmra.mrb[0].mxu0 %v1038
    %v1864 = vpop.f32.mrb[0].mxu0
    %v1865 = vadd.f32 0.0, %v1864
    %v1866 = vpop.f32.mrb[0].mxu0
    %v1867 = vpop.f32.mrb[0].mxu0
    %v1868 = vadd.f32 0.0, %v1867
    %v1869 = vpop.f32.mrb[0].mxu0
    %1870 = vmatprep.mubr.bf16.mxu0 0
    %1871 = vmatmul.mubr.bf16.gmra.mrb[0].mxu0 %v1041
    %v1872 = vpop.f32.mrb[0].mxu0
    %v1873 = vadd.f32 0.0, %v1872
    %v1874 = vpop.f32.mrb[0].mxu0
    %v1875 = vpop.f32.mrb[0].mxu0
    %v1876 = vadd.f32 0.0, %v1875
    %v1877 = vpop.f32.mrb[0].mxu0
    %1878 = vmatprep.mubr.bf16.mxu0 0
    %1879 = vmatmul.mubr.bf16.gmra.mrb[0].mxu0 %v1044
    %v1880 = vpop.f32.mrb[0].mxu0
    %v1881 = vadd.f32 0.0, %v1880
    %v1882 = vpop.f32.mrb[0].mxu0
    %v1883 = vpop.f32.mrb[0].mxu0
    %v1884 = vadd.f32 0.0, %v1883
    %v1885 = vpop.f32.mrb[0].mxu0
    %1886 = vdwg.mxu0
    %v1887 = vadd.f32 %v1207, %v1761
    %v1888 = vadd.f32 %v1208, %v1764
    %v1889 = vadd.f32 %v1209, %v1769
    %v1890 = vadd.f32 %v1210, %v1772
    %v1891 = vadd.f32 %v1211, %v1777
    %v1892 = vadd.f32 %v1212, %v1780
    %v1893 = vadd.f32 %v1213, %v1785
    %v1894 = vadd.f32 %v1214, %v1788
    %v1895 = vadd.f32 %v1215, %v1793
    %v1896 = vadd.f32 %v1216, %v1796
    %v1897 = vadd.f32 %v1217, %v1801
    %v1898 = vadd.f32 %v1218, %v1804
    %v1899 = vadd.f32 %v1219, %v1809
    %v1900 = vadd.f32 %v1220, %v1812
    %v1901 = vadd.f32 %v1221, %v1817
    %v1902 = vadd.f32 %v1222, %v1820
    %v1903 = vadd.f32 %v1223, %v1825
    %v1904 = vadd.f32 %v1224, %v1828
    %v1905 = vadd.f32 %v1225, %v1833
    %v1906 = vadd.f32 %v1226, %v1836
    %v1907 = vadd.f32 %v1227, %v1841
    %v1908 = vadd.f32 %v1228, %v1844
    %v1909 = vadd.f32 %v1229, %v1849
    %v1910 = vadd.f32 %v1230, %v1852
    %v1911 = vadd.f32 %v1231, %v1857
    %v1912 = vadd.f32 %v1232, %v1860
    %v1913 = vadd.f32 %v1233, %v1865
    %v1914 = vadd.f32 %v1234, %v1868
    %v1915 = vadd.f32 %v1235, %v1873
    %v1916 = vadd.f32 %v1236, %v1876
    %v1917 = vadd.f32 %v1237, %v1881
    %v1918 = vadd.f32 %v1238, %v1884
    %v1919 = vadd.f32 %v1239, %v1346
    %v1920 = vadd.f32 %v1240, %v1349
    %v1921 = vadd.f32 %v1241, %v1354
    %v1922 = vadd.f32 %v1242, %v1357
    %v1923 = vadd.f32 %v1243, %v1362
    %v1924 = vadd.f32 %v1244, %v1365
    %v1925 = vadd.f32 %v1245, %v1370
    %v1926 = vadd.f32 %v1246, %v1373
    %v1927 = vadd.f32 %v1247, %v1378
    %v1928 = vadd.f32 %v1248, %v1381
    %v1929 = vadd.f32 %v1249, %v1386
    %v1930 = vadd.f32 %v1250, %v1389
    %v1931 = vadd.f32 %v1251, %v1394
    %v1932 = vadd.f32 %v1252, %v1397
    %v1933 = vadd.f32 %v1253, %v1402
    %v1934 = vadd.f32 %v1254, %v1405
    %v1935 = vadd.f32 %v1255, %v1467
    %v1936 = vadd.f32 %v1256, %v1470
    %v1937 = vadd.f32 %v1257, %v1475
    %v1938 = vadd.f32 %v1258, %v1478
    %v1939 = vadd.f32 %v1259, %v1483
    %v1940 = vadd.f32 %v1260, %v1486
    %v1941 = vadd.f32 %v1261, %v1491
    %v1942 = vadd.f32 %v1262, %v1494
    %v1943 = vadd.f32 %v1263, %v1499
    %v1944 = vadd.f32 %v1264, %v1502
    %v1945 = vadd.f32 %v1265, %v1507
    %v1946 = vadd.f32 %v1266, %v1510
    %v1947 = vadd.f32 %v1267, %v1515
    %v1948 = vadd.f32 %v1268, %v1518
    %v1949 = vadd.f32 %v1269, %v1523
    %v1950 = vadd.f32 %v1270, %v1526
    %v1951 = vadd.f32 %v1271, %v1596
    %v1952 = vadd.f32 %v1272, %v1599
    %v1953 = vadd.f32 %v1273, %v1604
    %v1954 = vadd.f32 %v1274, %v1607
    %v1955 = vadd.f32 %v1275, %v1612
    %v1956 = vadd.f32 %v1276, %v1615
    %v1957 = vadd.f32 %v1277, %v1620
    %v1958 = vadd.f32 %v1278, %v1623
    %v1959 = vadd.f32 %v1279, %v1628
    %v1960 = vadd.f32 %v1280, %v1631
    %v1961 = vadd.f32 %v1281, %v1636
    %v1962 = vadd.f32 %v1282, %v1639
    %v1963 = vadd.f32 %v1283, %v1644
    %v1964 = vadd.f32 %v1284, %v1647
    %v1965 = vadd.f32 %v1285, %v1652
    %v1966 = vadd.f32 %v1286, %v1655
    %v1967 = vadd.f32 %v1287, %v1660
    %v1968 = vadd.f32 %v1288, %v1663
    %v1969 = vadd.f32 %v1289, %v1668
    %v1970 = vadd.f32 %v1290, %v1671
    %v1971 = vadd.f32 %v1291, %v1676
    %v1972 = vadd.f32 %v1292, %v1679
    %v1973 = vadd.f32 %v1293, %v1684
    %v1974 = vadd.f32 %v1294, %v1687
    %v1975 = vadd.f32 %v1295, %v1692
    %v1976 = vadd.f32 %v1296, %v1695
    %v1977 = vadd.f32 %v1297, %v1700
    %v1978 = vadd.f32 %v1298, %v1703
    %v1979 = vadd.f32 %v1299, %v1708
    %v1980 = vadd.f32 %v1300, %v1711
    %v1981 = vadd.f32 %v1301, %v1716
    %v1982 = vadd.f32 %v1302, %v1719
    %v1983 = vld [vmem:[%s6] sm:$0xff]
    %v1984 = vpack.c.bf16 %v1983, %v1983
    %v1985 = vadd.f32 %v1919, %v1951
    %v1986 = vadd.f32 %v1920, %v1952
    %v1987 = vadd.f32 %v1921, %v1953
    %v1988 = vadd.f32 %v1922, %v1954
    %v1989 = vadd.f32 %v1923, %v1955
    %v1990 = vadd.f32 %v1924, %v1956
    %v1991 = vadd.f32 %v1925, %v1957
    %v1992 = vadd.f32 %v1926, %v1958
    %v1993 = vadd.f32 %v1927, %v1959
    %v1994 = vadd.f32 %v1928, %v1960
    %v1995 = vadd.f32 %v1929, %v1961
    %v1996 = vadd.f32 %v1930, %v1962
    %v1997 = vadd.f32 %v1931, %v1963
    %v1998 = vadd.f32 %v1932, %v1964
    %v1999 = vadd.f32 %v1933, %v1965
    %v2000 = vadd.f32 %v1934, %v1966
    %v2001 = vpack.c.bf16 %v1986, %v1985
    %v2002 = vpack.c.bf16 %v1988, %v1987
    %v2003 = vpack.c.bf16 %v1990, %v1989
    %v2004 = vpack.c.bf16 %v1992, %v1991
    %v2005 = vpack.c.bf16 %v1994, %v1993
    %v2006 = vpack.c.bf16 %v1996, %v1995
    %v2007 = vpack.c.bf16 %v1998, %v1997
    %v2008 = vpack.c.bf16 %v2000, %v1999
    %2009 = vmatprep.subr.bf16.mxu0 0
    %2010 = vmatpush1.bf16.msra.mxu0 %v2001
    %2011 = vmatprep.subr.bf16.mxu0 0
    %2012 = vmatpush1.bf16.msra.mxu0 %v2002
    %2013 = vmatprep.subr.bf16.mxu0 0
    %2014 = vmatpush1.bf16.msra.mxu0 %v2003
    %2015 = vmatprep.subr.bf16.mxu0 0
    %2016 = vmatpush1.bf16.msra.mxu0 %v2004
    %2017 = vmatprep.subr.bf16.mxu0 0
    %2018 = vmatpush1.bf16.msra.mxu0 %v2005
    %2019 = vmatprep.subr.bf16.mxu0 0
    %2020 = vmatpush1.bf16.msra.mxu0 %v2006
    %2021 = vmatprep.subr.bf16.mxu0 0
    %2022 = vmatpush1.bf16.msra.mxu0 %v2007
    %2023 = vmatprep.subr.bf16.mxu0 0
    %2024 = vmatpush1.bf16.msra.mxu0 %v2008
    %2025 = vmatprep.subr.bf16.mxu0 0
    %2026 = vmatpush1.bf16.msra.mxu0 0
    %2027 = vmatprep.subr.bf16.mxu0 0
    %2028 = vmatpush1.bf16.msra.mxu0 0
    %2029 = vmatprep.subr.bf16.mxu0 0
    %2030 = vmatpush1.bf16.msra.mxu0 0
    %2031 = vmatprep.subr.bf16.mxu0 0
    %2032 = vmatpush1.bf16.msra.mxu0 0
    %2033 = vmatprep.subr.bf16.mxu0 0
    %2034 = vmatpush1.bf16.msra.mxu0 0
    %2035 = vmatprep.subr.bf16.mxu0 0
    %2036 = vmatpush1.bf16.msra.mxu0 0
    %2037 = vmatprep.subr.bf16.mxu0 0
    %2038 = vmatpush1.bf16.msra.mxu0 0
    %2039 = vmatprep.subr.bf16.mxu0 0
    %2040 = vmatpush1.bf16.msra.mxu0 0
    %2041 = vmatprep.mubr.bf16.mxu0 0
    %2042 = vmatmul.mubr.bf16.gmra.mrb[0].mxu0 %v1984
    %v2043 = vpop.f32.mrb[0].mxu0
    %v2044 = vadd.f32 0.0, %v2043
    %v2045 = vpop.f32.mrb[0].mxu0
    %v2046 = vpop.f32.mrb[0].mxu0
    %v2047 = vpop.f32.mrb[0].mxu0
    %2048 = vdwg.mxu0
    %2049 = vadd.xlane.f32.xlu0 %v1983
    %v2050 = vpop.xlane.xlu0 %2049
    %v2051 = vrcp.pop %v2050
    %v2052 = vmul.f32 %v2044, %v2051
    %v2053 = vrot.slane %v2052, 4
    %v2054 = vadd.f32 %v2052, %v2053
    %v2055 = vrot.slane %v2054, 2
    %v2056 = vadd.f32 %v2054, %v2055
    %v2057 = vrot.slane %v2056, 1
    %v2058 = vadd.f32 %v2056, %v2057
    %v2059 = vrcp.pop 8.0
    %v2060 = vmul.f32 %v2058, %v2059
    %v2061 = vsub.f32 %v2052, %v2060
    %v2062 = vmul.f32 %v2061, %v2061
    %v2063 = vrot.slane %v2062, 4
    %v2064 = vadd.f32 %v2062, %v2063
    %v2065 = vrot.slane %v2064, 2
    %v2066 = vadd.f32 %v2064, %v2065
    %v2067 = vrot.slane %v2066, 1
    %v2068 = vadd.f32 %v2066, %v2067
    %v2069 = vmul.f32 %v2068, %v2059
    %v2070 = vadd.f32 %v2069, 1e-05
    %v2071 = vrsqrt.pop %v2070
    %v2072 = vmul.f32 %v2061, %v2071
    %v2073 = vld [vmem:[%s7] sm:$0x1]
    %v2074 = vlaneseq
    %v2075 = vshrl.u32 %v2074, 7
    %v2076 = vsub.s32 0, %v2075
    %v2077 = vrot.slane %v2073, %v2076
    %v2078 = vmul.f32 %v2072, %v2077
    %v2079 = vld [vmem:[%s7 + $0x1] sm:$0x1]
    %v2080 = vlaneseq
    %v2081 = vshrl.u32 %v2080, 7
    %v2082 = vsub.s32 0, %v2081
    %v2083 = vrot.slane %v2079, %v2082
    %v2084 = vadd.f32 %v2078, %v2083
    %v2085 = vmax.f32 %v2084, 0.0
    %v2086 = vadd.f32 %v1935, %v1967
    %v2087 = vadd.f32 %v1936, %v1968
    %v2088 = vadd.f32 %v1937, %v1969
    %v2089 = vadd.f32 %v1938, %v1970
    %v2090 = vadd.f32 %v1939, %v1971
    %v2091 = vadd.f32 %v1940, %v1972
    %v2092 = vadd.f32 %v1941, %v1973
    %v2093 = vadd.f32 %v1942, %v1974
    %v2094 = vadd.f32 %v1943, %v1975
    %v2095 = vadd.f32 %v1944, %v1976
    %v2096 = vadd.f32 %v1945, %v1977
    %v2097 = vadd.f32 %v1946, %v1978
    %v2098 = vadd.f32 %v1947, %v1979
    %v2099 = vadd.f32 %v1948, %v1980
    %v2100 = vadd.f32 %v1949, %v1981
    %v2101 = vadd.f32 %v1950, %v1982
    %v2102 = vpack.c.bf16 %v2085, %v2085
    %v2103 = vpack.c.bf16 %v2087, %v2086
    %v2104 = vpack.c.bf16 %v2089, %v2088
    %v2105 = vpack.c.bf16 %v2091, %v2090
    %v2106 = vpack.c.bf16 %v2093, %v2092
    %v2107 = vpack.c.bf16 %v2095, %v2094
    %v2108 = vpack.c.bf16 %v2097, %v2096
    %v2109 = vpack.c.bf16 %v2099, %v2098
    %v2110 = vpack.c.bf16 %v2101, %v2100
    %2111 = vmatprep.subr.bf16.mxu0 0
    %2112 = vmatpush1.bf16.xpose.msra.mxu0 %v2103
    %2113 = vmatprep.subr.bf16.mxu0 0
    %2114 = vmatpush1.bf16.xpose.msra.mxu0 %v2104
    %2115 = vmatprep.subr.bf16.mxu0 0
    %2116 = vmatpush1.bf16.xpose.msra.mxu0 %v2105
    %2117 = vmatprep.subr.bf16.mxu0 0
    %2118 = vmatpush1.bf16.xpose.msra.mxu0 %v2106
    %2119 = vmatprep.subr.bf16.mxu0 0
    %2120 = vmatpush1.bf16.xpose.msra.mxu0 %v2107
    %2121 = vmatprep.subr.bf16.mxu0 0
    %2122 = vmatpush1.bf16.xpose.msra.mxu0 %v2108
    %2123 = vmatprep.subr.bf16.mxu0 0
    %2124 = vmatpush1.bf16.xpose.msra.mxu0 %v2109
    %2125 = vmatprep.subr.bf16.mxu0 0
    %2126 = vmatpush1.bf16.xpose.msra.mxu0 %v2110
    %2127 = vmatprep.subr.bf16.mxu0 0
    %2128 = vmatpush1.bf16.xpose.msra.mxu0 0
    %2129 = vmatprep.subr.bf16.mxu0 0
    %2130 = vmatpush1.bf16.xpose.msra.mxu0 0
    %2131 = vmatprep.subr.bf16.mxu0 0
    %2132 = vmatpush1.bf16.xpose.msra.mxu0 0
    %2133 = vmatprep.subr.bf16.mxu0 0
    %2134 = vmatpush1.bf16.xpose.msra.mxu0 0
    %2135 = vmatprep.subr.bf16.mxu0 0
    %2136 = vmatpush1.bf16.xpose.msra.mxu0 0
    %2137 = vmatprep.subr.bf16.mxu0 0
    %2138 = vmatpush1.bf16.xpose.msra.mxu0 0
    %2139 = vmatprep.subr.bf16.mxu0 0
    %2140 = vmatpush1.bf16.xpose.msra.mxu0 0
    %2141 = vmatprep.subr.bf16.mxu0 0
    %2142 = vmatpush1.bf16.xpose.msra.mxu0 0
    %2143 = vmatprep.mubr.bf16.mxu0 0
    %2144 = vmatmul.mubr.bf16.gmra.mrb[0].mxu0 %v2102
    %v2145 = vpop.f32.mrb[0].mxu0
    %v2146 = vadd.f32 0.0, %v2145
    %v2147 = vpop.f32.mrb[0].mxu0
    %v2148 = vpop.f32.mrb[0].mxu0
    %v2149 = vpop.f32.mrb[0].mxu0
    %2150 = vdwg.mxu0
    %2151 = vst [vmem:[#allocation11] sm:$0xff] %v2146
    %2152 = vst [vmem:[#allocation2] sm:$0xff] %v1887
    %2153 = vst [vmem:[#allocation2 + $0x8] sm:$0xff] %v1919
    %2154 = vst [vmem:[#allocation2 + $0x10] sm:$0xff] %v1888
    %2155 = vst [vmem:[#allocation2 + $0x18] sm:$0xff] %v1920
    %2156 = vst [vmem:[#allocation2 + $0x20] sm:$0xff] %v1889
    %2157 = vst [vmem:[#allocation2 + $0x28] sm:$0xff] %v1921
    %2158 = vst [vmem:[#allocation2 + $0x30] sm:$0xff] %v1890
    %2159 = vst [vmem:[#allocation2 + $0x38] sm:$0xff] %v1922
    %2160 = vst [vmem:[#allocation2 + $0x40] sm:$0xff] %v1891
    %2161 = vst [vmem:[#allocation2 + $0x48] sm:$0xff] %v1923
    %2162 = vst [vmem:[#allocation2 + $0x50] sm:$0xff] %v1892
    %2163 = vst [vmem:[#allocation2 + $0x58] sm:$0xff] %v1924
    %2164 = vst [vmem:[#allocation2 + $0x60] sm:$0xff] %v1893
    %2165 = vst [vmem:[#allocation2 + $0x68] sm:$0xff] %v1925
    %2166 = vst [vmem:[#allocation2 + $0x70] sm:$0xff] %v1894
    %2167 = vst [vmem:[#allocation2 + $0x78] sm:$0xff] %v1926
    %2168 = vst [vmem:[#allocation2 + $0x80] sm:$0xff] %v1895
    %2169 = vst [vmem:[#allocation2 + $0x88] sm:$0xff] %v1927
    %2170 = vst [vmem:[#allocation2 + $0x90] sm:$0xff] %v1896
    %2171 = vst [vmem:[#allocation2 + $0x98] sm:$0xff] %v1928
    %2172 = vst [vmem:[#allocation2 + $0xa0] sm:$0xff] %v1897
    %2173 = vst [vmem:[#allocation2 + $0xa8] sm:$0xff] %v1929
    %2174 = vst [vmem:[#allocation2 + $0xb0] sm:$0xff] %v1898
    %2175 = vst [vmem:[#allocation2 + $0xb8] sm:$0xff] %v1930
    %2176 = vst [vmem:[#allocation2 + $0xc0] sm:$0xff] %v1899
    %2177 = vst [vmem:[#allocation2 + $0xc8] sm:$0xff] %v1931
    %2178 = vst [vmem:[#allocation2 + $0xd0] sm:$0xff] %v1900
    %2179 = vst [vmem:[#allocation2 + $0xd8] sm:$0xff] %v1932
    %2180 = vst [vmem:[#allocation2 + $0xe0] sm:$0xff] %v1901
    %2181 = vst [vmem:[#allocation2 + $0xe8] sm:$0xff] %v1933
    %2182 = vst [vmem:[#allocation2 + $0xf0] sm:$0xff] %v1902
    %2183 = vst [vmem:[#allocation2 + $0xf8] sm:$0xff] %v1934
    %2184 = vst [vmem:[#allocation3] sm:$0xff] %v1903
    %2185 = vst [vmem:[#allocation3 + $0x8] sm:$0xff] %v1935
    %2186 = vst [vmem:[#allocation3 + $0x10] sm:$0xff] %v1904
    %2187 = vst [vmem:[#allocation3 + $0x18] sm:$0xff] %v1936
    %2188 = vst [vmem:[#allocation3 + $0x20] sm:$0xff] %v1905
    %2189 = vst [vmem:[#allocation3 + $0x28] sm:$0xff] %v1937
    %2190 = vst [vmem:[#allocation3 + $0x30] sm:$0xff] %v1906
    %2191 = vst [vmem:[#allocation3 + $0x38] sm:$0xff] %v1938
    %2192 = vst [vmem:[#allocation3 + $0x40] sm:$0xff] %v1907
    %2193 = vst [vmem:[#allocation3 + $0x48] sm:$0xff] %v1939
    %2194 = vst [vmem:[#allocation3 + $0x50] sm:$0xff] %v1908
    %2195 = vst [vmem:[#allocation3 + $0x58] sm:$0xff] %v1940
    %2196 = vst [vmem:[#allocation3 + $0x60] sm:$0xff] %v1909
    %2197 = vst [vmem:[#allocation3 + $0x68] sm:$0xff] %v1941
    %2198 = vst [vmem:[#allocation3 + $0x70] sm:$0xff] %v1910
    %2199 = vst [vmem:[#allocation3 + $0x78] sm:$0xff] %v1942
    %2200 = vst [vmem:[#allocation3 + $0x80] sm:$0xff] %v1911
    %2201 = vst [vmem:[#allocation3 + $0x88] sm:$0xff] %v1943
    %2202 = vst [vmem:[#allocation3 + $0x90] sm:$0xff] %v1912
    %2203 = vst [vmem:[#allocation3 + $0x98] sm:$0xff] %v1944
    %2204 = vst [vmem:[#allocation3 + $0xa0] sm:$0xff] %v1913
    %2205 = vst [vmem:[#allocation3 + $0xa8] sm:$0xff] %v1945
    %2206 = vst [vmem:[#allocation3 + $0xb0] sm:$0xff] %v1914
    %2207 = vst [vmem:[#allocation3 + $0xb8] sm:$0xff] %v1946
    %2208 = vst [vmem:[#allocation3 + $0xc0] sm:$0xff] %v1915
    %2209 = vst [vmem:[#allocation3 + $0xc8] sm:$0xff] %v1947
    %2210 = vst [vmem:[#allocation3 + $0xd0] sm:$0xff] %v1916
    %2211 = vst [vmem:[#allocation3 + $0xd8] sm:$0xff] %v1948
    %2212 = vst [vmem:[#allocation3 + $0xe0] sm:$0xff] %v1917
    %2213 = vst [vmem:[#allocation3 + $0xe8] sm:$0xff] %v1949
    %2214 = vst [vmem:[#allocation3 + $0xf0] sm:$0xff] %v1918
    %2215 = vst [vmem:[#allocation3 + $0xf8] sm:$0xff] %v1950
    %s2216 = sld [smem:[#allocation8]]
    %s2217 = sshra.s32 %s2216, 3
    %s2218 = sand.u32 %s2216, 7
    %s2219 = sshra.s32 %s2216, 3
    %s2220 = sand.u32 %s2216, 7
    %s2221 = smul.u32 %s2217, 2
    %s2222 = smul.u32 %s2221, 8
    %s2223 = sadd.s32 %s2222, %s2220
    %s2224 = scalar_lea.vmem [#allocation2], %s2223
    %v2225 = vld [vmem:[%s2224] ss:$8 sm:$0x3]
    %v2226 = vlaneseq
    %vm2227 = vcmp.ge.s32.totalorder %v2226, 0
    %vm2228 = vcmp.lt.s32.totalorder %v2226, 256
    %vm2229 = vmand %vm2227, %vm2228
    %2230 = vst.msk [vmem:[#allocation4] ss:$8 sm:$0x3] %vm2229, %v2225
    %2231 = vst.msk [vmem:[#allocation4] ss:$8 sm:$0x0] %vm2229, %v2225
    %s2232 = sld [smem:[#allocation8 + $0x80]]
    %s2233 = sshra.s32 %s2232, 3
    %s2234 = sand.u32 %s2232, 7
    %s2235 = sshra.s32 %s2232, 3
    %s2236 = sand.u32 %s2232, 7
    %s2237 = smul.u32 %s2233, 2
    %s2238 = smul.u32 %s2237, 8
    %s2239 = sadd.s32 %s2238, %s2236
    %s2240 = scalar_lea.vmem [#allocation3], %s2239
    %v2241 = vld [vmem:[%s2240] ss:$8 sm:$0x3]
    %2242 = vst.msk [vmem:[#allocation5] ss:$8 sm:$0x3] %vm2229, %v2241
    %2243 = vst.msk [vmem:[#allocation5] ss:$8 sm:$0x0] %vm2229, %v2241
    %s2244 = sld [smem:[#allocation8 + $0x100]]
    %s2245 = sshra.s32 %s2244, 3
    %s2246 = sand.u32 %s2244, 7
    %s2247 = sshra.s32 %s2244, 3
    %s2248 = sand.u32 %s2244, 7
    %s2249 = smul.u32 %s2245, 2
    %s2250 = smul.u32 %s2249, 8
    %s2251 = sadd.s32 %s2250, %s2248
    %s2252 = scalar_lea.vmem [#allocation3], %s2251
    %v2253 = vld [vmem:[%s2252] ss:$8 sm:$0x3]
    %2254 = vst.msk [vmem:[#allocation6] ss:$8 sm:$0x3] %vm2229, %v2253
    %2255 = vst.msk [vmem:[#allocation6] ss:$8 sm:$0x0] %vm2229, %v2253
    %s2256 = sld [smem:[#allocation8 + $0x180]]
    %s2257 = sshra.s32 %s2256, 3
    %s2258 = sand.u32 %s2256, 7
    %s2259 = sshra.s32 %s2256, 3
    %s2260 = sand.u32 %s2256, 7
    %s2261 = smul.u32 %s2257, 2
    %s2262 = smul.u32 %s2261, 8
    %s2263 = sadd.s32 %s2262, %s2260
    %s2264 = scalar_lea.vmem [#allocation3], %s2263
    %v2265 = vld [vmem:[%s2264] ss:$8 sm:$0x3]
    %2266 = vst.msk [vmem:[#allocation7] ss:$8 sm:$0x3] %vm2229, %v2265
    %2267 = vst.msk [vmem:[#allocation7] ss:$8 sm:$0x0] %vm2229, %v2265
    %s2268 = sld [smem:[#allocation8 + $0x1]]
    %s2269 = sshra.s32 %s2268, 3
    %s2270 = sand.u32 %s2268, 7
    %s2271 = sshra.s32 %s2268, 3
    %s2272 = sand.u32 %s2268, 7
    %s2273 = smul.u32 %s2269, 2
    %s2274 = smul.u32 %s2273, 8
    %s2275 = sadd.s32 %s2274, %s2272
    %s2276 = scalar_lea.vmem [#allocation2], %s2275
    %v2277 = vld [vmem:[%s2276] ss:$8 sm:$0x3]
    %s2278 = scalar_lea.vmem [#allocation4], 1
    %2279 = vst.msk [vmem:[%s2278] ss:$8 sm:$0x3] %vm2229, %v2277
    %2280 = vst.msk [vmem:[%s2278] ss:$8 sm:$0x0] %vm2229, %v2277
    %s2281 = sld [smem:[#allocation8 + $0x81]]
    %s2282 = sshra.s32 %s2281, 3
    %s2283 = sand.u32 %s2281, 7
    %s2284 = sshra.s32 %s2281, 3
    %s2285 = sand.u32 %s2281, 7
    %s2286 = smul.u32 %s2282, 2
    %s2287 = smul.u32 %s2286, 8
    %s2288 = sadd.s32 %s2287, %s2285
    %s2289 = scalar_lea.vmem [#allocation3], %s2288
    %v2290 = vld [vmem:[%s2289] ss:$8 sm:$0x3]
    %s2291 = scalar_lea.vmem [#allocation5], 1
    %2292 = vst.msk [vmem:[%s2291] ss:$8 sm:$0x3] %vm2229, %v2290
    %2293 = vst.msk [vmem:[%s2291] ss:$8 sm:$0x0] %vm2229, %v2290
    %s2294 = sld [smem:[#allocation8 + $0x101]]
    %s2295 = sshra.s32 %s2294, 3
    %s2296 = sand.u32 %s2294, 7
    %s2297 = sshra.s32 %s2294, 3
    %s2298 = sand.u32 %s2294, 7
    %s2299 = smul.u32 %s2295, 2
    %s2300 = smul.u32 %s2299, 8
    %s2301 = sadd.s32 %s2300, %s2298
    %s2302 = scalar_lea.vmem [#allocation3], %s2301
    %v2303 = vld [vmem:[%s2302] ss:$8 sm:$0x3]
    %s2304 = scalar_lea.vmem [#allocation6], 1
    %2305 = vst.msk [vmem:[%s2304] ss:$8 sm:$0x3] %vm2229, %v2303
    %2306 = vst.msk [vmem:[%s2304] ss:$8 sm:$0x0] %vm2229, %v2303
    %s2307 = sld [smem:[#allocation8 + $0x181]]
    %s2308 = sshra.s32 %s2307, 3
    %s2309 = sand.u32 %s2307, 7
    %s2310 = sshra.s32 %s2307, 3
    %s2311 = sand.u32 %s2307, 7
    %s2312 = smul.u32 %s2308, 2
    %s2313 = smul.u32 %s2312, 8
    %s2314 = sadd.s32 %s2313, %s2311
    %s2315 = scalar_lea.vmem [#allocation3], %s2314
    %v2316 = vld [vmem:[%s2315] ss:$8 sm:$0x3]
    %s2317 = scalar_lea.vmem [#allocation7], 1
    %2318 = vst.msk [vmem:[%s2317] ss:$8 sm:$0x3] %vm2229, %v2316
    %2319 = vst.msk [vmem:[%s2317] ss:$8 sm:$0x0] %vm2229, %v2316
    %s2320 = sld [smem:[#allocation8 + $0x2]]
    %s2321 = sshra.s32 %s2320, 3
    %s2322 = sand.u32 %s2320, 7
    %s2323 = sshra.s32 %s2320, 3
    %s2324 = sand.u32 %s2320, 7
    %s2325 = smul.u32 %s2321, 2
    %s2326 = smul.u32 %s2325, 8
    %s2327 = sadd.s32 %s2326, %s2324
    %s2328 = scalar_lea.vmem [#allocation2], %s2327
    %v2329 = vld [vmem:[%s2328] ss:$8 sm:$0x3]
    %s2330 = scalar_lea.vmem [#allocation4], 2
    %2331 = vst.msk [vmem:[%s2330] ss:$8 sm:$0x3] %vm2229, %v2329
    %2332 = vst.msk [vmem:[%s2330] ss:$8 sm:$0x0] %vm2229, %v2329
    %s2333 = sld [smem:[#allocation8 + $0x82]]
    %s2334 = sshra.s32 %s2333, 3
    %s2335 = sand.u32 %s2333, 7
    %s2336 = sshra.s32 %s2333, 3
    %s2337 = sand.u32 %s2333, 7
    %s2338 = smul.u32 %s2334, 2
    %s2339 = smul.u32 %s2338, 8
    %s2340 = sadd.s32 %s2339, %s2337
    %s2341 = scalar_lea.vmem [#allocation3], %s2340
    %v2342 = vld [vmem:[%s2341] ss:$8 sm:$0x3]
    %s2343 = scalar_lea.vmem [#allocation5], 2
    %2344 = vst.msk [vmem:[%s2343] ss:$8 sm:$0x3] %vm2229, %v2342
    %2345 = vst.msk [vmem:[%s2343] ss:$8 sm:$0x0] %vm2229, %v2342
    %s2346 = sld [smem:[#allocation8 + $0x102]]
    %s2347 = sshra.s32 %s2346, 3
    %s2348 = sand.u32 %s2346, 7
    %s2349 = sshra.s32 %s2346, 3
    %s2350 = sand.u32 %s2346, 7
    %s2351 = smul.u32 %s2347, 2
    %s2352 = smul.u32 %s2351, 8
    %s2353 = sadd.s32 %s2352, %s2350
    %s2354 = scalar_lea.vmem [#allocation3], %s2353
    %v2355 = vld [vmem:[%s2354] ss:$8 sm:$0x3]
    %s2356 = scalar_lea.vmem [#allocation6], 2
    %2357 = vst.msk [vmem:[%s2356] ss:$8 sm:$0x3] %vm2229, %v2355
    %2358 = vst.msk [vmem:[%s2356] ss:$8 sm:$0x0] %vm2229, %v2355
    %s2359 = sld [smem:[#allocation8 + $0x182]]
    %s2360 = sshra.s32 %s2359, 3
    %s2361 = sand.u32 %s2359, 7
    %s2362 = sshra.s32 %s2359, 3
    %s2363 = sand.u32 %s2359, 7
    %s2364 = smul.u32 %s2360, 2
    %s2365 = smul.u32 %s2364, 8
    %s2366 = sadd.s32 %s2365, %s2363
    %s2367 = scalar_lea.vmem [#allocation3], %s2366
    %v2368 = vld [vmem:[%s2367] ss:$8 sm:$0x3]
    %s2369 = scalar_lea.vmem [#allocation7], 2
    %2370 = vst.msk [vmem:[%s2369] ss:$8 sm:$0x3] %vm2229, %v2368
    %2371 = vst.msk [vmem:[%s2369] ss:$8 sm:$0x0] %vm2229, %v2368
    %s2372 = sld [smem:[#allocation8 + $0x3]]
    %s2373 = sshra.s32 %s2372, 3
    %s2374 = sand.u32 %s2372, 7
    %s2375 = sshra.s32 %s2372, 3
    %s2376 = sand.u32 %s2372, 7
    %s2377 = smul.u32 %s2373, 2
    %s2378 = smul.u32 %s2377, 8
    %s2379 = sadd.s32 %s2378, %s2376
    %s2380 = scalar_lea.vmem [#allocation2], %s2379
    %v2381 = vld [vmem:[%s2380] ss:$8 sm:$0x3]
    %s2382 = scalar_lea.vmem [#allocation4], 3
    %2383 = vst.msk [vmem:[%s2382] ss:$8 sm:$0x3] %vm2229, %v2381
    %2384 = vst.msk [vmem:[%s2382] ss:$8 sm:$0x0] %vm2229, %v2381
    %s2385 = sld [smem:[#allocation8 + $0x83]]
    %s2386 = sshra.s32 %s2385, 3
    %s2387 = sand.u32 %s2385, 7
    %s2388 = sshra.s32 %s2385, 3
    %s2389 = sand.u32 %s2385, 7
    %s2390 = smul.u32 %s2386, 2
    %s2391 = smul.u32 %s2390, 8
    %s2392 = sadd.s32 %s2391, %s2389
    %s2393 = scalar_lea.vmem [#allocation3], %s2392
    %v2394 = vld [vmem:[%s2393] ss:$8 sm:$0x3]
    %s2395 = scalar_lea.vmem [#allocation5], 3
    %2396 = vst.msk [vmem:[%s2395] ss:$8 sm:$0x3] %vm2229, %v2394
    %2397 = vst.msk [vmem:[%s2395] ss:$8 sm:$0x0] %vm2229, %v2394
    %s2398 = sld [smem:[#allocation8 + $0x103]]
    %s2399 = sshra.s32 %s2398, 3
    %s2400 = sand.u32 %s2398, 7
    %s2401 = sshra.s32 %s2398, 3
    %s2402 = sand.u32 %s2398, 7
    %s2403 = smul.u32 %s2399, 2
    %s2404 = smul.u32 %s2403, 8
    %s2405 = sadd.s32 %s2404, %s2402
    %s2406 = scalar_lea.vmem [#allocation3], %s2405
    %v2407 = vld [vmem:[%s2406] ss:$8 sm:$0x3]
    %s2408 = scalar_lea.vmem [#allocation6], 3
    %2409 = vst.msk [vmem:[%s2408] ss:$8 sm:$0x3] %vm2229, %v2407
    %2410 = vst.msk [vmem:[%s2408] ss:$8 sm:$0x0] %vm2229, %v2407
    %s2411 = sld [smem:[#allocation8 + $0x183]]
    %s2412 = sshra.s32 %s2411, 3
    %s2413 = sand.u32 %s2411, 7
    %s2414 = sshra.s32 %s2411, 3
    %s2415 = sand.u32 %s2411, 7
    %s2416 = smul.u32 %s2412, 2
    %s2417 = smul.u32 %s2416, 8
    %s2418 = sadd.s32 %s2417, %s2415
    %s2419 = scalar_lea.vmem [#allocation3], %s2418
    %v2420 = vld [vmem:[%s2419] ss:$8 sm:$0x3]
    %s2421 = scalar_lea.vmem [#allocation7], 3
    %2422 = vst.msk [vmem:[%s2421] ss:$8 sm:$0x3] %vm2229, %v2420
    %2423 = vst.msk [vmem:[%s2421] ss:$8 sm:$0x0] %vm2229, %v2420
    %s2424 = sld [smem:[#allocation8 + $0x4]]
    %s2425 = sshra.s32 %s2424, 3
    %s2426 = sand.u32 %s2424, 7
    %s2427 = sshra.s32 %s2424, 3
    %s2428 = sand.u32 %s2424, 7
    %s2429 = smul.u32 %s2425, 2
    %s2430 = smul.u32 %s2429, 8
    %s2431 = sadd.s32 %s2430, %s2428
    %s2432 = scalar_lea.vmem [#allocation2], %s2431
    %v2433 = vld [vmem:[%s2432] ss:$8 sm:$0x3]
    %s2434 = scalar_lea.vmem [#allocation4], 4
    %2435 = vst.msk [vmem:[%s2434] ss:$8 sm:$0x3] %vm2229, %v2433
    %2436 = vst.msk [vmem:[%s2434] ss:$8 sm:$0x0] %vm2229, %v2433
    %s2437 = sld [smem:[#allocation8 + $0x84]]
    %s2438 = sshra.s32 %s2437, 3
    %s2439 = sand.u32 %s2437, 7
    %s2440 = sshra.s32 %s2437, 3
    %s2441 = sand.u32 %s2437, 7
    %s2442 = smul.u32 %s2438, 2
    %s2443 = smul.u32 %s2442, 8
    %s2444 = sadd.s32 %s2443, %s2441
    %s2445 = scalar_lea.vmem [#allocation3], %s2444
    %v2446 = vld [vmem:[%s2445] ss:$8 sm:$0x3]
    %s2447 = scalar_lea.vmem [#allocation5], 4
    %2448 = vst.msk [vmem:[%s2447] ss:$8 sm:$0x3] %vm2229, %v2446
    %2449 = vst.msk [vmem:[%s2447] ss:$8 sm:$0x0] %vm2229, %v2446
    %s2450 = sld [smem:[#allocation8 + $0x104]]
    %s2451 = sshra.s32 %s2450, 3
    %s2452 = sand.u32 %s2450, 7
    %s2453 = sshra.s32 %s2450, 3
    %s2454 = sand.u32 %s2450, 7
    %s2455 = smul.u32 %s2451, 2
    %s2456 = smul.u32 %s2455, 8
    %s2457 = sadd.s32 %s2456, %s2454
    %s2458 = scalar_lea.vmem [#allocation3], %s2457
    %v2459 = vld [vmem:[%s2458] ss:$8 sm:$0x3]
    %s2460 = scalar_lea.vmem [#allocation6], 4
    %2461 = vst.msk [vmem:[%s2460] ss:$8 sm:$0x3] %vm2229, %v2459
    %2462 = vst.msk [vmem:[%s2460] ss:$8 sm:$0x0] %vm2229, %v2459
    %s2463 = sld [smem:[#allocation8 + $0x184]]
    %s2464 = sshra.s32 %s2463, 3
    %s2465 = sand.u32 %s2463, 7
    %s2466 = sshra.s32 %s2463, 3
    %s2467 = sand.u32 %s2463, 7
    %s2468 = smul.u32 %s2464, 2
    %s2469 = smul.u32 %s2468, 8
    %s2470 = sadd.s32 %s2469, %s2467
    %s2471 = scalar_lea.vmem [#allocation3], %s2470
    %v2472 = vld [vmem:[%s2471] ss:$8 sm:$0x3]
    %s2473 = scalar_lea.vmem [#allocation7], 4
    %2474 = vst.msk [vmem:[%s2473] ss:$8 sm:$0x3] %vm2229, %v2472
    %2475 = vst.msk [vmem:[%s2473] ss:$8 sm:$0x0] %vm2229, %v2472
    %s2476 = sld [smem:[#allocation8 + $0x5]]
    %s2477 = sshra.s32 %s2476, 3
    %s2478 = sand.u32 %s2476, 7
    %s2479 = sshra.s32 %s2476, 3
    %s2480 = sand.u32 %s2476, 7
    %s2481 = smul.u32 %s2477, 2
    %s2482 = smul.u32 %s2481, 8
    %s2483 = sadd.s32 %s2482, %s2480
    %s2484 = scalar_lea.vmem [#allocation2], %s2483
    %v2485 = vld [vmem:[%s2484] ss:$8 sm:$0x3]
    %s2486 = scalar_lea.vmem [#allocation4], 5
    %2487 = vst.msk [vmem:[%s2486] ss:$8 sm:$0x3] %vm2229, %v2485
    %2488 = vst.msk [vmem:[%s2486] ss:$8 sm:$0x0] %vm2229, %v2485
    %s2489 = sld [smem:[#allocation8 + $0x85]]
    %s2490 = sshra.s32 %s2489, 3
    %s2491 = sand.u32 %s2489, 7
    %s2492 = sshra.s32 %s2489, 3
    %s2493 = sand.u32 %s2489, 7
    %s2494 = smul.u32 %s2490, 2
    %s2495 = smul.u32 %s2494, 8
    %s2496 = sadd.s32 %s2495, %s2493
    %s2497 = scalar_lea.vmem [#allocation3], %s2496
    %v2498 = vld [vmem:[%s2497] ss:$8 sm:$0x3]
    %s2499 = scalar_lea.vmem [#allocation5], 5
    %2500 = vst.msk [vmem:[%s2499] ss:$8 sm:$0x3] %vm2229, %v2498
    %2501 = vst.msk [vmem:[%s2499] ss:$8 sm:$0x0] %vm2229, %v2498
    %s2502 = sld [smem:[#allocation8 + $0x105]]
    %s2503 = sshra.s32 %s2502, 3
    %s2504 = sand.u32 %s2502, 7
    %s2505 = sshra.s32 %s2502, 3
    %s2506 = sand.u32 %s2502, 7
    %s2507 = smul.u32 %s2503, 2
    %s2508 = smul.u32 %s2507, 8
    %s2509 = sadd.s32 %s2508, %s2506
    %s2510 = scalar_lea.vmem [#allocation3], %s2509
    %v2511 = vld [vmem:[%s2510] ss:$8 sm:$0x3]
    %s2512 = scalar_lea.vmem [#allocation6], 5
    %2513 = vst.msk [vmem:[%s2512] ss:$8 sm:$0x3] %vm2229, %v2511
    %2514 = vst.msk [vmem:[%s2512] ss:$8 sm:$0x0] %vm2229, %v2511
    %s2515 = sld [smem:[#allocation8 + $0x185]]
    %s2516 = sshra.s32 %s2515, 3
    %s2517 = sand.u32 %s2515, 7
    %s2518 = sshra.s32 %s2515, 3
    %s2519 = sand.u32 %s2515, 7
    %s2520 = smul.u32 %s2516, 2
    %s2521 = smul.u32 %s2520, 8
    %s2522 = sadd.s32 %s2521, %s2519
    %s2523 = scalar_lea.vmem [#allocation3], %s2522
    %v2524 = vld [vmem:[%s2523] ss:$8 sm:$0x3]
    %s2525 = scalar_lea.vmem [#allocation7], 5
    %2526 = vst.msk [vmem:[%s2525] ss:$8 sm:$0x3] %vm2229, %v2524
    %2527 = vst.msk [vmem:[%s2525] ss:$8 sm:$0x0] %vm2229, %v2524
    %s2528 = sld [smem:[#allocation8 + $0x6]]
    %s2529 = sshra.s32 %s2528, 3
    %s2530 = sand.u32 %s2528, 7
    %s2531 = sshra.s32 %s2528, 3
    %s2532 = sand.u32 %s2528, 7
    %s2533 = smul.u32 %s2529, 2
    %s2534 = smul.u32 %s2533, 8
    %s2535 = sadd.s32 %s2534, %s2532
    %s2536 = scalar_lea.vmem [#allocation2], %s2535
    %v2537 = vld [vmem:[%s2536] ss:$8 sm:$0x3]
    %s2538 = scalar_lea.vmem [#allocation4], 6
    %2539 = vst.msk [vmem:[%s2538] ss:$8 sm:$0x3] %vm2229, %v2537
    %2540 = vst.msk [vmem:[%s2538] ss:$8 sm:$0x0] %vm2229, %v2537
    %s2541 = sld [smem:[#allocation8 + $0x86]]
    %s2542 = sshra.s32 %s2541, 3
    %s2543 = sand.u32 %s2541, 7
    %s2544 = sshra.s32 %s2541, 3
    %s2545 = sand.u32 %s2541, 7
    %s2546 = smul.u32 %s2542, 2
    %s2547 = smul.u32 %s2546, 8
    %s2548 = sadd.s32 %s2547, %s2545
    %s2549 = scalar_lea.vmem [#allocation3], %s2548
    %v2550 = vld [vmem:[%s2549] ss:$8 sm:$0x3]
    %s2551 = scalar_lea.vmem [#allocation5], 6
    %2552 = vst.msk [vmem:[%s2551] ss:$8 sm:$0x3] %vm2229, %v2550
    %2553 = vst.msk [vmem:[%s2551] ss:$8 sm:$0x0] %vm2229, %v2550
    %s2554 = sld [smem:[#allocation8 + $0x106]]
    %s2555 = sshra.s32 %s2554, 3
    %s2556 = sand.u32 %s2554, 7
    %s2557 = sshra.s32 %s2554, 3
    %s2558 = sand.u32 %s2554, 7
    %s2559 = smul.u32 %s2555, 2
    %s2560 = smul.u32 %s2559, 8
    %s2561 = sadd.s32 %s2560, %s2558
    %s2562 = scalar_lea.vmem [#allocation3], %s2561
    %v2563 = vld [vmem:[%s2562] ss:$8 sm:$0x3]
    %s2564 = scalar_lea.vmem [#allocation6], 6
    %2565 = vst.msk [vmem:[%s2564] ss:$8 sm:$0x3] %vm2229, %v2563
    %2566 = vst.msk [vmem:[%s2564] ss:$8 sm:$0x0] %vm2229, %v2563
    %s2567 = sld [smem:[#allocation8 + $0x186]]
    %s2568 = sshra.s32 %s2567, 3
    %s2569 = sand.u32 %s2567, 7
    %s2570 = sshra.s32 %s2567, 3
    %s2571 = sand.u32 %s2567, 7
    %s2572 = smul.u32 %s2568, 2
    %s2573 = smul.u32 %s2572, 8
    %s2574 = sadd.s32 %s2573, %s2571
    %s2575 = scalar_lea.vmem [#allocation3], %s2574
    %v2576 = vld [vmem:[%s2575] ss:$8 sm:$0x3]
    %s2577 = scalar_lea.vmem [#allocation7], 6
    %2578 = vst.msk [vmem:[%s2577] ss:$8 sm:$0x3] %vm2229, %v2576
    %2579 = vst.msk [vmem:[%s2577] ss:$8 sm:$0x0] %vm2229, %v2576
    %s2580 = sld [smem:[#allocation8 + $0x7]]
    %s2581 = sshra.s32 %s2580, 3
    %s2582 = sand.u32 %s2580, 7
    %s2583 = sshra.s32 %s2580, 3
    %s2584 = sand.u32 %s2580, 7
    %s2585 = smul.u32 %s2581, 2
    %s2586 = smul.u32 %s2585, 8
    %s2587 = sadd.s32 %s2586, %s2584
    %s2588 = scalar_lea.vmem [#allocation2], %s2587
    %v2589 = vld [vmem:[%s2588] ss:$8 sm:$0x3]
    %s2590 = scalar_lea.vmem [#allocation4], 7
    %2591 = vst.msk [vmem:[%s2590] ss:$8 sm:$0x3] %vm2229, %v2589
    %2592 = vst.msk [vmem:[%s2590] ss:$8 sm:$0x0] %vm2229, %v2589
    %s2593 = sld [smem:[#allocation8 + $0x87]]
    %s2594 = sshra.s32 %s2593, 3
    %s2595 = sand.u32 %s2593, 7
    %s2596 = sshra.s32 %s2593, 3
    %s2597 = sand.u32 %s2593, 7
    %s2598 = smul.u32 %s2594, 2
    %s2599 = smul.u32 %s2598, 8
    %s2600 = sadd.s32 %s2599, %s2597
    %s2601 = scalar_lea.vmem [#allocation3], %s2600
    %v2602 = vld [vmem:[%s2601] ss:$8 sm:$0x3]
    %s2603 = scalar_lea.vmem [#allocation5], 7
    %2604 = vst.msk [vmem:[%s2603] ss:$8 sm:$0x3] %vm2229, %v2602
    %2605 = vst.msk [vmem:[%s2603] ss:$8 sm:$0x0] %vm2229, %v2602
    %s2606 = sld [smem:[#allocation8 + $0x107]]
    %s2607 = sshra.s32 %s2606, 3
    %s2608 = sand.u32 %s2606, 7
    %s2609 = sshra.s32 %s2606, 3
    %s2610 = sand.u32 %s2606, 7
    %s2611 = smul.u32 %s2607, 2
    %s2612 = smul.u32 %s2611, 8
    %s2613 = sadd.s32 %s2612, %s2610
    %s2614 = scalar_lea.vmem [#allocation3], %s2613
    %v2615 = vld [vmem:[%s2614] ss:$8 sm:$0x3]
    %s2616 = scalar_lea.vmem [#allocation6], 7
    %2617 = vst.msk [vmem:[%s2616] ss:$8 sm:$0x3] %vm2229, %v2615
    %2618 = vst.msk [vmem:[%s2616] ss:$8 sm:$0x0] %vm2229, %v2615
    %s2619 = sld [smem:[#allocation8 + $0x187]]
    %s2620 = sshra.s32 %s2619, 3
    %s2621 = sand.u32 %s2619, 7
    %s2622 = sshra.s32 %s2619, 3
    %s2623 = sand.u32 %s2619, 7
    %s2624 = smul.u32 %s2620, 2
    %s2625 = smul.u32 %s2624, 8
    %s2626 = sadd.s32 %s2625, %s2623
    %s2627 = scalar_lea.vmem [#allocation3], %s2626
    %v2628 = vld [vmem:[%s2627] ss:$8 sm:$0x3]
    %s2629 = scalar_lea.vmem [#allocation7], 7
    %2630 = vst.msk [vmem:[%s2629] ss:$8 sm:$0x3] %vm2229, %v2628
    %2631 = vst.msk [vmem:[%s2629] ss:$8 sm:$0x0] %vm2229, %v2628
    %v2632 = vld [vmem:[#allocation4] sm:$0xff]
    %v2633 = vld [vmem:[#allocation4 + $0x8] sm:$0xff]
    %v2634 = vld [vmem:[#allocation5] sm:$0xff]
    %v2635 = vld [vmem:[#allocation5 + $0x8] sm:$0xff]
    %v2636 = vld [vmem:[#allocation6 + $0x8] sm:$0xff]
    %v2637 = vld [vmem:[#allocation7 + $0x8] sm:$0xff]
    %v2638 = vpack.c.bf16 %v2632, %v2632
    %v2639 = vpack.c.bf16 %v1920, %v1919
    %v2640 = vpack.c.bf16 %v1922, %v1921
    %v2641 = vpack.c.bf16 %v1924, %v1923
    %v2642 = vpack.c.bf16 %v1926, %v1925
    %v2643 = vpack.c.bf16 %v1928, %v1927
    %v2644 = vpack.c.bf16 %v1930, %v1929
    %v2645 = vpack.c.bf16 %v1932, %v1931
    %v2646 = vpack.c.bf16 %v1934, %v1933
    %2647 = vmatprep.subr.bf16.mxu0 0
    %2648 = vmatpush1.bf16.xpose.msra.mxu0 %v2639
    %2649 = vmatprep.subr.bf16.mxu0 0
    %2650 = vmatpush1.bf16.xpose.msra.mxu0 %v2640
    %2651 = vmatprep.subr.bf16.mxu0 0
    %2652 = vmatpush1.bf16.xpose.msra.mxu0 %v2641
    %2653 = vmatprep.subr.bf16.mxu0 0
    %2654 = vmatpush1.bf16.xpose.msra.mxu0 %v2642
    %2655 = vmatprep.subr.bf16.mxu0 0
    %2656 = vmatpush1.bf16.xpose.msra.mxu0 %v2643
    %2657 = vmatprep.subr.bf16.mxu0 0
    %2658 = vmatpush1.bf16.xpose.msra.mxu0 %v2644
    %2659 = vmatprep.subr.bf16.mxu0 0
    %2660 = vmatpush1.bf16.xpose.msra.mxu0 %v2645
    %2661 = vmatprep.subr.bf16.mxu0 0
    %2662 = vmatpush1.bf16.xpose.msra.mxu0 %v2646
    %2663 = vmatprep.subr.bf16.mxu0 0
    %2664 = vmatpush1.bf16.xpose.msra.mxu0 0
    %2665 = vmatprep.subr.bf16.mxu0 0
    %2666 = vmatpush1.bf16.xpose.msra.mxu0 0
    %2667 = vmatprep.subr.bf16.mxu0 0
    %2668 = vmatpush1.bf16.xpose.msra.mxu0 0
    %2669 = vmatprep.subr.bf16.mxu0 0
    %2670 = vmatpush1.bf16.xpose.msra.mxu0 0
    %2671 = vmatprep.subr.bf16.mxu0 0
    %2672 = vmatpush1.bf16.xpose.msra.mxu0 0
    %2673 = vmatprep.subr.bf16.mxu0 0
    %2674 = vmatpush1.bf16.xpose.msra.mxu0 0
    %2675 = vmatprep.subr.bf16.mxu0 0
    %2676 = vmatpush1.bf16.xpose.msra.mxu0 0
    %2677 = vmatprep.subr.bf16.mxu0 0
    %2678 = vmatpush1.bf16.xpose.msra.mxu0 0
    %2679 = vmatprep.mubr.bf16.mxu0 0
    %2680 = vmatmul.mubr.bf16.gmra.mrb[0].mxu0 %v2638
    %v2681 = vpop.f32.mrb[0].mxu0
    %v2682 = vadd.f32 0.0, %v2681
    %v2683 = vpop.f32.mrb[0].mxu0
    %v2684 = vpop.f32.mrb[0].mxu0
    %v2685 = vpop.f32.mrb[0].mxu0
    %2686 = vdwg.mxu0
    %v2687 = vmul.f32 %v2682, 5.0
    %2688 = vmax.xlane.f32.xlu0 %v2687
    %v2689 = vpop.xlane.xlu0 %2688
    %v2690 = vmax.f32 %v2689, -18.420681
    %v2691 = vsub.f32 %v2687, %v2690
    %v2692 = vmul.f32 %v2691, 1.442695
    %v2693 = vpow.pop %v2692
    %2694 = vadd.xlane.f32.xlu0 %v2693
    %v2695 = vpop.xlane.xlu0 %2694
    %v2696 = vsub.f32 0.0, %v2690
    %v2697 = vmul.f32 %v2696, 1.442695
    %v2698 = vpow.pop %v2697
    %v2699 = vmul.f32 %v2698, 1e-08
    %v2700 = vadd.f32 %v2695, %v2699
    %v2701 = vlog2.pop %v2700
    %v2702 = vmul.f32 %v2701, 0.6931472
    %v2703 = vadd.f32 %v2690, %v2702
    %vm2704 = vcmask 7168
    %v2705 = vsel %vm2704, %v2703, 0.0
    %2706 = vadd.xlane.f32.xlu0 %v2705
    %v2707 = vpop.xlane.xlu0 %2706
    %v2708 = vrot.slane %v2707, 4
    %v2709 = vadd.f32 %v2707, %v2708
    %v2710 = vrot.slane %v2709, 2
    %v2711 = vadd.f32 %v2709, %v2710
    %v2712 = vrot.slane %v2711, 1
    %v2713 = vadd.f32 %v2711, %v2712
    %s2714 = vtos %v2713
    %s2715 = smul.f32 %s2714, 0.125
    %v2716 = vpack.c.bf16 %v2634, %v2634
    %v2717 = vpack.c.bf16 %v1936, %v1935
    %v2718 = vpack.c.bf16 %v1938, %v1937
    %v2719 = vpack.c.bf16 %v1940, %v1939
    %v2720 = vpack.c.bf16 %v1942, %v1941
    %v2721 = vpack.c.bf16 %v1944, %v1943
    %v2722 = vpack.c.bf16 %v1946, %v1945
    %v2723 = vpack.c.bf16 %v1948, %v1947
    %v2724 = vpack.c.bf16 %v1950, %v1949
    %2725 = vmatprep.subr.bf16.mxu0 0
    %2726 = vmatpush1.bf16.xpose.msra.mxu0 %v2717
    %2727 = vmatprep.subr.bf16.mxu0 0
    %2728 = vmatpush1.bf16.xpose.msra.mxu0 %v2718
    %2729 = vmatprep.subr.bf16.mxu0 0
    %2730 = vmatpush1.bf16.xpose.msra.mxu0 %v2719
    %2731 = vmatprep.subr.bf16.mxu0 0
    %2732 = vmatpush1.bf16.xpose.msra.mxu0 %v2720
    %2733 = vmatprep.subr.bf16.mxu0 0
    %2734 = vmatpush1.bf16.xpose.msra.mxu0 %v2721
    %2735 = vmatprep.subr.bf16.mxu0 0
    %2736 = vmatpush1.bf16.xpose.msra.mxu0 %v2722
    %2737 = vmatprep.subr.bf16.mxu0 0
    %2738 = vmatpush1.bf16.xpose.msra.mxu0 %v2723
    %2739 = vmatprep.subr.bf16.mxu0 0
    %2740 = vmatpush1.bf16.xpose.msra.mxu0 %v2724
    %2741 = vmatprep.subr.bf16.mxu0 0
    %2742 = vmatpush1.bf16.xpose.msra.mxu0 0
    %2743 = vmatprep.subr.bf16.mxu0 0
    %2744 = vmatpush1.bf16.xpose.msra.mxu0 0
    %2745 = vmatprep.subr.bf16.mxu0 0
    %2746 = vmatpush1.bf16.xpose.msra.mxu0 0
    %2747 = vmatprep.subr.bf16.mxu0 0
    %2748 = vmatpush1.bf16.xpose.msra.mxu0 0
    %2749 = vmatprep.subr.bf16.mxu0 0
    %2750 = vmatpush1.bf16.xpose.msra.mxu0 0
    %2751 = vmatprep.subr.bf16.mxu0 0
    %2752 = vmatpush1.bf16.xpose.msra.mxu0 0
    %2753 = vmatprep.subr.bf16.mxu0 0
    %2754 = vmatpush1.bf16.xpose.msra.mxu0 0
    %2755 = vmatprep.subr.bf16.mxu0 0
    %2756 = vmatpush1.bf16.xpose.msra.mxu0 0
    %2757 = vmatprep.mubr.bf16.mxu0 0
    %2758 = vmatmul.mubr.bf16.gmra.mrb[0].mxu0 %v2716
    %v2759 = vpop.f32.mrb[0].mxu0
    %v2760 = vadd.f32 0.0, %v2759
    %v2761 = vpop.f32.mrb[0].mxu0
    %v2762 = vpop.f32.mrb[0].mxu0
    %v2763 = vpop.f32.mrb[0].mxu0
    %2764 = vdwg.mxu0
    %v2765 = vmul.f32 %v2760, 5.0
    %2766 = vmax.xlane.f32.xlu0 %v2765
    %v2767 = vpop.xlane.xlu0 %2766
    %v2768 = vmax.f32 %v2767, -18.420681
    %v2769 = vsub.f32 %v2765, %v2768
    %v2770 = vmul.f32 %v2769, 1.442695
    %v2771 = vpow.pop %v2770
    %2772 = vadd.xlane.f32.xlu0 %v2771
    %v2773 = vpop.xlane.xlu0 %2772
    %v2774 = vsub.f32 0.0, %v2768
    %v2775 = vmul.f32 %v2774, 1.442695
    %v2776 = vpow.pop %v2775
    %v2777 = vmul.f32 %v2776, 1e-08
    %v2778 = vadd.f32 %v2773, %v2777
    %v2779 = vlog2.pop %v2778
    %v2780 = vmul.f32 %v2779, 0.6931472
    %v2781 = vadd.f32 %v2768, %v2780
    %v2782 = vsel %vm2704, %v2781, 0.0
    %2783 = vadd.xlane.f32.xlu0 %v2782
    %v2784 = vpop.xlane.xlu0 %2783
    %v2785 = vrot.slane %v2784, 4
    %v2786 = vadd.f32 %v2784, %v2785
    %v2787 = vrot.slane %v2786, 2
    %v2788 = vadd.f32 %v2786, %v2787
    %v2789 = vrot.slane %v2788, 1
    %v2790 = vadd.f32 %v2788, %v2789
    %s2791 = vtos %v2790
    %s2792 = smul.f32 %s2791, 0.125
    %s2793 = sadd.f32 %s2715, %s2792
    %v2794 = vmul.f32 %v2632, %v2633
    %2795 = vadd.xlane.f32.xlu0 %v2794
    %v2796 = vpop.xlane.xlu0 %2795
    %v2797 = vmul.f32 %v2796, 5.0
    %v2798 = vmax.f32 %v2797, -5.0
    %v2799 = vmin.f32 %v2798, 5.0
    %v2800 = vsel %vm2704, %v2799, 0.0
    %2801 = vadd.xlane.f32.xlu0 %v2800
    %v2802 = vpop.xlane.xlu0 %2801
    %v2803 = vrot.slane %v2802, 4
    %v2804 = vadd.f32 %v2802, %v2803
    %v2805 = vrot.slane %v2804, 2
    %v2806 = vadd.f32 %v2804, %v2805
    %v2807 = vrot.slane %v2806, 1
    %v2808 = vadd.f32 %v2806, %v2807
    %s2809 = vtos %v2808
    %s2810 = smul.f32 %s2809, 0.125
    %v2811 = vmul.f32 %v2634, %v2635
    %2812 = vadd.xlane.f32.xlu0 %v2811
    %v2813 = vpop.xlane.xlu0 %2812
    %v2814 = vmul.f32 %v2813, 5.0
    %v2815 = vmax.f32 %v2814, -5.0
    %v2816 = vmin.f32 %v2815, 5.0
    %v2817 = vsel %vm2704, %v2816, 0.0
    %2818 = vadd.xlane.f32.xlu0 %v2817
    %v2819 = vpop.xlane.xlu0 %2818
    %v2820 = vrot.slane %v2819, 4
    %v2821 = vadd.f32 %v2819, %v2820
    %v2822 = vrot.slane %v2821, 2
    %v2823 = vadd.f32 %v2821, %v2822
    %v2824 = vrot.slane %v2823, 1
    %v2825 = vadd.f32 %v2823, %v2824
    %s2826 = vtos %v2825
    %s2827 = smul.f32 %s2826, 0.125
    %s2828 = sadd.f32 %s2810, %s2827
    %s2829 = ssub.f32 0.0, %s2828
    %s2830 = sadd.f32 %s2829, %s2793
    %v2831 = vsub.f32 %v2636, %v2637
    %v2832 = vmul.f32 %v2633, %v2831
    %2833 = vadd.xlane.f32.xlu0 %v2832
    %v2834 = vpop.xlane.xlu0 %2833
    %v2835 = vsub.f32 0.0, %v2834
    %v2836 = vmax.f32 %v2835, 0.0
    %v2837 = vand.u32 2147483647, %v2834
    %v2838 = vsub.f32 0.0, %v2837
    %v2839 = vmul.f32 %v2838, 1.442695
    %v2840 = vpow.pop %v2839
    %v2841 = vadd.f32 %v2840, 1.0
    %v2842 = vlog2.pop %v2841
    %v2843 = vmul.f32 %v2842, 0.6931472
    %v2844 = vadd.f32 %v2836, %v2843
    %v2845 = vsel %vm2704, %v2844, 0.0
    %2846 = vadd.xlane.f32.xlu0 %v2845
    %v2847 = vpop.xlane.xlu0 %2846
    %v2848 = vrot.slane %v2847, 4
    %v2849 = vadd.f32 %v2847, %v2848
    %v2850 = vrot.slane %v2849, 2
    %v2851 = vadd.f32 %v2849, %v2850
    %v2852 = vrot.slane %v2851, 1
    %v2853 = vadd.f32 %v2851, %v2852
    %s2854 = vtos %v2853
    %s2855 = smul.f32 %s2854, 0.125
    %v2856 = vmul.f32 %v150, %v150
    %v2857 = vmul.f32 %v151, %v151
    %v2858 = vmul.f32 %v152, %v152
    %v2859 = vmul.f32 %v153, %v153
    %v2860 = vmul.f32 %v154, %v154
    %v2861 = vmul.f32 %v155, %v155
    %v2862 = vmul.f32 %v156, %v156
    %v2863 = vmul.f32 %v157, %v157
    %v2864 = vmul.f32 %v158, %v158
    %v2865 = vmul.f32 %v159, %v159
    %v2866 = vmul.f32 %v160, %v160
    %v2867 = vmul.f32 %v161, %v161
    %v2868 = vmul.f32 %v162, %v162
    %v2869 = vmul.f32 %v163, %v163
    %v2870 = vmul.f32 %v164, %v164
    %v2871 = vmul.f32 %v165, %v165
    %v2872 = vmul.f32 %v166, %v166
    %v2873 = vmul.f32 %v167, %v167
    %v2874 = vmul.f32 %v168, %v168
    %v2875 = vmul.f32 %v169, %v169
    %v2876 = vmul.f32 %v170, %v170
    %v2877 = vmul.f32 %v171, %v171
    %v2878 = vmul.f32 %v172, %v172
    %v2879 = vmul.f32 %v173, %v173
    %v2880 = vmul.f32 %v174, %v174
    %v2881 = vmul.f32 %v175, %v175
    %v2882 = vmul.f32 %v176, %v176
    %v2883 = vmul.f32 %v177, %v177
    %v2884 = vmul.f32 %v178, %v178
    %v2885 = vmul.f32 %v179, %v179
    %v2886 = vmul.f32 %v180, %v180
    %v2887 = vmul.f32 %v181, %v181
    %v2888 = vmul.f32 %v182, %v182
    %v2889 = vmul.f32 %v183, %v183
    %v2890 = vmul.f32 %v184, %v184
    %v2891 = vmul.f32 %v185, %v185
    %v2892 = vmul.f32 %v186, %v186
    %v2893 = vmul.f32 %v187, %v187
    %v2894 = vmul.f32 %v188, %v188
    %v2895 = vmul.f32 %v189, %v189
    %v2896 = vmul.f32 %v190, %v190
    %v2897 = vmul.f32 %v191, %v191
    %v2898 = vmul.f32 %v192, %v192
    %v2899 = vmul.f32 %v193, %v193
    %v2900 = vmul.f32 %v194, %v194
    %v2901 = vmul.f32 %v195, %v195
    %v2902 = vmul.f32 %v196, %v196
    %v2903 = vmul.f32 %v197, %v197
    %v2904 = vmul.f32 %v198, %v198
    %v2905 = vmul.f32 %v199, %v199
    %v2906 = vmul.f32 %v200, %v200
    %v2907 = vmul.f32 %v201, %v201
    %v2908 = vmul.f32 %v202, %v202
    %v2909 = vmul.f32 %v203, %v203
    %v2910 = vmul.f32 %v204, %v204
    %v2911 = vmul.f32 %v205, %v205
    %v2912 = vmul.f32 %v206, %v206
    %v2913 = vmul.f32 %v207, %v207
    %v2914 = vmul.f32 %v208, %v208
    %v2915 = vmul.f32 %v209, %v209
    %v2916 = vmul.f32 %v210, %v210
    %v2917 = vmul.f32 %v211, %v211
    %v2918 = vmul.f32 %v212, %v212
    %v2919 = vmul.f32 %v213, %v213
    %v2920 = vadd.f32 %v2856, %v2857
    %v2921 = vadd.f32 %v2920, %v2858
    %v2922 = vadd.f32 %v2921, %v2859
    %v2923 = vadd.f32 %v2922, %v2860
    %v2924 = vadd.f32 %v2923, %v2861
    %v2925 = vadd.f32 %v2924, %v2862
    %v2926 = vadd.f32 %v2925, %v2863
    %v2927 = vadd.f32 %v2926, %v2864
    %v2928 = vadd.f32 %v2927, %v2865
    %v2929 = vadd.f32 %v2928, %v2866
    %v2930 = vadd.f32 %v2929, %v2867
    %v2931 = vadd.f32 %v2930, %v2868
    %v2932 = vadd.f32 %v2931, %v2869
    %v2933 = vadd.f32 %v2932, %v2870
    %v2934 = vadd.f32 %v2933, %v2871
    %v2935 = vadd.f32 %v2934, %v2872
    %v2936 = vadd.f32 %v2935, %v2873
    %v2937 = vadd.f32 %v2936, %v2874
    %v2938 = vadd.f32 %v2937, %v2875
    %v2939 = vadd.f32 %v2938, %v2876
    %v2940 = vadd.f32 %v2939, %v2877
    %v2941 = vadd.f32 %v2940, %v2878
    %v2942 = vadd.f32 %v2941, %v2879
    %v2943 = vadd.f32 %v2942, %v2880
    %v2944 = vadd.f32 %v2943, %v2881
    %v2945 = vadd.f32 %v2944, %v2882
    %v2946 = vadd.f32 %v2945, %v2883
    %v2947 = vadd.f32 %v2946, %v2884
    %v2948 = vadd.f32 %v2947, %v2885
    %v2949 = vadd.f32 %v2948, %v2886
    %v2950 = vadd.f32 %v2949, %v2887
    %v2951 = vadd.f32 %v2950, %v2888
    %v2952 = vadd.f32 %v2951, %v2889
    %v2953 = vadd.f32 %v2952, %v2890
    %v2954 = vadd.f32 %v2953, %v2891
    %v2955 = vadd.f32 %v2954, %v2892
    %v2956 = vadd.f32 %v2955, %v2893
    %v2957 = vadd.f32 %v2956, %v2894
    %v2958 = vadd.f32 %v2957, %v2895
    %v2959 = vadd.f32 %v2958, %v2896
    %v2960 = vadd.f32 %v2959, %v2897
    %v2961 = vadd.f32 %v2960, %v2898
    %v2962 = vadd.f32 %v2961, %v2899
    %v2963 = vadd.f32 %v2962, %v2900
    %v2964 = vadd.f32 %v2963, %v2901
    %v2965 = vadd.f32 %v2964, %v2902
    %v2966 = vadd.f32 %v2965, %v2903
    %v2967 = vadd.f32 %v2966, %v2904
    %v2968 = vadd.f32 %v2967, %v2905
    %v2969 = vadd.f32 %v2968, %v2906
    %v2970 = vadd.f32 %v2969, %v2907
    %v2971 = vadd.f32 %v2970, %v2908
    %v2972 = vadd.f32 %v2971, %v2909
    %v2973 = vadd.f32 %v2972, %v2910
    %v2974 = vadd.f32 %v2973, %v2911
    %v2975 = vadd.f32 %v2974, %v2912
    %v2976 = vadd.f32 %v2975, %v2913
    %v2977 = vadd.f32 %v2976, %v2914
    %v2978 = vadd.f32 %v2977, %v2915
    %v2979 = vadd.f32 %v2978, %v2916
    %v2980 = vadd.f32 %v2979, %v2917
    %v2981 = vadd.f32 %v2980, %v2918
    %v2982 = vadd.f32 %v2981, %v2919
    %2983 = vadd.xlane.f32.xlu0 %v2982
    %v2984 = vpop.xlane.xlu0 %2983
    %v2985 = vrot.slane %v2984, 4
    %v2986 = vadd.f32 %v2984, %v2985
    %v2987 = vrot.slane %v2986, 2
    %v2988 = vadd.f32 %v2986, %v2987
    %v2989 = vrot.slane %v2988, 1
    %v2990 = vadd.f32 %v2988, %v2989
    %s2991 = vtos %v2990
    %v2992 = vld [vmem:[%s7] sm:$0x3]
    %v2993 = vmul.f32 %v2992, %v2992
    %vm2994 = vcmask 1041408
    %v2995 = vsel %vm2994, %v2993, 0.0
    %2996 = vadd.xlane.f32.xlu0 %v2995
    %v2997 = vpop.xlane.xlu0 %2996
    %v2998 = vrot.slane %v2997, 4
    %v2999 = vadd.f32 %v2997, %v2998
    %v3000 = vrot.slane %v2999, 2
    %v3001 = vadd.f32 %v2999, %v3000
    %v3002 = vrot.slane %v3001, 1
    %v3003 = vadd.f32 %v3001, %v3002
    %s3004 = vtos %v3003
    %s3005 = sadd.f32 %s2991, %s3004
    %s3006 = smul.f32 %s3005, 1e-07
    %s3007 = smul.f32 %s2830, 0.2
    %s3008 = sadd.f32 %s2855, %s3007
    %s3009 = sadd.f32 %s3008, %s3006
    %v3010 = vlaneseq
    %v3011 = vshrl.u32 %v3010, 7
    %vm3012 = vcmp.eq.s32.totalorder %v3011, 0
    %v3013 = vstv %s3009
    %v3014 = vsel %vm3012, %v3013, 0.0
    %vm3015 = vcmp.eq.s32.totalorder %v3011, 1
    %v3016 = vstv %s2855
    %v3017 = vsel %vm3015, %v3016, 0.0
    %v3018 = vadd.f32 %v3014, %v3017
    %vm3019 = vcmp.eq.s32.totalorder %v3011, 2
    %v3020 = vstv %s3007
    %v3021 = vsel %vm3019, %v3020, 0.0
    %v3022 = vadd.f32 %v3018, %v3021
    %3023 = vst [vmem:[%s9] sm:$0xff] %v3022
    // Predicated region
    $region38: #{lightgcl_forward.1} parent=1 // pred_check
      _
    $region39: #{lightgcl_forward.1} parent=1 // pred_check_branch
      %3025 = sbr.rel (0) target = $region41
    $region40: #{lightgcl_forward.1} parent=1 // pred_region
      %s3027 = ssub.s32 128, 128
      %3028 = vsyncadd [#allocation9], %s3027
      %s3030 = sshll.u32 [#allocation11], 4
      %s3031 = int_to_ptr.vmem [resolvable:$true] %s3030
      %3033 = dma.vmem_to_hbm [thread:$0]  %s3031, 128, %s8, [#allocation9]
    $region41: #{lightgcl_forward.1} parent=1 // pred_fallthru
      _
    // Predicated region
    $region42: #{lightgcl_forward.1} parent=1 // pred_check
      _
    $region43: #{lightgcl_forward.1} parent=1 // pred_check_branch
      %3035 = sbr.rel (0) target = $region45
    $region44: #{lightgcl_forward.1} parent=1 // pred_region
      _
    $region45: #{lightgcl_forward.1} parent=1 // pred_fallthru
      _
    // Predicated region
    $region46: #{lightgcl_forward.1} parent=1 // pred_check
      _
    $region47: #{lightgcl_forward.1} parent=1 // pred_check_branch
      %3037 = sbr.rel (0) target = $region49
    $region48: #{lightgcl_forward.1} parent=1 // pred_region
      %3038 = dma.done [#allocation9], 128
    $region49: #{lightgcl_forward.1} parent=1 // pred_fallthru
      _
    // Predicated region
    $region50: #{lightgcl_forward.1} parent=1 // pred_check
      _
    $region51: #{lightgcl_forward.1} parent=1 // pred_check_branch
      %3040 = sbr.rel (0) target = $region53
    $region52: #{lightgcl_forward.1} parent=1 // pred_region
      _
    $region53: #{lightgcl_forward.1} parent=1 // pred_fallthru
      _
    %3041 = vsyncpa [#allocation9], 1
    %3042 = vsyncpa [#allocation10], 1

</llo_original>
